<compile_context>
chip_gen: v6e
topology: v6e:2x2x1
jax: 0.10.0
libtpu: 0.0.40
codegen_flags: <defaults>
</compile_context>

<pallas_src>
import functools

import jax
import jax.numpy as jnp
from jax import lax
from jax.experimental import pallas as pl
from jax.experimental.pallas import tpu as pltpu

EPS = 1e-5                      # PyTorch BatchNorm2d default eps
MXU_DTYPE = jnp.bfloat16        # MXU operand dtype (accumulation stays f32)


# ----------------------------- fused Pallas kernel -----------------------------

def _make_kernel(*, cin, cmid, cout, span, m_valid, m_out, taps, c_center,
                 downsample):
    inv_m = 1.0 / float(m_valid)      # valid (non-padding) pixels for BN1/BN2 stats
    inv_mo = 1.0 / float(m_out)       # real conv2 output positions for BN3 stats
    r_w2 = cin                        # row offsets inside the packed weight tile
    r_w3 = cin + 9 * cmid
    r_ds = cin + 10 * cmid

    def _affine(g, b, total, total_sq, inv_count):
        mean = total * inv_count
        var = jnp.maximum(total_sq * inv_count - mean * mean, 0.0)   # clamp (review)
        scale = g * lax.rsqrt(var + EPS)
        return scale, b - mean * scale

    def kernel(xa_ref, bn_ref, w_ref, o_ref):
        xa = xa_ref[...]                      # (Mp, cin+2) f32, phase-major padded map
        bn = bn_ref[...]                      # (8, Cmax)   f32, packed BN params
        w = w_ref[...]                        # packed weights, MXU dtype

        x = xa[:, :cin]                       # raw padded input values
        imask = xa[:, cin:cin + 1]            # 1 on original pixels, 0 on padding
        vmask = xa[:span, cin + 1:cin + 2]    # 1 on rows that are real conv2 outputs

        # ---- BN1 + ReLU (batch stats; padding rows are zero so sums stay exact) ----
        s1, t1 = _affine(bn[0:1, :cin], bn[1:2, :cin],
                         jnp.sum(x, axis=0, keepdims=True),
                         jnp.sum(x * x, axis=0, keepdims=True), inv_m)
        pre = jnp.maximum(x * s1 + t1, 0.0) * imask              # (Mp, cin) f32

        # ---- conv1 (1x1): one MXU matmul over the whole map (bf16 in, f32 acc) ----
        w1 = w[0:cin, :cmid]
        t = jnp.dot(pre.astype(w1.dtype), w1, preferred_element_type=jnp.float32)

        # ---- BN2 + ReLU; re-zero padding so conv2's zero padding is reproduced ----
        s2, t2 = _affine(bn[2:3, :cmid], bn[3:4, :cmid],
                         jnp.sum(t, axis=0, keepdims=True),
                         jnp.sum(t * t, axis=0, keepdims=True), inv_m)
        y = (jnp.maximum(t * s2 + t2, 0.0) * imask).astype(w1.dtype)  # (Mp, cmid)

        # ---- conv2 (3x3, stride, pad=1): im2col from 9 static row-shifted slices of
        # the in-VMEM map, concatenated on lanes -> ONE wide-K matmul (K = 9*cmid) ----
        ycat = jnp.concatenate([y[c:c + span, :] for c in taps], axis=1)
        acc = jnp.dot(ycat, w[r_w2:r_w2 + 9 * cmid, :cmid],
                      preferred_element_type=jnp.float32)             # (span, cmid)

        # ---- BN3 + ReLU: statistics only over the m_out rows that are real outputs
        # (interleaved "gap" rows of the span window are masked out) ----
        accv = acc * vmask
        s3, t3 = _affine(bn[4:5, :cmid], bn[5:6, :cmid],
                         jnp.sum(accv, axis=0, keepdims=True),
                         jnp.sum(accv * accv, axis=0, keepdims=True), inv_mo)
        z = jnp.maximum(acc * s3 + t3, 0.0)

        # ---- conv3 (1x1) + residual: the only HBM write of the whole block ----
        out = jnp.dot(z.astype(w.dtype), w[r_w3:r_w3 + cmid, :cout],
                      preferred_element_type=jnp.float32)
        if downsample:
            # centre tap of `pre` == exactly the stride-subsampled positions:
            # reuse it for the 1x1/stride downsample projection.
            res = jnp.dot(pre[c_center:c_center + span, :].astype(w.dtype),
                          w[r_ds:r_ds + cin, :cout],
                          preferred_element_type=jnp.float32)
        else:
            res = x[c_center:c_center + span, :]                  # identity shortcut
        o_ref[...] = out + res

    return kernel


# ----------------------------- wrapper -----------------------------

def _full_block(shape):
    nd = len(shape)
    return pl.BlockSpec(shape, lambda i: (0,) * nd)


def bottleneck_v2_forward(x_nchw, params, *, stride, downsample):
    n, cin, h, w_sp = x_nchw.shape
    cmid = params["w1"].shape[-1]
    cout = params["w3"].shape[-1]
    s = stride
    if not downsample:
        assert s == 1 and cin == cout, "identity shortcut needs stride=1, Cin==Cout"

    ho = (h + 2 - 3) // s + 1
    wo = (w_sp + 2 - 3) // s + 1
    hb = ho + 2 // s                       # per-phase rows (all taps fit as windows)
    wb = wo + 2 // s                       # per-phase cols
    span = (n - 1) * hb * wb + (ho - 1) * wb + wo   # rows computed per tap window
    mp = s * s * n * hb * wb               # total rows of the phase-major padded map
    m_valid = n * h * w_sp
    m_out = n * ho * wo

    # ---- pack the activation: zero-pad (conv pad=1), append padding mask + output
    # validity mask as extra channels, space-to-depth (phase-major) so every conv2
    # tap is a contiguous row slice in-kernel.  ONE activation operand, read once. ----
    x = jnp.transpose(x_nchw, (0, 2, 3, 1)).astype(jnp.float32)       # NCHW -> NHWC
    xa = jnp.concatenate(
        [jnp.pad(x, ((0, 0), (1, 1), (1, 1), (0, 0))),
         jnp.pad(jnp.ones((n, h, w_sp, 1), jnp.float32),
                 ((0, 0), (1, 1), (1, 1), (0, 0)))], axis=-1)
    xa = jnp.pad(xa, ((0, 0), (0, s * hb - (h + 2)),
                      (0, s * wb - (w_sp + 2)), (0, 0)))
    xa = (xa.reshape(n, hb, s, wb, s, cin + 1)
            .transpose(2, 4, 0, 1, 3, 5)
            .reshape(mp, cin + 1))
    blk = jnp.arange(mp) % (hb * wb)
    span_valid = ((blk // wb) < ho) & ((blk % wb) < wo)
    xa = jnp.concatenate([xa, span_valid.astype(jnp.float32)[:, None]], axis=-1)

    # ---- pack the six BN vectors into one (8, Cmax) f32 tile ----
    cmax = max(cin, cmid)
    pad_to = lambda v: jnp.pad(v.astype(jnp.float32), (0, cmax - v.shape[0]))
    bn_pack = jnp.stack([pad_to(params["g1"]), pad_to(params["b1"]),
                         pad_to(params["g2"]), pad_to(params["b2"]),
                         pad_to(params["g3"]), pad_to(params["b3"]),
                         jnp.zeros((cmax,), jnp.float32),
                         jnp.zeros((cmax,), jnp.float32)], axis=0)

    # ---- pack all weights into one bf16 tile; w2 flattened to (9*cmid, cmid) so the
    # 3x3 conv becomes a single wide-K matmul ----
    wcol = max(cmid, cout)
    cpad = lambda m: jnp.pad(m, ((0, 0), (0, wcol - m.shape[1])))
    w_ds = params["w_ds"] if downsample else jnp.zeros((cin, cout), jnp.float32)
    w_pack = jnp.concatenate(
        [cpad(params["w1"]),
         cpad(params["w2"].reshape(9 * cmid, cmid)),
         cpad(params["w3"]),
         cpad(w_ds)], axis=0).astype(MXU_DTYPE)

    # per-tap row offsets in the phase-major map; centre tap feeds the shortcut
    def tap_offset(ky, kx):
        return (((ky % s) * s + (kx % s)) * n * hb * wb
                + (ky // s) * wb + (kx // s))
    taps = tuple(tap_offset(ky, kx) for ky in range(3) for kx in range(3))
    c_center = tap_offset(1, 1)

    kernel = _make_kernel(cin=cin, cmid=cmid, cout=cout, span=span,
                          m_valid=m_valid, m_out=m_out, taps=taps,
                          c_center=c_center, downsample=downsample)

    operands = (xa, bn_pack, w_pack)
    out_span = pl.pallas_call(
        kernel,
        out_shape=jax.ShapeDtypeStruct((span, cout), jnp.float32),
        grid=(1,),
        in_specs=[_full_block(a.shape) for a in operands],
        out_specs=_full_block((span, cout)),
        compiler_params=pltpu.CompilerParams(
            # Single grid step: training-mode BN needs whole-map reductions and the
            # whole block (< ~3 MiB resident incl. 128-lane padding at these toy
            # channel widths) fits VMEM on every generation.  See TODO above for the
            # production-scale tiled stats-pass/apply-pass + "parallel" M axis.
            dimension_semantics=("arbitrary",),
            vmem_limit_bytes=32 * 1024 * 1024),
    )(*operands)

    # Drop the interleaved non-output rows of the span window (reshape + slice only).
    out = jnp.pad(out_span, ((0, n * hb * wb - span), (0, 0)))
    out = out.reshape(n, hb, wb, cout)[:, :ho, :wo, :]
    return jnp.transpose(out, (0, 3, 1, 2))                           # NHWC -> NCHW


# ----------------------------- pure-JAX reference -----------------------------

def _conv_ref(x, w_hwio, stride, padding):
    return lax.conv_general_dilated(
        x, w_hwio, window_strides=(stride, stride), padding=padding,
        dimension_numbers=("NHWC", "HWIO", "NHWC"))


def _bn_relu_ref(x, g, b):
    mean = jnp.mean(x, axis=(0, 1, 2), keepdims=True)
    var = jnp.mean(jnp.square(x - mean), axis=(0, 1, 2), keepdims=True)
    return jnp.maximum((x - mean) * g / jnp.sqrt(var + EPS) + b, 0.0)


def bottleneck_v2_ref(x_nchw, params, *, stride, downsample):
    x = jnp.transpose(x_nchw, (0, 2, 3, 1)).astype(jnp.float32)
    pre = _bn_relu_ref(x, params["g1"], params["b1"])
    residual = x
    if downsample:
        residual = _conv_ref(pre, params["w_ds"][None, None], stride, "VALID")
    y = _conv_ref(pre, params["w1"][None, None], 1, "VALID")
    y = _bn_relu_ref(y, params["g2"], params["b2"])
    y = _conv_ref(y, params["w2"], stride, ((1, 1), (1, 1)))
    y = _bn_relu_ref(y, params["g3"], params["b3"])
    y = _conv_ref(y, params["w3"][None, None], 1, "VALID")
    out = y + residual
    return jnp.transpose(out, (0, 3, 1, 2))


# ----------------------------- main -----------------------------

def make_params(key, cin, c):
    cmid = c // 4
    ks = jax.random.split(key, 10)
    return {
        "g1": 1.0 + 0.1 * jax.random.normal(ks[0], (cin,), jnp.float32),
        "b1": 0.1 * jax.random.normal(ks[1], (cin,), jnp.float32),
        "w1": 0.3 * jax.random.normal(ks[2], (cin, cmid), jnp.float32),          # 1x1
        "g2": 1.0 + 0.1 * jax.random.normal(ks[3], (cmid,), jnp.float32),
        "b2": 0.1 * jax.random.normal(ks[4], (cmid,), jnp.float32),
        "w2": 0.2 * jax.random.normal(ks[5], (3, 3, cmid, cmid), jnp.float32),   # HWIO
        "g3": 1.0 + 0.1 * jax.random.normal(ks[6], (cmid,), jnp.float32),
        "b3": 0.1 * jax.random.normal(ks[7], (cmid,), jnp.float32),
        "w3": 0.3 * jax.random.normal(ks[8], (cmid, c), jnp.float32),            # 1x1
        "w_ds": 0.3 * jax.random.normal(ks[9], (cin, c), jnp.float32),           # 1x1 ds
    }


if __name__ == "__main__":
    key = jax.random.PRNGKey(0)
    kp1, kx1, kp2, kx2 = jax.random.split(key, 4)

    # bf16 MXU operands vs. the f32 XLA reference: expected max-abs deviation is a
    # few e-2 at these O(1) activation magnitudes, hence the tolerance below.
    TOL = 7.5e-2

    # Config A: BottleneckV2(in_channels=8, channels=16, stride=2, downsample=True)
    params_a = make_params(kp1, 8, 16)
    x_a = jax.random.normal(kx1, (2, 8, 16, 16), jnp.float32)      # NCHW, as PyTorch
    fwd_a = jax.jit(functools.partial(bottleneck_v2_forward, stride=2, downsample=True))
    out_a = fwd_a(x_a, params_a)
    jax.block_until_ready(out_a)
    ref_a = bottleneck_v2_ref(x_a, params_a, stride=2, downsample=True)
    assert out_a.shape == (2, 16, 8, 8), out_a.shape
    err_a = float(jnp.max(jnp.abs(out_a - ref_a)))
    assert err_a < TOL, f"config A max abs err {err_a}"

    # Config B: identity shortcut path (stride=1, downsample=False, Cin == Cout)
    params_b = make_params(kp2, 16, 16)
    x_b = jax.random.normal(kx2, (2, 16, 8, 8), jnp.float32)
    fwd_b = jax.jit(functools.partial(bottleneck_v2_forward, stride=1, downsample=False))
    out_b = fwd_b(x_b, params_b)
    jax.block_until_ready(out_b)
    ref_b = bottleneck_v2_ref(x_b, params_b, stride=1, downsample=False)
    assert out_b.shape == (2, 16, 8, 8), out_b.shape
    err_b = float(jnp.max(jnp.abs(out_b - ref_b)))
    assert err_b < TOL, f"config B max abs err {err_b}"

    print("KERNEL_OK")
</pallas_src>

<mosaic_0001>
module attributes {stable_mosaic.version = 11 : i64} {
  func.func @kernel(%arg0: i32, %arg1: memref<648x10xf32, #tpu.memory_space<vmem>>, %arg2: memref<8x8xf32, #tpu.memory_space<vmem>>, %arg3: memref<56x16xbf16, #tpu.memory_space<vmem>>, %arg4: memref<152x16xf32, #tpu.memory_space<vmem>>) attributes {dimension_semantics = [#tpu.dimension_semantics<arbitrary>], iteration_bounds = array<i64: 1>, scalar_prefetch = 0 : i64, scratch_operands = 0 : i64, tpu.core_type = #tpu.core_type<tc>, window_params = [{pipeline_mode = #tpu.pipeline_mode<synchronous>, transform_indices = @transform_0, window_bounds = array<i64: 648, 10>}, {pipeline_mode = #tpu.pipeline_mode<synchronous>, transform_indices = @transform_1, window_bounds = array<i64: 8, 8>}, {pipeline_mode = #tpu.pipeline_mode<synchronous>, transform_indices = @transform_2, window_bounds = array<i64: 56, 16>}, {pipeline_mode = #tpu.pipeline_mode<synchronous>, transform_indices = @transform_3, window_bounds = array<i64: 152, 16>}]} {
    %c0 = arith.constant 0 : index
    %c0_0 = arith.constant 0 : index
    %0 = vector.load %arg1[%c0, %c0_0] : memref<648x10xf32, #tpu.memory_space<vmem>>, vector<648x10xf32>
    %c0_1 = arith.constant 0 : index
    %c0_2 = arith.constant 0 : index
    %1 = vector.load %arg2[%c0_1, %c0_2] : memref<8x8xf32, #tpu.memory_space<vmem>>, vector<8x8xf32>
    %c0_3 = arith.constant 0 : index
    %c0_4 = arith.constant 0 : index
    %2 = vector.load %arg3[%c0_3, %c0_4] : memref<56x16xbf16, #tpu.memory_space<vmem>>, vector<56x16xbf16>
    %3 = vector.extract_strided_slice %0 {offsets = [0, 0], sizes = [648, 8], strides = [1, 1]} : vector<648x10xf32> to vector<648x8xf32>
    %4 = vector.extract_strided_slice %0 {offsets = [0, 8], sizes = [648, 1], strides = [1, 1]} : vector<648x10xf32> to vector<648x1xf32>
    %5 = vector.extract_strided_slice %0 {offsets = [0, 9], sizes = [152, 1], strides = [1, 1]} : vector<648x10xf32> to vector<152x1xf32>
    %6 = vector.extract_strided_slice %1 {offsets = [0, 0], sizes = [1, 8], strides = [1, 1]} : vector<8x8xf32> to vector<1x8xf32>
    %7 = vector.extract_strided_slice %1 {offsets = [1, 0], sizes = [1, 8], strides = [1, 1]} : vector<8x8xf32> to vector<1x8xf32>
    %cst = arith.constant dense<0.000000e+00> : vector<8xf32>
    %8 = vector.multi_reduction <add>, %3, %cst [0] : vector<648x8xf32> to vector<8xf32>
    %9 = vector.shape_cast %8 : vector<8xf32> to vector<1x8xf32>
    %10 = arith.mulf %3, %3 : vector<648x8xf32>
    %cst_5 = arith.constant dense<0.000000e+00> : vector<8xf32>
    %11 = vector.multi_reduction <add>, %10, %cst_5 [0] : vector<648x8xf32> to vector<8xf32>
    %12 = vector.shape_cast %11 : vector<8xf32> to vector<1x8xf32>
    %cst_6 = arith.constant 0.001953125 : f32
    %13 = vector.broadcast %cst_6 : f32 to vector<1x8xf32>
    %14 = arith.mulf %9, %13 : vector<1x8xf32>
    %cst_7 = arith.constant 0.001953125 : f32
    %15 = vector.broadcast %cst_7 : f32 to vector<1x8xf32>
    %16 = arith.mulf %12, %15 : vector<1x8xf32>
    %17 = arith.mulf %14, %14 : vector<1x8xf32>
    %18 = arith.subf %16, %17 : vector<1x8xf32>
    %cst_8 = arith.constant 0.000000e+00 : f32
    %19 = vector.broadcast %cst_8 : f32 to vector<1x8xf32>
    %20 = arith.maximumf %18, %19 : vector<1x8xf32>
    %cst_9 = arith.constant 9.99999974E-6 : f32
    %21 = vector.broadcast %cst_9 : f32 to vector<1x8xf32>
    %22 = arith.addf %20, %21 : vector<1x8xf32>
    %23 = math.rsqrt %22 : vector<1x8xf32>
    %24 = arith.mulf %6, %23 : vector<1x8xf32>
    %25 = arith.mulf %14, %24 : vector<1x8xf32>
    %26 = arith.subf %7, %25 : vector<1x8xf32>
    %27 = vector.broadcast %24 : vector<1x8xf32> to vector<648x8xf32>
    %28 = arith.mulf %3, %27 : vector<648x8xf32>
    %29 = vector.broadcast %26 : vector<1x8xf32> to vector<648x8xf32>
    %30 = arith.addf %28, %29 : vector<648x8xf32>
    %cst_10 = arith.constant 0.000000e+00 : f32
    %31 = vector.broadcast %cst_10 : f32 to vector<648x8xf32>
    %32 = arith.maximumf %30, %31 : vector<648x8xf32>
    %33 = vector.broadcast %4 : vector<648x1xf32> to vector<648x8xf32>
    %34 = arith.mulf %32, %33 : vector<648x8xf32>
    %35 = vector.extract_strided_slice %2 {offsets = [0, 0], sizes = [8, 4], strides = [1, 1]} : vector<56x16xbf16> to vector<8x4xbf16>
    %36 = arith.truncf %34 : vector<648x8xf32> to vector<648x8xbf16>
    %cst_11 = arith.constant dense<0.000000e+00> : vector<648x4xf32>
    %37 = tpu.matmul %36, %35, %cst_11 {dimension_numbers = #tpu.dot_dimension_numbers<[1], [0], [0], [1], [0, 0, 1, 1], [], []>} : vector<648x8xbf16>, vector<8x4xbf16>, vector<648x4xf32> -> vector<648x4xf32>
    %38 = vector.extract_strided_slice %1 {offsets = [2, 0], sizes = [1, 4], strides = [1, 1]} : vector<8x8xf32> to vector<1x4xf32>
    %39 = vector.extract_strided_slice %1 {offsets = [3, 0], sizes = [1, 4], strides = [1, 1]} : vector<8x8xf32> to vector<1x4xf32>
    %cst_12 = arith.constant dense<0.000000e+00> : vector<4xf32>
    %40 = vector.multi_reduction <add>, %37, %cst_12 [0] : vector<648x4xf32> to vector<4xf32>
    %41 = vector.shape_cast %40 : vector<4xf32> to vector<1x4xf32>
    %42 = arith.mulf %37, %37 : vector<648x4xf32>
    %cst_13 = arith.constant dense<0.000000e+00> : vector<4xf32>
    %43 = vector.multi_reduction <add>, %42, %cst_13 [0] : vector<648x4xf32> to vector<4xf32>
    %44 = vector.shape_cast %43 : vector<4xf32> to vector<1x4xf32>
    %cst_14 = arith.constant 0.001953125 : f32
    %45 = vector.broadcast %cst_14 : f32 to vector<1x4xf32>
    %46 = arith.mulf %41, %45 : vector<1x4xf32>
    %cst_15 = arith.constant 0.001953125 : f32
    %47 = vector.broadcast %cst_15 : f32 to vector<1x4xf32>
    %48 = arith.mulf %44, %47 : vector<1x4xf32>
    %49 = arith.mulf %46, %46 : vector<1x4xf32>
    %50 = arith.subf %48, %49 : vector<1x4xf32>
    %cst_16 = arith.constant 0.000000e+00 : f32
    %51 = vector.broadcast %cst_16 : f32 to vector<1x4xf32>
    %52 = arith.maximumf %50, %51 : vector<1x4xf32>
    %cst_17 = arith.constant 9.99999974E-6 : f32
    %53 = vector.broadcast %cst_17 : f32 to vector<1x4xf32>
    %54 = arith.addf %52, %53 : vector<1x4xf32>
    %55 = math.rsqrt %54 : vector<1x4xf32>
    %56 = arith.mulf %38, %55 : vector<1x4xf32>
    %57 = arith.mulf %46, %56 : vector<1x4xf32>
    %58 = arith.subf %39, %57 : vector<1x4xf32>
    %59 = vector.broadcast %56 : vector<1x4xf32> to vector<648x4xf32>
    %60 = arith.mulf %37, %59 : vector<648x4xf32>
    %61 = vector.broadcast %58 : vector<1x4xf32> to vector<648x4xf32>
    %62 = arith.addf %60, %61 : vector<648x4xf32>
    %cst_18 = arith.constant 0.000000e+00 : f32
    %63 = vector.broadcast %cst_18 : f32 to vector<648x4xf32>
    %64 = arith.maximumf %62, %63 : vector<648x4xf32>
    %65 = vector.broadcast %4 : vector<648x1xf32> to vector<648x4xf32>
    %66 = arith.mulf %64, %65 : vector<648x4xf32>
    %67 = arith.truncf %66 : vector<648x4xf32> to vector<648x4xbf16>
    %68 = vector.extract_strided_slice %67 {offsets = [0, 0], sizes = [152, 4], strides = [1, 1]} : vector<648x4xbf16> to vector<152x4xbf16>
    %69 = vector.extract_strided_slice %67 {offsets = [162, 0], sizes = [152, 4], strides = [1, 1]} : vector<648x4xbf16> to vector<152x4xbf16>
    %70 = vector.extract_strided_slice %67 {offsets = [1, 0], sizes = [152, 4], strides = [1, 1]} : vector<648x4xbf16> to vector<152x4xbf16>
    %71 = vector.extract_strided_slice %67 {offsets = [324, 0], sizes = [152, 4], strides = [1, 1]} : vector<648x4xbf16> to vector<152x4xbf16>
    %72 = vector.extract_strided_slice %67 {offsets = [486, 0], sizes = [152, 4], strides = [1, 1]} : vector<648x4xbf16> to vector<152x4xbf16>
    %73 = vector.extract_strided_slice %67 {offsets = [325, 0], sizes = [152, 4], strides = [1, 1]} : vector<648x4xbf16> to vector<152x4xbf16>
    %74 = vector.extract_strided_slice %67 {offsets = [9, 0], sizes = [152, 4], strides = [1, 1]} : vector<648x4xbf16> to vector<152x4xbf16>
    %75 = vector.extract_strided_slice %67 {offsets = [171, 0], sizes = [152, 4], strides = [1, 1]} : vector<648x4xbf16> to vector<152x4xbf16>
    %76 = vector.extract_strided_slice %67 {offsets = [10, 0], sizes = [152, 4], strides = [1, 1]} : vector<648x4xbf16> to vector<152x4xbf16>
    %77 = tpu.concatenate %68, %69, %70, %71, %72, %73, %74, %75, %76 in 1 : vector<152x4xbf16>, vector<152x4xbf16>, vector<152x4xbf16>, vector<152x4xbf16>, vector<152x4xbf16>, vector<152x4xbf16>, vector<152x4xbf16>, vector<152x4xbf16>, vector<152x4xbf16> -> vector<152x36xbf16>
    %78 = vector.extract_strided_slice %2 {offsets = [8, 0], sizes = [36, 4], strides = [1, 1]} : vector<56x16xbf16> to vector<36x4xbf16>
    %cst_19 = arith.constant dense<0.000000e+00> : vector<152x4xf32>
    %79 = tpu.matmul %77, %78, %cst_19 {dimension_numbers = #tpu.dot_dimension_numbers<[1], [0], [0], [1], [0, 0, 1, 1], [], []>} : vector<152x36xbf16>, vector<36x4xbf16>, vector<152x4xf32> -> vector<152x4xf32>
    %80 = vector.broadcast %5 : vector<152x1xf32> to vector<152x4xf32>
    %81 = arith.mulf %79, %80 : vector<152x4xf32>
    %82 = vector.extract_strided_slice %1 {offsets = [4, 0], sizes = [1, 4], strides = [1, 1]} : vector<8x8xf32> to vector<1x4xf32>
    %83 = vector.extract_strided_slice %1 {offsets = [5, 0], sizes = [1, 4], strides = [1, 1]} : vector<8x8xf32> to vector<1x4xf32>
    %cst_20 = arith.constant dense<0.000000e+00> : vector<4xf32>
    %84 = vector.multi_reduction <add>, %81, %cst_20 [0] : vector<152x4xf32> to vector<4xf32>
    %85 = vector.shape_cast %84 : vector<4xf32> to vector<1x4xf32>
    %86 = arith.mulf %81, %81 : vector<152x4xf32>
    %cst_21 = arith.constant dense<0.000000e+00> : vector<4xf32>
    %87 = vector.multi_reduction <add>, %86, %cst_21 [0] : vector<152x4xf32> to vector<4xf32>
    %88 = vector.shape_cast %87 : vector<4xf32> to vector<1x4xf32>
    %cst_22 = arith.constant 7.812500e-03 : f32
    %89 = vector.broadcast %cst_22 : f32 to vector<1x4xf32>
    %90 = arith.mulf %85, %89 : vector<1x4xf32>
    %cst_23 = arith.constant 7.812500e-03 : f32
    %91 = vector.broadcast %cst_23 : f32 to vector<1x4xf32>
    %92 = arith.mulf %88, %91 : vector<1x4xf32>
    %93 = arith.mulf %90, %90 : vector<1x4xf32>
    %94 = arith.subf %92, %93 : vector<1x4xf32>
    %cst_24 = arith.constant 0.000000e+00 : f32
    %95 = vector.broadcast %cst_24 : f32 to vector<1x4xf32>
    %96 = arith.maximumf %94, %95 : vector<1x4xf32>
    %cst_25 = arith.constant 9.99999974E-6 : f32
    %97 = vector.broadcast %cst_25 : f32 to vector<1x4xf32>
    %98 = arith.addf %96, %97 : vector<1x4xf32>
    %99 = math.rsqrt %98 : vector<1x4xf32>
    %100 = arith.mulf %82, %99 : vector<1x4xf32>
    %101 = arith.mulf %90, %100 : vector<1x4xf32>
    %102 = arith.subf %83, %101 : vector<1x4xf32>
    %103 = vector.broadcast %100 : vector<1x4xf32> to vector<152x4xf32>
    %104 = arith.mulf %79, %103 : vector<152x4xf32>
    %105 = vector.broadcast %102 : vector<1x4xf32> to vector<152x4xf32>
    %106 = arith.addf %104, %105 : vector<152x4xf32>
    %cst_26 = arith.constant 0.000000e+00 : f32
    %107 = vector.broadcast %cst_26 : f32 to vector<152x4xf32>
    %108 = arith.maximumf %106, %107 : vector<152x4xf32>
    %109 = arith.truncf %108 : vector<152x4xf32> to vector<152x4xbf16>
    %110 = vector.extract_strided_slice %2 {offsets = [44, 0], sizes = [4, 16], strides = [1, 1]} : vector<56x16xbf16> to vector<4x16xbf16>
    %cst_27 = arith.constant dense<0.000000e+00> : vector<152x16xf32>
    %111 = tpu.matmul %109, %110, %cst_27 {dimension_numbers = #tpu.dot_dimension_numbers<[1], [0], [0], [1], [0, 0, 1, 1], [], []>} : vector<152x4xbf16>, vector<4x16xbf16>, vector<152x16xf32> -> vector<152x16xf32>
    %112 = vector.extract_strided_slice %34 {offsets = [486, 0], sizes = [152, 8], strides = [1, 1]} : vector<648x8xf32> to vector<152x8xf32>
    %113 = arith.truncf %112 : vector<152x8xf32> to vector<152x8xbf16>
    %114 = vector.extract_strided_slice %2 {offsets = [48, 0], sizes = [8, 16], strides = [1, 1]} : vector<56x16xbf16> to vector<8x16xbf16>
    %cst_28 = arith.constant dense<0.000000e+00> : vector<152x16xf32>
    %115 = tpu.matmul %113, %114, %cst_28 {dimension_numbers = #tpu.dot_dimension_numbers<[1], [0], [0], [1], [0, 0, 1, 1], [], []>} : vector<152x8xbf16>, vector<8x16xbf16>, vector<152x16xf32> -> vector<152x16xf32>
    %116 = arith.addf %111, %115 : vector<152x16xf32>
    %c0_29 = arith.constant 0 : index
    %c0_30 = arith.constant 0 : index
    %117 = vector.load %arg4[%c0_29, %c0_30] : memref<152x16xf32, #tpu.memory_space<vmem>>, vector<152x16xf32>
    tpu.vector_store %arg4[%c0_29, %c0_30], %116 {strides = array<i32>} : memref<152x16xf32, #tpu.memory_space<vmem>>, vector<152x16xf32>,
    return
  }
  func.func @transform_0(%arg0: i32) -> (i32, i32) {
    %c0_i32 = arith.constant 0 : i32
    %c0_i32_0 = arith.constant 0 : i32
    %c0_i32_1 = arith.constant 0 : i32
    return %c0_i32, %c0_i32_0 : i32, i32
  }
  func.func @transform_1(%arg0: i32) -> (i32, i32) {
    %c0_i32 = arith.constant 0 : i32
    %c0_i32_0 = arith.constant 0 : i32
    %c0_i32_1 = arith.constant 0 : i32
    return %c0_i32, %c0_i32_0 : i32, i32
  }
  func.func @transform_2(%arg0: i32) -> (i32, i32) {
    %c0_i32 = arith.constant 0 : i32
    %c0_i32_0 = arith.constant 0 : i32
    %c0_i32_1 = arith.constant 0 : i32
    return %c0_i32, %c0_i32_0 : i32, i32
  }
  func.func @transform_3(%arg0: i32) -> (i32, i32) {
    %c0_i32 = arith.constant 0 : i32
    %c0_i32_0 = arith.constant 0 : i32
    %c0_i32_1 = arith.constant 0 : i32
    return %c0_i32, %c0_i32_0 : i32, i32
  }
}

</mosaic_0001>

<llo_original>
// kernel: bottleneck_v2_forward.1
$region0: #{bottleneck_v2_forward.1}
  #allocation0 [shape = 'u32[]', space=smem, size = 0x4, offset = 0x4, fixed_abs, tag = 'smem constant byte address 0x4 - core index']
  #allocation1 [shape = 'u32[144,128]{1,0:T(1,128)}', space=vmem, size = 0x12000, scoped, tag = 'internal scratch']
  %s0 = inlined_call_operand.vmem [shape: f32[648,10], index: 0, kind: input, shape index: {}]
  %s1 = inlined_call_operand.vmem [shape: f32[8,8], index: 1, kind: input, shape index: {}]
  %s2 = inlined_call_operand.vmem [shape: bf16[56,16], index: 2, kind: input, shape index: {}]
  %s3 = inlined_call_operand.vmem [shape: f32[152,16], index: 3, kind: output, shape index: {}]
  %s4 = sld [smem:[#allocation0]]
  $region22: #{bottleneck_v2_forward.1} parent=0
    _
  %s6 = ssub.s32 1, %s4
  %s7 = scalar_select 0, %s6, %s4
  // Predicated region
  $region2: #{bottleneck_v2_forward.1} parent=0 // pred_check
    _
  $region3: #{bottleneck_v2_forward.1} parent=0 // pred_check_branch
    %9 = sbr.rel (0) target = $region5
  $region4: #{bottleneck_v2_forward.1} parent=0 // pred_region
    _
  $region5: #{bottleneck_v2_forward.1} parent=0 // pred_fallthru
    _
  // Predicated region
  $region6: #{bottleneck_v2_forward.1} parent=0 // pred_check
    _
  $region7: #{bottleneck_v2_forward.1} parent=0 // pred_check_branch
    %11 = sbr.rel (0) target = $region9
  $region8: #{bottleneck_v2_forward.1} parent=0 // pred_region
    _
  $region9: #{bottleneck_v2_forward.1} parent=0 // pred_fallthru
    _
  // Predicated region
  $region10: #{bottleneck_v2_forward.1} parent=0 // pred_check
    _
  $region11: #{bottleneck_v2_forward.1} parent=0 // pred_check_branch
    %13 = sbr.rel (0) target = $region13
  $region12: #{bottleneck_v2_forward.1} parent=0 // pred_region
    _
  $region13: #{bottleneck_v2_forward.1} parent=0 // pred_fallthru
    _
  %v15 = vld [vmem:[%s0] sm:$0xff]
  %v16 = vld [vmem:[%s0 + $0x8] sm:$0xff]
  %v17 = vld [vmem:[%s0 + $0x10] sm:$0xff]
  %v18 = vld [vmem:[%s0 + $0x18] sm:$0xff]
  %v19 = vld [vmem:[%s0 + $0x20] sm:$0xff]
  %v20 = vld [vmem:[%s0 + $0x28] sm:$0xff]
  %v21 = vld [vmem:[%s0 + $0x30] sm:$0xff]
  %v22 = vld [vmem:[%s0 + $0x38] sm:$0xff]
  %v23 = vld [vmem:[%s0 + $0x40] sm:$0xff]
  %v24 = vld [vmem:[%s0 + $0x48] sm:$0xff]
  %v25 = vld [vmem:[%s0 + $0x50] sm:$0xff]
  %v26 = vld [vmem:[%s0 + $0x58] sm:$0xff]
  %v27 = vld [vmem:[%s0 + $0x60] sm:$0xff]
  %v28 = vld [vmem:[%s0 + $0x68] sm:$0xff]
  %v29 = vld [vmem:[%s0 + $0x70] sm:$0xff]
  %v30 = vld [vmem:[%s0 + $0x78] sm:$0xff]
  %v31 = vld [vmem:[%s0 + $0x80] sm:$0xff]
  %v32 = vld [vmem:[%s0 + $0x88] sm:$0xff]
  %v33 = vld [vmem:[%s0 + $0x90] sm:$0xff]
  %v34 = vld [vmem:[%s0 + $0x98] sm:$0xff]
  %v35 = vld [vmem:[%s0 + $0xa0] sm:$0xff]
  %v36 = vld [vmem:[%s0 + $0xa8] sm:$0xff]
  %v37 = vld [vmem:[%s0 + $0xb0] sm:$0xff]
  %v38 = vld [vmem:[%s0 + $0xb8] sm:$0xff]
  %v39 = vld [vmem:[%s0 + $0xc0] sm:$0xff]
  %v40 = vld [vmem:[%s0 + $0xc8] sm:$0xff]
  %v41 = vld [vmem:[%s0 + $0xd0] sm:$0xff]
  %v42 = vld [vmem:[%s0 + $0xd8] sm:$0xff]
  %v43 = vld [vmem:[%s0 + $0xe0] sm:$0xff]
  %v44 = vld [vmem:[%s0 + $0xe8] sm:$0xff]
  %v45 = vld [vmem:[%s0 + $0xf0] sm:$0xff]
  %v46 = vld [vmem:[%s0 + $0xf8] sm:$0xff]
  %v47 = vld [vmem:[%s0 + $0x100] sm:$0xff]
  %v48 = vld [vmem:[%s0 + $0x108] sm:$0xff]
  %v49 = vld [vmem:[%s0 + $0x110] sm:$0xff]
  %v50 = vld [vmem:[%s0 + $0x118] sm:$0xff]
  %v51 = vld [vmem:[%s0 + $0x120] sm:$0xff]
  %v52 = vld [vmem:[%s0 + $0x128] sm:$0xff]
  %v53 = vld [vmem:[%s0 + $0x130] sm:$0xff]
  %v54 = vld [vmem:[%s0 + $0x138] sm:$0xff]
  %v55 = vld [vmem:[%s0 + $0x140] sm:$0xff]
  %v56 = vld [vmem:[%s0 + $0x148] sm:$0xff]
  %v57 = vld [vmem:[%s0 + $0x150] sm:$0xff]
  %v58 = vld [vmem:[%s0 + $0x158] sm:$0xff]
  %v59 = vld [vmem:[%s0 + $0x160] sm:$0xff]
  %v60 = vld [vmem:[%s0 + $0x168] sm:$0xff]
  %v61 = vld [vmem:[%s0 + $0x170] sm:$0xff]
  %v62 = vld [vmem:[%s0 + $0x178] sm:$0xff]
  %v63 = vld [vmem:[%s0 + $0x180] sm:$0xff]
  %v64 = vld [vmem:[%s0 + $0x188] sm:$0xff]
  %v65 = vld [vmem:[%s0 + $0x190] sm:$0xff]
  %v66 = vld [vmem:[%s0 + $0x198] sm:$0xff]
  %v67 = vld [vmem:[%s0 + $0x1a0] sm:$0xff]
  %v68 = vld [vmem:[%s0 + $0x1a8] sm:$0xff]
  %v69 = vld [vmem:[%s0 + $0x1b0] sm:$0xff]
  %v70 = vld [vmem:[%s0 + $0x1b8] sm:$0xff]
  %v71 = vld [vmem:[%s0 + $0x1c0] sm:$0xff]
  %v72 = vld [vmem:[%s0 + $0x1c8] sm:$0xff]
  %v73 = vld [vmem:[%s0 + $0x1d0] sm:$0xff]
  %v74 = vld [vmem:[%s0 + $0x1d8] sm:$0xff]
  %v75 = vld [vmem:[%s0 + $0x1e0] sm:$0xff]
  %v76 = vld [vmem:[%s0 + $0x1e8] sm:$0xff]
  %v77 = vld [vmem:[%s0 + $0x1f0] sm:$0xff]
  %v78 = vld [vmem:[%s0 + $0x1f8] sm:$0xff]
  %v79 = vld [vmem:[%s0 + $0x200] sm:$0xff]
  %v80 = vld [vmem:[%s0 + $0x208] sm:$0xff]
  %v81 = vld [vmem:[%s0 + $0x210] sm:$0xff]
  %v82 = vld [vmem:[%s0 + $0x218] sm:$0xff]
  %v83 = vld [vmem:[%s0 + $0x220] sm:$0xff]
  %v84 = vld [vmem:[%s0 + $0x228] sm:$0xff]
  %v85 = vld [vmem:[%s0 + $0x230] sm:$0xff]
  %v86 = vld [vmem:[%s0 + $0x238] sm:$0xff]
  %v87 = vld [vmem:[%s0 + $0x240] sm:$0xff]
  %v88 = vld [vmem:[%s0 + $0x248] sm:$0xff]
  %v89 = vld [vmem:[%s0 + $0x250] sm:$0xff]
  %v90 = vld [vmem:[%s0 + $0x258] sm:$0xff]
  %v91 = vld [vmem:[%s0 + $0x260] sm:$0xff]
  %v92 = vld [vmem:[%s0 + $0x268] sm:$0xff]
  %v93 = vld [vmem:[%s0 + $0x270] sm:$0xff]
  %v94 = vld [vmem:[%s0 + $0x278] sm:$0xff]
  %v95 = vld [vmem:[%s0 + $0x280] sm:$0xff]
  %v96 = vld [vmem:[%s1] sm:$0xff]
  %v97 = vld [vmem:[%s2] sm:$0xf]
  %v98 = vld [vmem:[%s2 + $0x4] sm:$0xf]
  %v99 = vld [vmem:[%s2 + $0x8] sm:$0xf]
  %v100 = vld [vmem:[%s2 + $0xc] sm:$0xf]
  %v101 = vld [vmem:[%s2 + $0x10] sm:$0xf]
  %v102 = vld [vmem:[%s2 + $0x14] sm:$0xf]
  %v103 = vld [vmem:[%s2 + $0x18] sm:$0xf]
  %vm104 = vcmask 64512
  %v105 = vsel %vm104, %v15, 0.0
  %v106 = vsel %vm104, %v16, 0.0
  %v107 = vadd.f32 %v105, %v106
  %v108 = vsel %vm104, %v17, 0.0
  %v109 = vadd.f32 %v107, %v108
  %v110 = vsel %vm104, %v18, 0.0
  %v111 = vadd.f32 %v109, %v110
  %v112 = vsel %vm104, %v19, 0.0
  %v113 = vadd.f32 %v111, %v112
  %v114 = vsel %vm104, %v20, 0.0
  %v115 = vadd.f32 %v113, %v114
  %v116 = vsel %vm104, %v21, 0.0
  %v117 = vadd.f32 %v115, %v116
  %v118 = vsel %vm104, %v22, 0.0
  %v119 = vadd.f32 %v117, %v118
  %v120 = vsel %vm104, %v23, 0.0
  %v121 = vadd.f32 %v119, %v120
  %v122 = vsel %vm104, %v24, 0.0
  %v123 = vadd.f32 %v121, %v122
  %v124 = vsel %vm104, %v25, 0.0
  %v125 = vadd.f32 %v123, %v124
  %v126 = vsel %vm104, %v26, 0.0
  %v127 = vadd.f32 %v125, %v126
  %v128 = vsel %vm104, %v27, 0.0
  %v129 = vadd.f32 %v127, %v128
  %v130 = vsel %vm104, %v28, 0.0
  %v131 = vadd.f32 %v129, %v130
  %v132 = vsel %vm104, %v29, 0.0
  %v133 = vadd.f32 %v131, %v132
  %v134 = vsel %vm104, %v30, 0.0
  %v135 = vadd.f32 %v133, %v134
  %v136 = vsel %vm104, %v31, 0.0
  %v137 = vadd.f32 %v135, %v136
  %v138 = vsel %vm104, %v32, 0.0
  %v139 = vadd.f32 %v137, %v138
  %v140 = vsel %vm104, %v33, 0.0
  %v141 = vadd.f32 %v139, %v140
  %v142 = vsel %vm104, %v34, 0.0
  %v143 = vadd.f32 %v141, %v142
  %v144 = vsel %vm104, %v35, 0.0
  %v145 = vadd.f32 %v143, %v144
  %v146 = vsel %vm104, %v36, 0.0
  %v147 = vadd.f32 %v145, %v146
  %v148 = vsel %vm104, %v37, 0.0
  %v149 = vadd.f32 %v147, %v148
  %v150 = vsel %vm104, %v38, 0.0
  %v151 = vadd.f32 %v149, %v150
  %v152 = vsel %vm104, %v39, 0.0
  %v153 = vadd.f32 %v151, %v152
  %v154 = vsel %vm104, %v40, 0.0
  %v155 = vadd.f32 %v153, %v154
  %v156 = vsel %vm104, %v41, 0.0
  %v157 = vadd.f32 %v155, %v156
  %v158 = vsel %vm104, %v42, 0.0
  %v159 = vadd.f32 %v157, %v158
  %v160 = vsel %vm104, %v43, 0.0
  %v161 = vadd.f32 %v159, %v160
  %v162 = vsel %vm104, %v44, 0.0
  %v163 = vadd.f32 %v161, %v162
  %v164 = vsel %vm104, %v45, 0.0
  %v165 = vadd.f32 %v163, %v164
  %v166 = vsel %vm104, %v46, 0.0
  %v167 = vadd.f32 %v165, %v166
  %v168 = vsel %vm104, %v47, 0.0
  %v169 = vadd.f32 %v167, %v168
  %v170 = vsel %vm104, %v48, 0.0
  %v171 = vadd.f32 %v169, %v170
  %v172 = vsel %vm104, %v49, 0.0
  %v173 = vadd.f32 %v171, %v172
  %v174 = vsel %vm104, %v50, 0.0
  %v175 = vadd.f32 %v173, %v174
  %v176 = vsel %vm104, %v51, 0.0
  %v177 = vadd.f32 %v175, %v176
  %v178 = vsel %vm104, %v52, 0.0
  %v179 = vadd.f32 %v177, %v178
  %v180 = vsel %vm104, %v53, 0.0
  %v181 = vadd.f32 %v179, %v180
  %v182 = vsel %vm104, %v54, 0.0
  %v183 = vadd.f32 %v181, %v182
  %v184 = vsel %vm104, %v55, 0.0
  %v185 = vadd.f32 %v183, %v184
  %v186 = vsel %vm104, %v56, 0.0
  %v187 = vadd.f32 %v185, %v186
  %v188 = vsel %vm104, %v57, 0.0
  %v189 = vadd.f32 %v187, %v188
  %v190 = vsel %vm104, %v58, 0.0
  %v191 = vadd.f32 %v189, %v190
  %v192 = vsel %vm104, %v59, 0.0
  %v193 = vadd.f32 %v191, %v192
  %v194 = vsel %vm104, %v60, 0.0
  %v195 = vadd.f32 %v193, %v194
  %v196 = vsel %vm104, %v61, 0.0
  %v197 = vadd.f32 %v195, %v196
  %v198 = vsel %vm104, %v62, 0.0
  %v199 = vadd.f32 %v197, %v198
  %v200 = vsel %vm104, %v63, 0.0
  %v201 = vadd.f32 %v199, %v200
  %v202 = vsel %vm104, %v64, 0.0
  %v203 = vadd.f32 %v201, %v202
  %v204 = vsel %vm104, %v65, 0.0
  %v205 = vadd.f32 %v203, %v204
  %v206 = vsel %vm104, %v66, 0.0
  %v207 = vadd.f32 %v205, %v206
  %v208 = vsel %vm104, %v67, 0.0
  %v209 = vadd.f32 %v207, %v208
  %v210 = vsel %vm104, %v68, 0.0
  %v211 = vadd.f32 %v209, %v210
  %v212 = vsel %vm104, %v69, 0.0
  %v213 = vadd.f32 %v211, %v212
  %v214 = vsel %vm104, %v70, 0.0
  %v215 = vadd.f32 %v213, %v214
  %v216 = vsel %vm104, %v71, 0.0
  %v217 = vadd.f32 %v215, %v216
  %v218 = vsel %vm104, %v72, 0.0
  %v219 = vadd.f32 %v217, %v218
  %v220 = vsel %vm104, %v73, 0.0
  %v221 = vadd.f32 %v219, %v220
  %v222 = vsel %vm104, %v74, 0.0
  %v223 = vadd.f32 %v221, %v222
  %v224 = vsel %vm104, %v75, 0.0
  %v225 = vadd.f32 %v223, %v224
  %v226 = vsel %vm104, %v76, 0.0
  %v227 = vadd.f32 %v225, %v226
  %v228 = vsel %vm104, %v77, 0.0
  %v229 = vadd.f32 %v227, %v228
  %v230 = vsel %vm104, %v78, 0.0
  %v231 = vadd.f32 %v229, %v230
  %v232 = vsel %vm104, %v79, 0.0
  %v233 = vadd.f32 %v231, %v232
  %v234 = vsel %vm104, %v80, 0.0
  %v235 = vadd.f32 %v233, %v234
  %v236 = vsel %vm104, %v81, 0.0
  %v237 = vadd.f32 %v235, %v236
  %v238 = vsel %vm104, %v82, 0.0
  %v239 = vadd.f32 %v237, %v238
  %v240 = vsel %vm104, %v83, 0.0
  %v241 = vadd.f32 %v239, %v240
  %v242 = vsel %vm104, %v84, 0.0
  %v243 = vadd.f32 %v241, %v242
  %v244 = vsel %vm104, %v85, 0.0
  %v245 = vadd.f32 %v243, %v244
  %v246 = vsel %vm104, %v86, 0.0
  %v247 = vadd.f32 %v245, %v246
  %v248 = vsel %vm104, %v87, 0.0
  %v249 = vadd.f32 %v247, %v248
  %v250 = vsel %vm104, %v88, 0.0
  %v251 = vadd.f32 %v249, %v250
  %v252 = vsel %vm104, %v89, 0.0
  %v253 = vadd.f32 %v251, %v252
  %v254 = vsel %vm104, %v90, 0.0
  %v255 = vadd.f32 %v253, %v254
  %v256 = vsel %vm104, %v91, 0.0
  %v257 = vadd.f32 %v255, %v256
  %v258 = vsel %vm104, %v92, 0.0
  %v259 = vadd.f32 %v257, %v258
  %v260 = vsel %vm104, %v93, 0.0
  %v261 = vadd.f32 %v259, %v260
  %v262 = vsel %vm104, %v94, 0.0
  %v263 = vadd.f32 %v261, %v262
  %v264 = vsel %vm104, %v95, 0.0
  %v265 = vadd.f32 %v263, %v264
  %v266 = vrot.slane %v265, 4
  %v267 = vadd.f32 %v265, %v266
  %v268 = vrot.slane %v267, 2
  %v269 = vadd.f32 %v267, %v268
  %v270 = vrot.slane %v269, 1
  %v271 = vadd.f32 %v269, %v270
  %v272 = vmul.f32 %v15, %v15
  %v273 = vmul.f32 %v16, %v16
  %v274 = vmul.f32 %v17, %v17
  %v275 = vmul.f32 %v18, %v18
  %v276 = vmul.f32 %v19, %v19
  %v277 = vmul.f32 %v20, %v20
  %v278 = vmul.f32 %v21, %v21
  %v279 = vmul.f32 %v22, %v22
  %v280 = vmul.f32 %v23, %v23
  %v281 = vmul.f32 %v24, %v24
  %v282 = vmul.f32 %v25, %v25
  %v283 = vmul.f32 %v26, %v26
  %v284 = vmul.f32 %v27, %v27
  %v285 = vmul.f32 %v28, %v28
  %v286 = vmul.f32 %v29, %v29
  %v287 = vmul.f32 %v30, %v30
  %v288 = vmul.f32 %v31, %v31
  %v289 = vmul.f32 %v32, %v32
  %v290 = vmul.f32 %v33, %v33
  %v291 = vmul.f32 %v34, %v34
  %v292 = vmul.f32 %v35, %v35
  %v293 = vmul.f32 %v36, %v36
  %v294 = vmul.f32 %v37, %v37
  %v295 = vmul.f32 %v38, %v38
  %v296 = vmul.f32 %v39, %v39
  %v297 = vmul.f32 %v40, %v40
  %v298 = vmul.f32 %v41, %v41
  %v299 = vmul.f32 %v42, %v42
  %v300 = vmul.f32 %v43, %v43
  %v301 = vmul.f32 %v44, %v44
  %v302 = vmul.f32 %v45, %v45
  %v303 = vmul.f32 %v46, %v46
  %v304 = vmul.f32 %v47, %v47
  %v305 = vmul.f32 %v48, %v48
  %v306 = vmul.f32 %v49, %v49
  %v307 = vmul.f32 %v50, %v50
  %v308 = vmul.f32 %v51, %v51
  %v309 = vmul.f32 %v52, %v52
  %v310 = vmul.f32 %v53, %v53
  %v311 = vmul.f32 %v54, %v54
  %v312 = vmul.f32 %v55, %v55
  %v313 = vmul.f32 %v56, %v56
  %v314 = vmul.f32 %v57, %v57
  %v315 = vmul.f32 %v58, %v58
  %v316 = vmul.f32 %v59, %v59
  %v317 = vmul.f32 %v60, %v60
  %v318 = vmul.f32 %v61, %v61
  %v319 = vmul.f32 %v62, %v62
  %v320 = vmul.f32 %v63, %v63
  %v321 = vmul.f32 %v64, %v64
  %v322 = vmul.f32 %v65, %v65
  %v323 = vmul.f32 %v66, %v66
  %v324 = vmul.f32 %v67, %v67
  %v325 = vmul.f32 %v68, %v68
  %v326 = vmul.f32 %v69, %v69
  %v327 = vmul.f32 %v70, %v70
  %v328 = vmul.f32 %v71, %v71
  %v329 = vmul.f32 %v72, %v72
  %v330 = vmul.f32 %v73, %v73
  %v331 = vmul.f32 %v74, %v74
  %v332 = vmul.f32 %v75, %v75
  %v333 = vmul.f32 %v76, %v76
  %v334 = vmul.f32 %v77, %v77
  %v335 = vmul.f32 %v78, %v78
  %v336 = vmul.f32 %v79, %v79
  %v337 = vmul.f32 %v80, %v80
  %v338 = vmul.f32 %v81, %v81
  %v339 = vmul.f32 %v82, %v82
  %v340 = vmul.f32 %v83, %v83
  %v341 = vmul.f32 %v84, %v84
  %v342 = vmul.f32 %v85, %v85
  %v343 = vmul.f32 %v86, %v86
  %v344 = vmul.f32 %v87, %v87
  %v345 = vmul.f32 %v88, %v88
  %v346 = vmul.f32 %v89, %v89
  %v347 = vmul.f32 %v90, %v90
  %v348 = vmul.f32 %v91, %v91
  %v349 = vmul.f32 %v92, %v92
  %v350 = vmul.f32 %v93, %v93
  %v351 = vmul.f32 %v94, %v94
  %v352 = vmul.f32 %v95, %v95
  %v353 = vsel %vm104, %v272, 0.0
  %v354 = vsel %vm104, %v273, 0.0
  %v355 = vadd.f32 %v353, %v354
  %v356 = vsel %vm104, %v274, 0.0
  %v357 = vadd.f32 %v355, %v356
  %v358 = vsel %vm104, %v275, 0.0
  %v359 = vadd.f32 %v357, %v358
  %v360 = vsel %vm104, %v276, 0.0
  %v361 = vadd.f32 %v359, %v360
  %v362 = vsel %vm104, %v277, 0.0
  %v363 = vadd.f32 %v361, %v362
  %v364 = vsel %vm104, %v278, 0.0
  %v365 = vadd.f32 %v363, %v364
  %v366 = vsel %vm104, %v279, 0.0
  %v367 = vadd.f32 %v365, %v366
  %v368 = vsel %vm104, %v280, 0.0
  %v369 = vadd.f32 %v367, %v368
  %v370 = vsel %vm104, %v281, 0.0
  %v371 = vadd.f32 %v369, %v370
  %v372 = vsel %vm104, %v282, 0.0
  %v373 = vadd.f32 %v371, %v372
  %v374 = vsel %vm104, %v283, 0.0
  %v375 = vadd.f32 %v373, %v374
  %v376 = vsel %vm104, %v284, 0.0
  %v377 = vadd.f32 %v375, %v376
  %v378 = vsel %vm104, %v285, 0.0
  %v379 = vadd.f32 %v377, %v378
  %v380 = vsel %vm104, %v286, 0.0
  %v381 = vadd.f32 %v379, %v380
  %v382 = vsel %vm104, %v287, 0.0
  %v383 = vadd.f32 %v381, %v382
  %v384 = vsel %vm104, %v288, 0.0
  %v385 = vadd.f32 %v383, %v384
  %v386 = vsel %vm104, %v289, 0.0
  %v387 = vadd.f32 %v385, %v386
  %v388 = vsel %vm104, %v290, 0.0
  %v389 = vadd.f32 %v387, %v388
  %v390 = vsel %vm104, %v291, 0.0
  %v391 = vadd.f32 %v389, %v390
  %v392 = vsel %vm104, %v292, 0.0
  %v393 = vadd.f32 %v391, %v392
  %v394 = vsel %vm104, %v293, 0.0
  %v395 = vadd.f32 %v393, %v394
  %v396 = vsel %vm104, %v294, 0.0
  %v397 = vadd.f32 %v395, %v396
  %v398 = vsel %vm104, %v295, 0.0
  %v399 = vadd.f32 %v397, %v398
  %v400 = vsel %vm104, %v296, 0.0
  %v401 = vadd.f32 %v399, %v400
  %v402 = vsel %vm104, %v297, 0.0
  %v403 = vadd.f32 %v401, %v402
  %v404 = vsel %vm104, %v298, 0.0
  %v405 = vadd.f32 %v403, %v404
  %v406 = vsel %vm104, %v299, 0.0
  %v407 = vadd.f32 %v405, %v406
  %v408 = vsel %vm104, %v300, 0.0
  %v409 = vadd.f32 %v407, %v408
  %v410 = vsel %vm104, %v301, 0.0
  %v411 = vadd.f32 %v409, %v410
  %v412 = vsel %vm104, %v302, 0.0
  %v413 = vadd.f32 %v411, %v412
  %v414 = vsel %vm104, %v303, 0.0
  %v415 = vadd.f32 %v413, %v414
  %v416 = vsel %vm104, %v304, 0.0
  %v417 = vadd.f32 %v415, %v416
  %v418 = vsel %vm104, %v305, 0.0
  %v419 = vadd.f32 %v417, %v418
  %v420 = vsel %vm104, %v306, 0.0
  %v421 = vadd.f32 %v419, %v420
  %v422 = vsel %vm104, %v307, 0.0
  %v423 = vadd.f32 %v421, %v422
  %v424 = vsel %vm104, %v308, 0.0
  %v425 = vadd.f32 %v423, %v424
  %v426 = vsel %vm104, %v309, 0.0
  %v427 = vadd.f32 %v425, %v426
  %v428 = vsel %vm104, %v310, 0.0
  %v429 = vadd.f32 %v427, %v428
  %v430 = vsel %vm104, %v311, 0.0
  %v431 = vadd.f32 %v429, %v430
  %v432 = vsel %vm104, %v312, 0.0
  %v433 = vadd.f32 %v431, %v432
  %v434 = vsel %vm104, %v313, 0.0
  %v435 = vadd.f32 %v433, %v434
  %v436 = vsel %vm104, %v314, 0.0
  %v437 = vadd.f32 %v435, %v436
  %v438 = vsel %vm104, %v315, 0.0
  %v439 = vadd.f32 %v437, %v438
  %v440 = vsel %vm104, %v316, 0.0
  %v441 = vadd.f32 %v439, %v440
  %v442 = vsel %vm104, %v317, 0.0
  %v443 = vadd.f32 %v441, %v442
  %v444 = vsel %vm104, %v318, 0.0
  %v445 = vadd.f32 %v443, %v444
  %v446 = vsel %vm104, %v319, 0.0
  %v447 = vadd.f32 %v445, %v446
  %v448 = vsel %vm104, %v320, 0.0
  %v449 = vadd.f32 %v447, %v448
  %v450 = vsel %vm104, %v321, 0.0
  %v451 = vadd.f32 %v449, %v450
  %v452 = vsel %vm104, %v322, 0.0
  %v453 = vadd.f32 %v451, %v452
  %v454 = vsel %vm104, %v323, 0.0
  %v455 = vadd.f32 %v453, %v454
  %v456 = vsel %vm104, %v324, 0.0
  %v457 = vadd.f32 %v455, %v456
  %v458 = vsel %vm104, %v325, 0.0
  %v459 = vadd.f32 %v457, %v458
  %v460 = vsel %vm104, %v326, 0.0
  %v461 = vadd.f32 %v459, %v460
  %v462 = vsel %vm104, %v327, 0.0
  %v463 = vadd.f32 %v461, %v462
  %v464 = vsel %vm104, %v328, 0.0
  %v465 = vadd.f32 %v463, %v464
  %v466 = vsel %vm104, %v329, 0.0
  %v467 = vadd.f32 %v465, %v466
  %v468 = vsel %vm104, %v330, 0.0
  %v469 = vadd.f32 %v467, %v468
  %v470 = vsel %vm104, %v331, 0.0
  %v471 = vadd.f32 %v469, %v470
  %v472 = vsel %vm104, %v332, 0.0
  %v473 = vadd.f32 %v471, %v472
  %v474 = vsel %vm104, %v333, 0.0
  %v475 = vadd.f32 %v473, %v474
  %v476 = vsel %vm104, %v334, 0.0
  %v477 = vadd.f32 %v475, %v476
  %v478 = vsel %vm104, %v335, 0.0
  %v479 = vadd.f32 %v477, %v478
  %v480 = vsel %vm104, %v336, 0.0
  %v481 = vadd.f32 %v479, %v480
  %v482 = vsel %vm104, %v337, 0.0
  %v483 = vadd.f32 %v481, %v482
  %v484 = vsel %vm104, %v338, 0.0
  %v485 = vadd.f32 %v483, %v484
  %v486 = vsel %vm104, %v339, 0.0
  %v487 = vadd.f32 %v485, %v486
  %v488 = vsel %vm104, %v340, 0.0
  %v489 = vadd.f32 %v487, %v488
  %v490 = vsel %vm104, %v341, 0.0
  %v491 = vadd.f32 %v489, %v490
  %v492 = vsel %vm104, %v342, 0.0
  %v493 = vadd.f32 %v491, %v492
  %v494 = vsel %vm104, %v343, 0.0
  %v495 = vadd.f32 %v493, %v494
  %v496 = vsel %vm104, %v344, 0.0
  %v497 = vadd.f32 %v495, %v496
  %v498 = vsel %vm104, %v345, 0.0
  %v499 = vadd.f32 %v497, %v498
  %v500 = vsel %vm104, %v346, 0.0
  %v501 = vadd.f32 %v499, %v500
  %v502 = vsel %vm104, %v347, 0.0
  %v503 = vadd.f32 %v501, %v502
  %v504 = vsel %vm104, %v348, 0.0
  %v505 = vadd.f32 %v503, %v504
  %v506 = vsel %vm104, %v349, 0.0
  %v507 = vadd.f32 %v505, %v506
  %v508 = vsel %vm104, %v350, 0.0
  %v509 = vadd.f32 %v507, %v508
  %v510 = vsel %vm104, %v351, 0.0
  %v511 = vadd.f32 %v509, %v510
  %v512 = vsel %vm104, %v352, 0.0
  %v513 = vadd.f32 %v511, %v512
  %v514 = vrot.slane %v513, 4
  %v515 = vadd.f32 %v513, %v514
  %v516 = vrot.slane %v515, 2
  %v517 = vadd.f32 %v515, %v516
  %v518 = vrot.slane %v517, 1
  %v519 = vadd.f32 %v517, %v518
  %v520 = vmul.f32 %v271, 0.001953125
  %v521 = vmul.f32 %v519, 0.001953125
  %v522 = vmul.f32 %v520, %v520
  %v523 = vsub.f32 %v521, %v522
  %v524 = vmax.f32 %v523, 0.0
  %v525 = vadd.f32 %v524, 1e-05
  %v526 = vrsqrt.pop %v525
  %v527 = vmul.f32 %v96, %v526
  %v528 = vmul.f32 %v520, %v527
  %v530 = vrot.slane %v528, 7
  %v532 = vsub.f32 %v96, %v530
  %v533 = vlaneseq
  %v534 = vshrl.u32 %v533, 7
  %v535 = vsub.s32 0, %v534
  %v536 = vrot.slane %v527, %v535
  %v537 = vmul.f32 %v15, %v536
  %v538 = vmul.f32 %v16, %v536
  %v539 = vmul.f32 %v17, %v536
  %v540 = vmul.f32 %v18, %v536
  %v541 = vmul.f32 %v19, %v536
  %v542 = vmul.f32 %v20, %v536
  %v543 = vmul.f32 %v21, %v536
  %v544 = vmul.f32 %v22, %v536
  %v545 = vmul.f32 %v23, %v536
  %v546 = vmul.f32 %v24, %v536
  %v547 = vmul.f32 %v25, %v536
  %v548 = vmul.f32 %v26, %v536
  %v549 = vmul.f32 %v27, %v536
  %v550 = vmul.f32 %v28, %v536
  %v551 = vmul.f32 %v29, %v536
  %v552 = vmul.f32 %v30, %v536
  %v553 = vmul.f32 %v31, %v536
  %v554 = vmul.f32 %v32, %v536
  %v555 = vmul.f32 %v33, %v536
  %v556 = vmul.f32 %v34, %v536
  %v557 = vmul.f32 %v35, %v536
  %v558 = vmul.f32 %v36, %v536
  %v559 = vmul.f32 %v37, %v536
  %v560 = vmul.f32 %v38, %v536
  %v561 = vmul.f32 %v39, %v536
  %v562 = vmul.f32 %v40, %v536
  %v563 = vmul.f32 %v41, %v536
  %v564 = vmul.f32 %v42, %v536
  %v565 = vmul.f32 %v43, %v536
  %v566 = vmul.f32 %v44, %v536
  %v567 = vmul.f32 %v45, %v536
  %v568 = vmul.f32 %v46, %v536
  %v569 = vmul.f32 %v47, %v536
  %v570 = vmul.f32 %v48, %v536
  %v571 = vmul.f32 %v49, %v536
  %v572 = vmul.f32 %v50, %v536
  %v573 = vmul.f32 %v51, %v536
  %v574 = vmul.f32 %v52, %v536
  %v575 = vmul.f32 %v53, %v536
  %v576 = vmul.f32 %v54, %v536
  %v577 = vmul.f32 %v55, %v536
  %v578 = vmul.f32 %v56, %v536
  %v579 = vmul.f32 %v57, %v536
  %v580 = vmul.f32 %v58, %v536
  %v581 = vmul.f32 %v59, %v536
  %v582 = vmul.f32 %v60, %v536
  %v583 = vmul.f32 %v61, %v536
  %v584 = vmul.f32 %v62, %v536
  %v585 = vmul.f32 %v63, %v536
  %v586 = vmul.f32 %v64, %v536
  %v587 = vmul.f32 %v65, %v536
  %v588 = vmul.f32 %v66, %v536
  %v589 = vmul.f32 %v67, %v536
  %v590 = vmul.f32 %v68, %v536
  %v591 = vmul.f32 %v69, %v536
  %v592 = vmul.f32 %v70, %v536
  %v593 = vmul.f32 %v71, %v536
  %v594 = vmul.f32 %v72, %v536
  %v595 = vmul.f32 %v73, %v536
  %v596 = vmul.f32 %v74, %v536
  %v597 = vmul.f32 %v75, %v536
  %v598 = vmul.f32 %v76, %v536
  %v599 = vmul.f32 %v77, %v536
  %v600 = vmul.f32 %v78, %v536
  %v601 = vmul.f32 %v79, %v536
  %v602 = vmul.f32 %v80, %v536
  %v603 = vmul.f32 %v81, %v536
  %v604 = vmul.f32 %v82, %v536
  %v605 = vmul.f32 %v83, %v536
  %v606 = vmul.f32 %v84, %v536
  %v607 = vmul.f32 %v85, %v536
  %v608 = vmul.f32 %v86, %v536
  %v609 = vmul.f32 %v87, %v536
  %v610 = vmul.f32 %v88, %v536
  %v611 = vmul.f32 %v89, %v536
  %v612 = vmul.f32 %v90, %v536
  %v613 = vmul.f32 %v91, %v536
  %v614 = vmul.f32 %v92, %v536
  %v615 = vmul.f32 %v93, %v536
  %v616 = vmul.f32 %v94, %v536
  %v617 = vmul.f32 %v95, %v536
  %v618 = vlaneseq
  %v619 = vshrl.u32 %v618, 7
  %v620 = vsub.s32 1, %v619
  %v621 = vrot.slane %v532, %v620
  %v622 = vadd.f32 %v537, %v621
  %v623 = vadd.f32 %v538, %v621
  %v624 = vadd.f32 %v539, %v621
  %v625 = vadd.f32 %v540, %v621
  %v626 = vadd.f32 %v541, %v621
  %v627 = vadd.f32 %v542, %v621
  %v628 = vadd.f32 %v543, %v621
  %v629 = vadd.f32 %v544, %v621
  %v630 = vadd.f32 %v545, %v621
  %v631 = vadd.f32 %v546, %v621
  %v632 = vadd.f32 %v547, %v621
  %v633 = vadd.f32 %v548, %v621
  %v634 = vadd.f32 %v549, %v621
  %v635 = vadd.f32 %v550, %v621
  %v636 = vadd.f32 %v551, %v621
  %v637 = vadd.f32 %v552, %v621
  %v638 = vadd.f32 %v553, %v621
  %v639 = vadd.f32 %v554, %v621
  %v640 = vadd.f32 %v555, %v621
  %v641 = vadd.f32 %v556, %v621
  %v642 = vadd.f32 %v557, %v621
  %v643 = vadd.f32 %v558, %v621
  %v644 = vadd.f32 %v559, %v621
  %v645 = vadd.f32 %v560, %v621
  %v646 = vadd.f32 %v561, %v621
  %v647 = vadd.f32 %v562, %v621
  %v648 = vadd.f32 %v563, %v621
  %v649 = vadd.f32 %v564, %v621
  %v650 = vadd.f32 %v565, %v621
  %v651 = vadd.f32 %v566, %v621
  %v652 = vadd.f32 %v567, %v621
  %v653 = vadd.f32 %v568, %v621
  %v654 = vadd.f32 %v569, %v621
  %v655 = vadd.f32 %v570, %v621
  %v656 = vadd.f32 %v571, %v621
  %v657 = vadd.f32 %v572, %v621
  %v658 = vadd.f32 %v573, %v621
  %v659 = vadd.f32 %v574, %v621
  %v660 = vadd.f32 %v575, %v621
  %v661 = vadd.f32 %v576, %v621
  %v662 = vadd.f32 %v577, %v621
  %v663 = vadd.f32 %v578, %v621
  %v664 = vadd.f32 %v579, %v621
  %v665 = vadd.f32 %v580, %v621
  %v666 = vadd.f32 %v581, %v621
  %v667 = vadd.f32 %v582, %v621
  %v668 = vadd.f32 %v583, %v621
  %v669 = vadd.f32 %v584, %v621
  %v670 = vadd.f32 %v585, %v621
  %v671 = vadd.f32 %v586, %v621
  %v672 = vadd.f32 %v587, %v621
  %v673 = vadd.f32 %v588, %v621
  %v674 = vadd.f32 %v589, %v621
  %v675 = vadd.f32 %v590, %v621
  %v676 = vadd.f32 %v591, %v621
  %v677 = vadd.f32 %v592, %v621
  %v678 = vadd.f32 %v593, %v621
  %v679 = vadd.f32 %v594, %v621
  %v680 = vadd.f32 %v595, %v621
  %v681 = vadd.f32 %v596, %v621
  %v682 = vadd.f32 %v597, %v621
  %v683 = vadd.f32 %v598, %v621
  %v684 = vadd.f32 %v599, %v621
  %v685 = vadd.f32 %v600, %v621
  %v686 = vadd.f32 %v601, %v621
  %v687 = vadd.f32 %v602, %v621
  %v688 = vadd.f32 %v603, %v621
  %v689 = vadd.f32 %v604, %v621
  %v690 = vadd.f32 %v605, %v621
  %v691 = vadd.f32 %v606, %v621
  %v692 = vadd.f32 %v607, %v621
  %v693 = vadd.f32 %v608, %v621
  %v694 = vadd.f32 %v609, %v621
  %v695 = vadd.f32 %v610, %v621
  %v696 = vadd.f32 %v611, %v621
  %v697 = vadd.f32 %v612, %v621
  %v698 = vadd.f32 %v613, %v621
  %v699 = vadd.f32 %v614, %v621
  %v700 = vadd.f32 %v615, %v621
  %v701 = vadd.f32 %v616, %v621
  %v702 = vadd.f32 %v617, %v621
  %v703 = vmax.f32 %v622, 0.0
  %v704 = vmax.f32 %v623, 0.0
  %v705 = vmax.f32 %v624, 0.0
  %v706 = vmax.f32 %v625, 0.0
  %v707 = vmax.f32 %v626, 0.0
  %v708 = vmax.f32 %v627, 0.0
  %v709 = vmax.f32 %v628, 0.0
  %v710 = vmax.f32 %v629, 0.0
  %v711 = vmax.f32 %v630, 0.0
  %v712 = vmax.f32 %v631, 0.0
  %v713 = vmax.f32 %v632, 0.0
  %v714 = vmax.f32 %v633, 0.0
  %v715 = vmax.f32 %v634, 0.0
  %v716 = vmax.f32 %v635, 0.0
  %v717 = vmax.f32 %v636, 0.0
  %v718 = vmax.f32 %v637, 0.0
  %v719 = vmax.f32 %v638, 0.0
  %v720 = vmax.f32 %v639, 0.0
  %v721 = vmax.f32 %v640, 0.0
  %v722 = vmax.f32 %v641, 0.0
  %v723 = vmax.f32 %v642, 0.0
  %v724 = vmax.f32 %v643, 0.0
  %v725 = vmax.f32 %v644, 0.0
  %v726 = vmax.f32 %v645, 0.0
  %v727 = vmax.f32 %v646, 0.0
  %v728 = vmax.f32 %v647, 0.0
  %v729 = vmax.f32 %v648, 0.0
  %v730 = vmax.f32 %v649, 0.0
  %v731 = vmax.f32 %v650, 0.0
  %v732 = vmax.f32 %v651, 0.0
  %v733 = vmax.f32 %v652, 0.0
  %v734 = vmax.f32 %v653, 0.0
  %v735 = vmax.f32 %v654, 0.0
  %v736 = vmax.f32 %v655, 0.0
  %v737 = vmax.f32 %v656, 0.0
  %v738 = vmax.f32 %v657, 0.0
  %v739 = vmax.f32 %v658, 0.0
  %v740 = vmax.f32 %v659, 0.0
  %v741 = vmax.f32 %v660, 0.0
  %v742 = vmax.f32 %v661, 0.0
  %v743 = vmax.f32 %v662, 0.0
  %v744 = vmax.f32 %v663, 0.0
  %v745 = vmax.f32 %v664, 0.0
  %v746 = vmax.f32 %v665, 0.0
  %v747 = vmax.f32 %v666, 0.0
  %v748 = vmax.f32 %v667, 0.0
  %v749 = vmax.f32 %v668, 0.0
  %v750 = vmax.f32 %v669, 0.0
  %v751 = vmax.f32 %v670, 0.0
  %v752 = vmax.f32 %v671, 0.0
  %v753 = vmax.f32 %v672, 0.0
  %v754 = vmax.f32 %v673, 0.0
  %v755 = vmax.f32 %v674, 0.0
  %v756 = vmax.f32 %v675, 0.0
  %v757 = vmax.f32 %v676, 0.0
  %v758 = vmax.f32 %v677, 0.0
  %v759 = vmax.f32 %v678, 0.0
  %v760 = vmax.f32 %v679, 0.0
  %v761 = vmax.f32 %v680, 0.0
  %v762 = vmax.f32 %v681, 0.0
  %v763 = vmax.f32 %v682, 0.0
  %v764 = vmax.f32 %v683, 0.0
  %v765 = vmax.f32 %v684, 0.0
  %v766 = vmax.f32 %v685, 0.0
  %v767 = vmax.f32 %v686, 0.0
  %v768 = vmax.f32 %v687, 0.0
  %v769 = vmax.f32 %v688, 0.0
  %v770 = vmax.f32 %v689, 0.0
  %v771 = vmax.f32 %v690, 0.0
  %v772 = vmax.f32 %v691, 0.0
  %v773 = vmax.f32 %v692, 0.0
  %v774 = vmax.f32 %v693, 0.0
  %v775 = vmax.f32 %v694, 0.0
  %v776 = vmax.f32 %v695, 0.0
  %v777 = vmax.f32 %v696, 0.0
  %v778 = vmax.f32 %v697, 0.0
  %v779 = vmax.f32 %v698, 0.0
  %v780 = vmax.f32 %v699, 0.0
  %v781 = vmax.f32 %v700, 0.0
  %v782 = vmax.f32 %v701, 0.0
  %v783 = vmax.f32 %v702, 0.0
  %785 = vset.pattern.permute.xlu0 8
  %786 = vperm.xlu0 %785, %v15
  %v787 = vpop.permute.xlu0 %786
  %790 = vset.pattern.permute.xlu0 8
  %791 = vperm.xlu0 %790, %v16
  %v792 = vpop.permute.xlu0 %791
  %795 = vset.pattern.permute.xlu0 8
  %796 = vperm.xlu0 %795, %v17
  %v797 = vpop.permute.xlu0 %796
  %800 = vset.pattern.permute.xlu0 8
  %801 = vperm.xlu0 %800, %v18
  %v802 = vpop.permute.xlu0 %801
  %805 = vset.pattern.permute.xlu0 8
  %806 = vperm.xlu0 %805, %v19
  %v807 = vpop.permute.xlu0 %806
  %810 = vset.pattern.permute.xlu0 8
  %811 = vperm.xlu0 %810, %v20
  %v812 = vpop.permute.xlu0 %811
  %815 = vset.pattern.permute.xlu0 8
  %816 = vperm.xlu0 %815, %v21
  %v817 = vpop.permute.xlu0 %816
  %820 = vset.pattern.permute.xlu0 8
  %821 = vperm.xlu0 %820, %v22
  %v822 = vpop.permute.xlu0 %821
  %825 = vset.pattern.permute.xlu0 8
  %826 = vperm.xlu0 %825, %v23
  %v827 = vpop.permute.xlu0 %826
  %830 = vset.pattern.permute.xlu0 8
  %831 = vperm.xlu0 %830, %v24
  %v832 = vpop.permute.xlu0 %831
  %835 = vset.pattern.permute.xlu0 8
  %836 = vperm.xlu0 %835, %v25
  %v837 = vpop.permute.xlu0 %836
  %840 = vset.pattern.permute.xlu0 8
  %841 = vperm.xlu0 %840, %v26
  %v842 = vpop.permute.xlu0 %841
  %845 = vset.pattern.permute.xlu0 8
  %846 = vperm.xlu0 %845, %v27
  %v847 = vpop.permute.xlu0 %846
  %850 = vset.pattern.permute.xlu0 8
  %851 = vperm.xlu0 %850, %v28
  %v852 = vpop.permute.xlu0 %851
  %855 = vset.pattern.permute.xlu0 8
  %856 = vperm.xlu0 %855, %v29
  %v857 = vpop.permute.xlu0 %856
  %860 = vset.pattern.permute.xlu0 8
  %861 = vperm.xlu0 %860, %v30
  %v862 = vpop.permute.xlu0 %861
  %865 = vset.pattern.permute.xlu0 8
  %866 = vperm.xlu0 %865, %v31
  %v867 = vpop.permute.xlu0 %866
  %870 = vset.pattern.permute.xlu0 8
  %871 = vperm.xlu0 %870, %v32
  %v872 = vpop.permute.xlu0 %871
  %875 = vset.pattern.permute.xlu0 8
  %876 = vperm.xlu0 %875, %v33
  %v877 = vpop.permute.xlu0 %876
  %880 = vset.pattern.permute.xlu0 8
  %881 = vperm.xlu0 %880, %v34
  %v882 = vpop.permute.xlu0 %881
  %885 = vset.pattern.permute.xlu0 8
  %886 = vperm.xlu0 %885, %v35
  %v887 = vpop.permute.xlu0 %886
  %890 = vset.pattern.permute.xlu0 8
  %891 = vperm.xlu0 %890, %v36
  %v892 = vpop.permute.xlu0 %891
  %895 = vset.pattern.permute.xlu0 8
  %896 = vperm.xlu0 %895, %v37
  %v897 = vpop.permute.xlu0 %896
  %900 = vset.pattern.permute.xlu0 8
  %901 = vperm.xlu0 %900, %v38
  %v902 = vpop.permute.xlu0 %901
  %905 = vset.pattern.permute.xlu0 8
  %906 = vperm.xlu0 %905, %v39
  %v907 = vpop.permute.xlu0 %906
  %910 = vset.pattern.permute.xlu0 8
  %911 = vperm.xlu0 %910, %v40
  %v912 = vpop.permute.xlu0 %911
  %915 = vset.pattern.permute.xlu0 8
  %916 = vperm.xlu0 %915, %v41
  %v917 = vpop.permute.xlu0 %916
  %920 = vset.pattern.permute.xlu0 8
  %921 = vperm.xlu0 %920, %v42
  %v922 = vpop.permute.xlu0 %921
  %925 = vset.pattern.permute.xlu0 8
  %926 = vperm.xlu0 %925, %v43
  %v927 = vpop.permute.xlu0 %926
  %930 = vset.pattern.permute.xlu0 8
  %931 = vperm.xlu0 %930, %v44
  %v932 = vpop.permute.xlu0 %931
  %935 = vset.pattern.permute.xlu0 8
  %936 = vperm.xlu0 %935, %v45
  %v937 = vpop.permute.xlu0 %936
  %940 = vset.pattern.permute.xlu0 8
  %941 = vperm.xlu0 %940, %v46
  %v942 = vpop.permute.xlu0 %941
  %945 = vset.pattern.permute.xlu0 8
  %946 = vperm.xlu0 %945, %v47
  %v947 = vpop.permute.xlu0 %946
  %950 = vset.pattern.permute.xlu0 8
  %951 = vperm.xlu0 %950, %v48
  %v952 = vpop.permute.xlu0 %951
  %955 = vset.pattern.permute.xlu0 8
  %956 = vperm.xlu0 %955, %v49
  %v957 = vpop.permute.xlu0 %956
  %960 = vset.pattern.permute.xlu0 8
  %961 = vperm.xlu0 %960, %v50
  %v962 = vpop.permute.xlu0 %961
  %965 = vset.pattern.permute.xlu0 8
  %966 = vperm.xlu0 %965, %v51
  %v967 = vpop.permute.xlu0 %966
  %970 = vset.pattern.permute.xlu0 8
  %971 = vperm.xlu0 %970, %v52
  %v972 = vpop.permute.xlu0 %971
  %975 = vset.pattern.permute.xlu0 8
  %976 = vperm.xlu0 %975, %v53
  %v977 = vpop.permute.xlu0 %976
  %980 = vset.pattern.permute.xlu0 8
  %981 = vperm.xlu0 %980, %v54
  %v982 = vpop.permute.xlu0 %981
  %985 = vset.pattern.permute.xlu0 8
  %986 = vperm.xlu0 %985, %v55
  %v987 = vpop.permute.xlu0 %986
  %990 = vset.pattern.permute.xlu0 8
  %991 = vperm.xlu0 %990, %v56
  %v992 = vpop.permute.xlu0 %991
  %995 = vset.pattern.permute.xlu0 8
  %996 = vperm.xlu0 %995, %v57
  %v997 = vpop.permute.xlu0 %996
  %1000 = vset.pattern.permute.xlu0 8
  %1001 = vperm.xlu0 %1000, %v58
  %v1002 = vpop.permute.xlu0 %1001
  %1005 = vset.pattern.permute.xlu0 8
  %1006 = vperm.xlu0 %1005, %v59
  %v1007 = vpop.permute.xlu0 %1006
  %1010 = vset.pattern.permute.xlu0 8
  %1011 = vperm.xlu0 %1010, %v60
  %v1012 = vpop.permute.xlu0 %1011
  %1015 = vset.pattern.permute.xlu0 8
  %1016 = vperm.xlu0 %1015, %v61
  %v1017 = vpop.permute.xlu0 %1016
  %1020 = vset.pattern.permute.xlu0 8
  %1021 = vperm.xlu0 %1020, %v62
  %v1022 = vpop.permute.xlu0 %1021
  %1025 = vset.pattern.permute.xlu0 8
  %1026 = vperm.xlu0 %1025, %v63
  %v1027 = vpop.permute.xlu0 %1026
  %1030 = vset.pattern.permute.xlu0 8
  %1031 = vperm.xlu0 %1030, %v64
  %v1032 = vpop.permute.xlu0 %1031
  %1035 = vset.pattern.permute.xlu0 8
  %1036 = vperm.xlu0 %1035, %v65
  %v1037 = vpop.permute.xlu0 %1036
  %1040 = vset.pattern.permute.xlu0 8
  %1041 = vperm.xlu0 %1040, %v66
  %v1042 = vpop.permute.xlu0 %1041
  %1045 = vset.pattern.permute.xlu0 8
  %1046 = vperm.xlu0 %1045, %v67
  %v1047 = vpop.permute.xlu0 %1046
  %1050 = vset.pattern.permute.xlu0 8
  %1051 = vperm.xlu0 %1050, %v68
  %v1052 = vpop.permute.xlu0 %1051
  %1055 = vset.pattern.permute.xlu0 8
  %1056 = vperm.xlu0 %1055, %v69
  %v1057 = vpop.permute.xlu0 %1056
  %1060 = vset.pattern.permute.xlu0 8
  %1061 = vperm.xlu0 %1060, %v70
  %v1062 = vpop.permute.xlu0 %1061
  %1065 = vset.pattern.permute.xlu0 8
  %1066 = vperm.xlu0 %1065, %v71
  %v1067 = vpop.permute.xlu0 %1066
  %1070 = vset.pattern.permute.xlu0 8
  %1071 = vperm.xlu0 %1070, %v72
  %v1072 = vpop.permute.xlu0 %1071
  %1075 = vset.pattern.permute.xlu0 8
  %1076 = vperm.xlu0 %1075, %v73
  %v1077 = vpop.permute.xlu0 %1076
  %1080 = vset.pattern.permute.xlu0 8
  %1081 = vperm.xlu0 %1080, %v74
  %v1082 = vpop.permute.xlu0 %1081
  %1085 = vset.pattern.permute.xlu0 8
  %1086 = vperm.xlu0 %1085, %v75
  %v1087 = vpop.permute.xlu0 %1086
  %1090 = vset.pattern.permute.xlu0 8
  %1091 = vperm.xlu0 %1090, %v76
  %v1092 = vpop.permute.xlu0 %1091
  %1095 = vset.pattern.permute.xlu0 8
  %1096 = vperm.xlu0 %1095, %v77
  %v1097 = vpop.permute.xlu0 %1096
  %1100 = vset.pattern.permute.xlu0 8
  %1101 = vperm.xlu0 %1100, %v78
  %v1102 = vpop.permute.xlu0 %1101
  %1105 = vset.pattern.permute.xlu0 8
  %1106 = vperm.xlu0 %1105, %v79
  %v1107 = vpop.permute.xlu0 %1106
  %1110 = vset.pattern.permute.xlu0 8
  %1111 = vperm.xlu0 %1110, %v80
  %v1112 = vpop.permute.xlu0 %1111
  %1115 = vset.pattern.permute.xlu0 8
  %1116 = vperm.xlu0 %1115, %v81
  %v1117 = vpop.permute.xlu0 %1116
  %1120 = vset.pattern.permute.xlu0 8
  %1121 = vperm.xlu0 %1120, %v82
  %v1122 = vpop.permute.xlu0 %1121
  %1125 = vset.pattern.permute.xlu0 8
  %1126 = vperm.xlu0 %1125, %v83
  %v1127 = vpop.permute.xlu0 %1126
  %1130 = vset.pattern.permute.xlu0 8
  %1131 = vperm.xlu0 %1130, %v84
  %v1132 = vpop.permute.xlu0 %1131
  %1135 = vset.pattern.permute.xlu0 8
  %1136 = vperm.xlu0 %1135, %v85
  %v1137 = vpop.permute.xlu0 %1136
  %1140 = vset.pattern.permute.xlu0 8
  %1141 = vperm.xlu0 %1140, %v86
  %v1142 = vpop.permute.xlu0 %1141
  %1145 = vset.pattern.permute.xlu0 8
  %1146 = vperm.xlu0 %1145, %v87
  %v1147 = vpop.permute.xlu0 %1146
  %1150 = vset.pattern.permute.xlu0 8
  %1151 = vperm.xlu0 %1150, %v88
  %v1152 = vpop.permute.xlu0 %1151
  %1155 = vset.pattern.permute.xlu0 8
  %1156 = vperm.xlu0 %1155, %v89
  %v1157 = vpop.permute.xlu0 %1156
  %1160 = vset.pattern.permute.xlu0 8
  %1161 = vperm.xlu0 %1160, %v90
  %v1162 = vpop.permute.xlu0 %1161
  %1165 = vset.pattern.permute.xlu0 8
  %1166 = vperm.xlu0 %1165, %v91
  %v1167 = vpop.permute.xlu0 %1166
  %1170 = vset.pattern.permute.xlu0 8
  %1171 = vperm.xlu0 %1170, %v92
  %v1172 = vpop.permute.xlu0 %1171
  %1175 = vset.pattern.permute.xlu0 8
  %1176 = vperm.xlu0 %1175, %v93
  %v1177 = vpop.permute.xlu0 %1176
  %1180 = vset.pattern.permute.xlu0 8
  %1181 = vperm.xlu0 %1180, %v94
  %v1182 = vpop.permute.xlu0 %1181
  %1185 = vset.pattern.permute.xlu0 8
  %1186 = vperm.xlu0 %1185, %v95
  %v1187 = vpop.permute.xlu0 %1186
  %v1189 = vmul.f32 %v703, %v787
  %v1190 = vmul.f32 %v704, %v792
  %v1191 = vmul.f32 %v705, %v797
  %v1192 = vmul.f32 %v706, %v802
  %v1193 = vmul.f32 %v707, %v807
  %v1194 = vmul.f32 %v708, %v812
  %v1195 = vmul.f32 %v709, %v817
  %v1196 = vmul.f32 %v710, %v822
  %v1197 = vmul.f32 %v711, %v827
  %v1198 = vmul.f32 %v712, %v832
  %v1199 = vmul.f32 %v713, %v837
  %v1200 = vmul.f32 %v714, %v842
  %v1201 = vmul.f32 %v715, %v847
  %v1202 = vmul.f32 %v716, %v852
  %v1203 = vmul.f32 %v717, %v857
  %v1204 = vmul.f32 %v718, %v862
  %v1205 = vmul.f32 %v719, %v867
  %v1206 = vmul.f32 %v720, %v872
  %v1207 = vmul.f32 %v721, %v877
  %v1208 = vmul.f32 %v722, %v882
  %v1209 = vmul.f32 %v723, %v887
  %v1210 = vmul.f32 %v724, %v892
  %v1211 = vmul.f32 %v725, %v897
  %v1212 = vmul.f32 %v726, %v902
  %v1213 = vmul.f32 %v727, %v907
  %v1214 = vmul.f32 %v728, %v912
  %v1215 = vmul.f32 %v729, %v917
  %v1216 = vmul.f32 %v730, %v922
  %v1217 = vmul.f32 %v731, %v927
  %v1218 = vmul.f32 %v732, %v932
  %v1219 = vmul.f32 %v733, %v937
  %v1220 = vmul.f32 %v734, %v942
  %v1221 = vmul.f32 %v735, %v947
  %v1222 = vmul.f32 %v736, %v952
  %v1223 = vmul.f32 %v737, %v957
  %v1224 = vmul.f32 %v738, %v962
  %v1225 = vmul.f32 %v739, %v967
  %v1226 = vmul.f32 %v740, %v972
  %v1227 = vmul.f32 %v741, %v977
  %v1228 = vmul.f32 %v742, %v982
  %v1229 = vmul.f32 %v743, %v987
  %v1230 = vmul.f32 %v744, %v992
  %v1231 = vmul.f32 %v745, %v997
  %v1232 = vmul.f32 %v746, %v1002
  %v1233 = vmul.f32 %v747, %v1007
  %v1234 = vmul.f32 %v748, %v1012
  %v1235 = vmul.f32 %v749, %v1017
  %v1236 = vmul.f32 %v750, %v1022
  %v1237 = vmul.f32 %v751, %v1027
  %v1238 = vmul.f32 %v752, %v1032
  %v1239 = vmul.f32 %v753, %v1037
  %v1240 = vmul.f32 %v754, %v1042
  %v1241 = vmul.f32 %v755, %v1047
  %v1242 = vmul.f32 %v756, %v1052
  %v1243 = vmul.f32 %v757, %v1057
  %v1244 = vmul.f32 %v758, %v1062
  %v1245 = vmul.f32 %v759, %v1067
  %v1246 = vmul.f32 %v760, %v1072
  %v1247 = vmul.f32 %v761, %v1077
  %v1248 = vmul.f32 %v762, %v1082
  %v1249 = vmul.f32 %v763, %v1087
  %v1250 = vmul.f32 %v764, %v1092
  %v1251 = vmul.f32 %v765, %v1097
  %v1252 = vmul.f32 %v766, %v1102
  %v1253 = vmul.f32 %v767, %v1107
  %v1254 = vmul.f32 %v768, %v1112
  %v1255 = vmul.f32 %v769, %v1117
  %v1256 = vmul.f32 %v770, %v1122
  %v1257 = vmul.f32 %v771, %v1127
  %v1258 = vmul.f32 %v772, %v1132
  %v1259 = vmul.f32 %v773, %v1137
  %v1260 = vmul.f32 %v774, %v1142
  %v1261 = vmul.f32 %v775, %v1147
  %v1262 = vmul.f32 %v776, %v1152
  %v1263 = vmul.f32 %v777, %v1157
  %v1264 = vmul.f32 %v778, %v1162
  %v1265 = vmul.f32 %v779, %v1167
  %v1266 = vmul.f32 %v780, %v1172
  %v1267 = vmul.f32 %v781, %v1177
  %v1268 = vmul.f32 %v782, %v1182
  %v1269 = vmul.f32 %v783, %v1187
  %v1270 = vpack.c.bf16 %v1190, %v1189
  %v1271 = vpack.c.bf16 %v1192, %v1191
  %v1272 = vpack.c.bf16 %v1194, %v1193
  %v1273 = vpack.c.bf16 %v1196, %v1195
  %v1274 = vpack.c.bf16 %v1198, %v1197
  %v1275 = vpack.c.bf16 %v1200, %v1199
  %v1276 = vpack.c.bf16 %v1202, %v1201
  %v1277 = vpack.c.bf16 %v1204, %v1203
  %v1278 = vpack.c.bf16 %v1206, %v1205
  %v1279 = vpack.c.bf16 %v1208, %v1207
  %v1280 = vpack.c.bf16 %v1210, %v1209
  %v1281 = vpack.c.bf16 %v1212, %v1211
  %v1282 = vpack.c.bf16 %v1214, %v1213
  %v1283 = vpack.c.bf16 %v1216, %v1215
  %v1284 = vpack.c.bf16 %v1218, %v1217
  %v1285 = vpack.c.bf16 %v1220, %v1219
  %v1286 = vpack.c.bf16 %v1222, %v1221
  %v1287 = vpack.c.bf16 %v1224, %v1223
  %v1288 = vpack.c.bf16 %v1226, %v1225
  %v1289 = vpack.c.bf16 %v1228, %v1227
  %v1290 = vpack.c.bf16 %v1230, %v1229
  %v1291 = vpack.c.bf16 %v1232, %v1231
  %v1292 = vpack.c.bf16 %v1234, %v1233
  %v1293 = vpack.c.bf16 %v1236, %v1235
  %v1294 = vpack.c.bf16 %v1238, %v1237
  %v1295 = vpack.c.bf16 %v1240, %v1239
  %v1296 = vpack.c.bf16 %v1242, %v1241
  %v1297 = vpack.c.bf16 %v1244, %v1243
  %v1298 = vpack.c.bf16 %v1246, %v1245
  %v1299 = vpack.c.bf16 %v1248, %v1247
  %v1300 = vpack.c.bf16 %v1250, %v1249
  %v1301 = vpack.c.bf16 %v1252, %v1251
  %v1302 = vpack.c.bf16 %v1254, %v1253
  %v1303 = vpack.c.bf16 %v1256, %v1255
  %v1304 = vpack.c.bf16 %v1258, %v1257
  %v1305 = vpack.c.bf16 %v1260, %v1259
  %v1306 = vpack.c.bf16 %v1262, %v1261
  %v1307 = vpack.c.bf16 %v1264, %v1263
  %v1308 = vpack.c.bf16 %v1266, %v1265
  %v1309 = vpack.c.bf16 %v1268, %v1267
  %v1310 = vpack.c.bf16 %v1269, %v1269
  %v1312 = vsel %vm104, %v1270, 0
  %v1315 = vsel %vm104, %v1271, 0
  %v1318 = vsel %vm104, %v1272, 0
  %v1321 = vsel %vm104, %v1273, 0
  %v1324 = vsel %vm104, %v1274, 0
  %v1327 = vsel %vm104, %v1275, 0
  %v1330 = vsel %vm104, %v1276, 0
  %v1333 = vsel %vm104, %v1277, 0
  %v1336 = vsel %vm104, %v1278, 0
  %v1339 = vsel %vm104, %v1279, 0
  %v1342 = vsel %vm104, %v1280, 0
  %v1345 = vsel %vm104, %v1281, 0
  %v1348 = vsel %vm104, %v1282, 0
  %v1351 = vsel %vm104, %v1283, 0
  %v1354 = vsel %vm104, %v1284, 0
  %v1357 = vsel %vm104, %v1285, 0
  %v1360 = vsel %vm104, %v1286, 0
  %v1363 = vsel %vm104, %v1287, 0
  %v1366 = vsel %vm104, %v1288, 0
  %v1369 = vsel %vm104, %v1289, 0
  %v1372 = vsel %vm104, %v1290, 0
  %v1375 = vsel %vm104, %v1291, 0
  %v1378 = vsel %vm104, %v1292, 0
  %v1381 = vsel %vm104, %v1293, 0
  %v1384 = vsel %vm104, %v1294, 0
  %v1387 = vsel %vm104, %v1295, 0
  %v1390 = vsel %vm104, %v1296, 0
  %v1393 = vsel %vm104, %v1297, 0
  %v1396 = vsel %vm104, %v1298, 0
  %v1399 = vsel %vm104, %v1299, 0
  %v1402 = vsel %vm104, %v1300, 0
  %v1405 = vsel %vm104, %v1301, 0
  %v1408 = vsel %vm104, %v1302, 0
  %v1411 = vsel %vm104, %v1303, 0
  %v1414 = vsel %vm104, %v1304, 0
  %v1417 = vsel %vm104, %v1305, 0
  %v1420 = vsel %vm104, %v1306, 0
  %v1423 = vsel %vm104, %v1307, 0
  %v1426 = vsel %vm104, %v1308, 0
  %v1429 = vsel %vm104, %v1309, 0
  %v1432 = vsel %vm104, %v1310, 0
  %vm1434 = vcmask 1043456
  %v1436 = vsel %vm1434, %v97, 0
  %1438 = vmatprep.subr.bf16.mxu0 0
  %1439 = vmatpush1.bf16.msra.mxu0 0
  %1440 = vmatprep.subr.bf16.mxu0 0
  %1441 = vmatpush1.bf16.msra.mxu0 0
  %1442 = vmatprep.subr.bf16.mxu0 0
  %1443 = vmatpush1.bf16.msra.mxu0 0
  %1444 = vmatprep.subr.bf16.mxu0 0
  %1445 = vmatpush1.bf16.msra.mxu0 0
  %1446 = vmatprep.subr.bf16.mxu0 0
  %1447 = vmatpush1.bf16.msra.mxu0 0
  %1448 = vmatprep.subr.bf16.mxu0 0
  %1449 = vmatpush1.bf16.msra.mxu0 0
  %1450 = vmatprep.subr.bf16.mxu0 0
  %1451 = vmatpush1.bf16.msra.mxu0 0
  %1452 = vmatprep.subr.bf16.mxu0 0
  %1453 = vmatpush1.bf16.msra.mxu0 %v1436
  %1454 = vmatprep.subr.bf16.mxu0 0
  %1455 = vmatpush2.bf16.msra.mxu0 0
  %1456 = vmatprep.subr.bf16.mxu0 0
  %1457 = vmatpush2.bf16.msra.mxu0 0
  %1458 = vmatprep.subr.bf16.mxu0 0
  %1459 = vmatpush2.bf16.msra.mxu0 0
  %1460 = vmatprep.subr.bf16.mxu0 0
  %1461 = vmatpush2.bf16.msra.mxu0 0
  %1462 = vmatprep.subr.bf16.mxu0 0
  %1463 = vmatpush2.bf16.msra.mxu0 0
  %1464 = vmatprep.subr.bf16.mxu0 0
  %1465 = vmatpush2.bf16.msra.mxu0 0
  %1466 = vmatprep.subr.bf16.mxu0 0
  %1467 = vmatpush2.bf16.msra.mxu0 0
  %1468 = vmatprep.subr.bf16.mxu0 0
  %1469 = vmatpush2.bf16.msra.mxu0 0
  %1470 = vmatprep.mubr.bf16.mxu0 0
  %1471 = vmatmul.mubr.bf16.gmra.mxu0 %v1312
  %v1472 = vpop.f32.mrf.mxu0
  %v1473 = vadd.f32 0.0, %v1472
  %v1474 = vpop.f32.mrf.mxu0
  %v1475 = vpop.f32.mrf.mxu0
  %v1476 = vadd.f32 0.0, %v1475
  %v1477 = vpop.f32.mrf.mxu0
  %1478 = vmatprep.mubr.bf16.mxu0 0
  %1479 = vmatmul.mubr.bf16.gmra.mxu0 %v1315
  %v1480 = vpop.f32.mrf.mxu0
  %v1481 = vadd.f32 0.0, %v1480
  %v1482 = vpop.f32.mrf.mxu0
  %v1483 = vpop.f32.mrf.mxu0
  %v1484 = vadd.f32 0.0, %v1483
  %v1485 = vpop.f32.mrf.mxu0
  %1486 = vmatprep.mubr.bf16.mxu0 0
  %1487 = vmatmul.mubr.bf16.gmra.mxu0 %v1318
  %v1488 = vpop.f32.mrf.mxu0
  %v1489 = vadd.f32 0.0, %v1488
  %v1490 = vpop.f32.mrf.mxu0
  %v1491 = vpop.f32.mrf.mxu0
  %v1492 = vadd.f32 0.0, %v1491
  %v1493 = vpop.f32.mrf.mxu0
  %1494 = vmatprep.mubr.bf16.mxu0 0
  %1495 = vmatmul.mubr.bf16.gmra.mxu0 %v1321
  %v1496 = vpop.f32.mrf.mxu0
  %v1497 = vadd.f32 0.0, %v1496
  %v1498 = vpop.f32.mrf.mxu0
  %v1499 = vpop.f32.mrf.mxu0
  %v1500 = vadd.f32 0.0, %v1499
  %v1501 = vpop.f32.mrf.mxu0
  %1502 = vmatprep.mubr.bf16.mxu0 0
  %1503 = vmatmul.mubr.bf16.gmra.mxu0 %v1324
  %v1504 = vpop.f32.mrf.mxu0
  %v1505 = vadd.f32 0.0, %v1504
  %v1506 = vpop.f32.mrf.mxu0
  %v1507 = vpop.f32.mrf.mxu0
  %v1508 = vadd.f32 0.0, %v1507
  %v1509 = vpop.f32.mrf.mxu0
  %1510 = vmatprep.mubr.bf16.mxu0 0
  %1511 = vmatmul.mubr.bf16.gmra.mxu0 %v1327
  %v1512 = vpop.f32.mrf.mxu0
  %v1513 = vadd.f32 0.0, %v1512
  %v1514 = vpop.f32.mrf.mxu0
  %v1515 = vpop.f32.mrf.mxu0
  %v1516 = vadd.f32 0.0, %v1515
  %v1517 = vpop.f32.mrf.mxu0
  %1518 = vmatprep.mubr.bf16.mxu0 0
  %1519 = vmatmul.mubr.bf16.gmra.mxu0 %v1330
  %v1520 = vpop.f32.mrf.mxu0
  %v1521 = vadd.f32 0.0, %v1520
  %v1522 = vpop.f32.mrf.mxu0
  %v1523 = vpop.f32.mrf.mxu0
  %v1524 = vadd.f32 0.0, %v1523
  %v1525 = vpop.f32.mrf.mxu0
  %1526 = vmatprep.mubr.bf16.mxu0 0
  %1527 = vmatmul.mubr.bf16.gmra.mxu0 %v1333
  %v1528 = vpop.f32.mrf.mxu0
  %v1529 = vadd.f32 0.0, %v1528
  %v1530 = vpop.f32.mrf.mxu0
  %v1531 = vpop.f32.mrf.mxu0
  %v1532 = vadd.f32 0.0, %v1531
  %v1533 = vpop.f32.mrf.mxu0
  %1534 = vmatprep.mubr.bf16.mxu0 0
  %1535 = vmatmul.mubr.bf16.gmra.mxu0 %v1336
  %v1536 = vpop.f32.mrf.mxu0
  %v1537 = vadd.f32 0.0, %v1536
  %v1538 = vpop.f32.mrf.mxu0
  %v1539 = vpop.f32.mrf.mxu0
  %v1540 = vadd.f32 0.0, %v1539
  %v1541 = vpop.f32.mrf.mxu0
  %1542 = vmatprep.mubr.bf16.mxu0 0
  %1543 = vmatmul.mubr.bf16.gmra.mxu0 %v1339
  %v1544 = vpop.f32.mrf.mxu0
  %v1545 = vadd.f32 0.0, %v1544
  %v1546 = vpop.f32.mrf.mxu0
  %v1547 = vpop.f32.mrf.mxu0
  %v1548 = vadd.f32 0.0, %v1547
  %v1549 = vpop.f32.mrf.mxu0
  %1550 = vmatprep.mubr.bf16.mxu0 0
  %1551 = vmatmul.mubr.bf16.gmra.mxu0 %v1342
  %v1552 = vpop.f32.mrf.mxu0
  %v1553 = vadd.f32 0.0, %v1552
  %v1554 = vpop.f32.mrf.mxu0
  %v1555 = vpop.f32.mrf.mxu0
  %v1556 = vadd.f32 0.0, %v1555
  %v1557 = vpop.f32.mrf.mxu0
  %1558 = vmatprep.mubr.bf16.mxu0 0
  %1559 = vmatmul.mubr.bf16.gmra.mxu0 %v1345
  %v1560 = vpop.f32.mrf.mxu0
  %v1561 = vadd.f32 0.0, %v1560
  %v1562 = vpop.f32.mrf.mxu0
  %v1563 = vpop.f32.mrf.mxu0
  %v1564 = vadd.f32 0.0, %v1563
  %v1565 = vpop.f32.mrf.mxu0
  %1566 = vmatprep.mubr.bf16.mxu0 0
  %1567 = vmatmul.mubr.bf16.gmra.mxu0 %v1348
  %v1568 = vpop.f32.mrf.mxu0
  %v1569 = vadd.f32 0.0, %v1568
  %v1570 = vpop.f32.mrf.mxu0
  %v1571 = vpop.f32.mrf.mxu0
  %v1572 = vadd.f32 0.0, %v1571
  %v1573 = vpop.f32.mrf.mxu0
  %1574 = vmatprep.mubr.bf16.mxu0 0
  %1575 = vmatmul.mubr.bf16.gmra.mxu0 %v1351
  %v1576 = vpop.f32.mrf.mxu0
  %v1577 = vadd.f32 0.0, %v1576
  %v1578 = vpop.f32.mrf.mxu0
  %v1579 = vpop.f32.mrf.mxu0
  %v1580 = vadd.f32 0.0, %v1579
  %v1581 = vpop.f32.mrf.mxu0
  %1582 = vmatprep.mubr.bf16.mxu0 0
  %1583 = vmatmul.mubr.bf16.gmra.mxu0 %v1354
  %v1584 = vpop.f32.mrf.mxu0
  %v1585 = vadd.f32 0.0, %v1584
  %v1586 = vpop.f32.mrf.mxu0
  %v1587 = vpop.f32.mrf.mxu0
  %v1588 = vadd.f32 0.0, %v1587
  %v1589 = vpop.f32.mrf.mxu0
  %1590 = vmatprep.mubr.bf16.mxu0 0
  %1591 = vmatmul.mubr.bf16.gmra.mxu0 %v1357
  %v1592 = vpop.f32.mrf.mxu0
  %v1593 = vadd.f32 0.0, %v1592
  %v1594 = vpop.f32.mrf.mxu0
  %v1595 = vpop.f32.mrf.mxu0
  %v1596 = vadd.f32 0.0, %v1595
  %v1597 = vpop.f32.mrf.mxu0
  %1598 = vmatprep.mubr.bf16.mxu0 0
  %1599 = vmatmul.mubr.bf16.gmra.mxu0 %v1360
  %v1600 = vpop.f32.mrf.mxu0
  %v1601 = vadd.f32 0.0, %v1600
  %v1602 = vpop.f32.mrf.mxu0
  %v1603 = vpop.f32.mrf.mxu0
  %v1604 = vadd.f32 0.0, %v1603
  %v1605 = vpop.f32.mrf.mxu0
  %1606 = vmatprep.mubr.bf16.mxu0 0
  %1607 = vmatmul.mubr.bf16.gmra.mxu0 %v1363
  %v1608 = vpop.f32.mrf.mxu0
  %v1609 = vadd.f32 0.0, %v1608
  %v1610 = vpop.f32.mrf.mxu0
  %v1611 = vpop.f32.mrf.mxu0
  %v1612 = vadd.f32 0.0, %v1611
  %v1613 = vpop.f32.mrf.mxu0
  %1614 = vmatprep.mubr.bf16.mxu0 0
  %1615 = vmatmul.mubr.bf16.gmra.mxu0 %v1366
  %v1616 = vpop.f32.mrf.mxu0
  %v1617 = vadd.f32 0.0, %v1616
  %v1618 = vpop.f32.mrf.mxu0
  %v1619 = vpop.f32.mrf.mxu0
  %v1620 = vadd.f32 0.0, %v1619
  %v1621 = vpop.f32.mrf.mxu0
  %1622 = vmatprep.mubr.bf16.mxu0 0
  %1623 = vmatmul.mubr.bf16.gmra.mxu0 %v1369
  %v1624 = vpop.f32.mrf.mxu0
  %v1625 = vadd.f32 0.0, %v1624
  %v1626 = vpop.f32.mrf.mxu0
  %v1627 = vpop.f32.mrf.mxu0
  %v1628 = vadd.f32 0.0, %v1627
  %v1629 = vpop.f32.mrf.mxu0
  %1630 = vmatprep.mubr.bf16.mxu0 0
  %1631 = vmatmul.mubr.bf16.gmra.mxu0 %v1372
  %v1632 = vpop.f32.mrf.mxu0
  %v1633 = vadd.f32 0.0, %v1632
  %v1634 = vpop.f32.mrf.mxu0
  %v1635 = vpop.f32.mrf.mxu0
  %v1636 = vadd.f32 0.0, %v1635
  %v1637 = vpop.f32.mrf.mxu0
  %1638 = vmatprep.mubr.bf16.mxu0 0
  %1639 = vmatmul.mubr.bf16.gmra.mxu0 %v1375
  %v1640 = vpop.f32.mrf.mxu0
  %v1641 = vadd.f32 0.0, %v1640
  %v1642 = vpop.f32.mrf.mxu0
  %v1643 = vpop.f32.mrf.mxu0
  %v1644 = vadd.f32 0.0, %v1643
  %v1645 = vpop.f32.mrf.mxu0
  %1646 = vmatprep.mubr.bf16.mxu0 0
  %1647 = vmatmul.mubr.bf16.gmra.mxu0 %v1378
  %v1648 = vpop.f32.mrf.mxu0
  %v1649 = vadd.f32 0.0, %v1648
  %v1650 = vpop.f32.mrf.mxu0
  %v1651 = vpop.f32.mrf.mxu0
  %v1652 = vadd.f32 0.0, %v1651
  %v1653 = vpop.f32.mrf.mxu0
  %1654 = vmatprep.mubr.bf16.mxu0 0
  %1655 = vmatmul.mubr.bf16.gmra.mxu0 %v1381
  %v1656 = vpop.f32.mrf.mxu0
  %v1657 = vadd.f32 0.0, %v1656
  %v1658 = vpop.f32.mrf.mxu0
  %v1659 = vpop.f32.mrf.mxu0
  %v1660 = vadd.f32 0.0, %v1659
  %v1661 = vpop.f32.mrf.mxu0
  %1662 = vmatprep.mubr.bf16.mxu0 0
  %1663 = vmatmul.mubr.bf16.gmra.mxu0 %v1384
  %v1664 = vpop.f32.mrf.mxu0
  %v1665 = vadd.f32 0.0, %v1664
  %v1666 = vpop.f32.mrf.mxu0
  %v1667 = vpop.f32.mrf.mxu0
  %v1668 = vadd.f32 0.0, %v1667
  %v1669 = vpop.f32.mrf.mxu0
  %1670 = vmatprep.mubr.bf16.mxu0 0
  %1671 = vmatmul.mubr.bf16.gmra.mxu0 %v1387
  %v1672 = vpop.f32.mrf.mxu0
  %v1673 = vadd.f32 0.0, %v1672
  %v1674 = vpop.f32.mrf.mxu0
  %v1675 = vpop.f32.mrf.mxu0
  %v1676 = vadd.f32 0.0, %v1675
  %v1677 = vpop.f32.mrf.mxu0
  %1678 = vmatprep.mubr.bf16.mxu0 0
  %1679 = vmatmul.mubr.bf16.gmra.mxu0 %v1390
  %v1680 = vpop.f32.mrf.mxu0
  %v1681 = vadd.f32 0.0, %v1680
  %v1682 = vpop.f32.mrf.mxu0
  %v1683 = vpop.f32.mrf.mxu0
  %v1684 = vadd.f32 0.0, %v1683
  %v1685 = vpop.f32.mrf.mxu0
  %1686 = vmatprep.mubr.bf16.mxu0 0
  %1687 = vmatmul.mubr.bf16.gmra.mxu0 %v1393
  %v1688 = vpop.f32.mrf.mxu0
  %v1689 = vadd.f32 0.0, %v1688
  %v1690 = vpop.f32.mrf.mxu0
  %v1691 = vpop.f32.mrf.mxu0
  %v1692 = vadd.f32 0.0, %v1691
  %v1693 = vpop.f32.mrf.mxu0
  %1694 = vmatprep.mubr.bf16.mxu0 0
  %1695 = vmatmul.mubr.bf16.gmra.mxu0 %v1396
  %v1696 = vpop.f32.mrf.mxu0
  %v1697 = vadd.f32 0.0, %v1696
  %v1698 = vpop.f32.mrf.mxu0
  %v1699 = vpop.f32.mrf.mxu0
  %v1700 = vadd.f32 0.0, %v1699
  %v1701 = vpop.f32.mrf.mxu0
  %1702 = vmatprep.mubr.bf16.mxu0 0
  %1703 = vmatmul.mubr.bf16.gmra.mxu0 %v1399
  %v1704 = vpop.f32.mrf.mxu0
  %v1705 = vadd.f32 0.0, %v1704
  %v1706 = vpop.f32.mrf.mxu0
  %v1707 = vpop.f32.mrf.mxu0
  %v1708 = vadd.f32 0.0, %v1707
  %v1709 = vpop.f32.mrf.mxu0
  %1710 = vmatprep.mubr.bf16.mxu0 0
  %1711 = vmatmul.mubr.bf16.gmra.mxu0 %v1402
  %v1712 = vpop.f32.mrf.mxu0
  %v1713 = vadd.f32 0.0, %v1712
  %v1714 = vpop.f32.mrf.mxu0
  %v1715 = vpop.f32.mrf.mxu0
  %v1716 = vadd.f32 0.0, %v1715
  %v1717 = vpop.f32.mrf.mxu0
  %1718 = vmatprep.mubr.bf16.mxu0 0
  %1719 = vmatmul.mubr.bf16.gmra.mxu0 %v1405
  %v1720 = vpop.f32.mrf.mxu0
  %v1721 = vadd.f32 0.0, %v1720
  %v1722 = vpop.f32.mrf.mxu0
  %v1723 = vpop.f32.mrf.mxu0
  %v1724 = vadd.f32 0.0, %v1723
  %v1725 = vpop.f32.mrf.mxu0
  %1726 = vmatprep.mubr.bf16.mxu0 0
  %1727 = vmatmul.mubr.bf16.gmra.mxu0 %v1408
  %v1728 = vpop.f32.mrf.mxu0
  %v1729 = vadd.f32 0.0, %v1728
  %v1730 = vpop.f32.mrf.mxu0
  %v1731 = vpop.f32.mrf.mxu0
  %v1732 = vadd.f32 0.0, %v1731
  %v1733 = vpop.f32.mrf.mxu0
  %1734 = vmatprep.mubr.bf16.mxu0 0
  %1735 = vmatmul.mubr.bf16.gmra.mxu0 %v1411
  %v1736 = vpop.f32.mrf.mxu0
  %v1737 = vadd.f32 0.0, %v1736
  %v1738 = vpop.f32.mrf.mxu0
  %v1739 = vpop.f32.mrf.mxu0
  %v1740 = vadd.f32 0.0, %v1739
  %v1741 = vpop.f32.mrf.mxu0
  %1742 = vmatprep.mubr.bf16.mxu0 0
  %1743 = vmatmul.mubr.bf16.gmra.mxu0 %v1414
  %v1744 = vpop.f32.mrf.mxu0
  %v1745 = vadd.f32 0.0, %v1744
  %v1746 = vpop.f32.mrf.mxu0
  %v1747 = vpop.f32.mrf.mxu0
  %v1748 = vadd.f32 0.0, %v1747
  %v1749 = vpop.f32.mrf.mxu0
  %1750 = vmatprep.mubr.bf16.mxu0 0
  %1751 = vmatmul.mubr.bf16.gmra.mxu0 %v1417
  %v1752 = vpop.f32.mrf.mxu0
  %v1753 = vadd.f32 0.0, %v1752
  %v1754 = vpop.f32.mrf.mxu0
  %v1755 = vpop.f32.mrf.mxu0
  %v1756 = vadd.f32 0.0, %v1755
  %v1757 = vpop.f32.mrf.mxu0
  %1758 = vmatprep.mubr.bf16.mxu0 0
  %1759 = vmatmul.mubr.bf16.gmra.mxu0 %v1420
  %v1760 = vpop.f32.mrf.mxu0
  %v1761 = vadd.f32 0.0, %v1760
  %v1762 = vpop.f32.mrf.mxu0
  %v1763 = vpop.f32.mrf.mxu0
  %v1764 = vadd.f32 0.0, %v1763
  %v1765 = vpop.f32.mrf.mxu0
  %1766 = vmatprep.mubr.bf16.mxu0 0
  %1767 = vmatmul.mubr.bf16.gmra.mxu0 %v1423
  %v1768 = vpop.f32.mrf.mxu0
  %v1769 = vadd.f32 0.0, %v1768
  %v1770 = vpop.f32.mrf.mxu0
  %v1771 = vpop.f32.mrf.mxu0
  %v1772 = vadd.f32 0.0, %v1771
  %v1773 = vpop.f32.mrf.mxu0
  %1774 = vmatprep.mubr.bf16.mxu0 0
  %1775 = vmatmul.mubr.bf16.gmra.mxu0 %v1426
  %v1776 = vpop.f32.mrf.mxu0
  %v1777 = vadd.f32 0.0, %v1776
  %v1778 = vpop.f32.mrf.mxu0
  %v1779 = vpop.f32.mrf.mxu0
  %v1780 = vadd.f32 0.0, %v1779
  %v1781 = vpop.f32.mrf.mxu0
  %1782 = vmatprep.mubr.bf16.mxu0 0
  %1783 = vmatmul.mubr.bf16.gmra.mxu0 %v1429
  %v1784 = vpop.f32.mrf.mxu0
  %v1785 = vadd.f32 0.0, %v1784
  %v1786 = vpop.f32.mrf.mxu0
  %v1787 = vpop.f32.mrf.mxu0
  %v1788 = vadd.f32 0.0, %v1787
  %v1789 = vpop.f32.mrf.mxu0
  %1790 = vmatprep.mubr.bf16.mxu0 0
  %1791 = vmatmul.mubr.bf16.gmra.mxu0 %v1432
  %v1792 = vpop.f32.mrf.mxu0
  %v1793 = vadd.f32 0.0, %v1792
  %v1794 = vpop.f32.mrf.mxu0
  %v1795 = vpop.f32.mrf.mxu0
  %v1796 = vpop.f32.mrf.mxu0
  %1797 = vdwg.mxu0
  %vm1798 = vcmask 31744
  %v1799 = vsel %vm1798, %v1473, 0.0
  %v1800 = vsel %vm1798, %v1476, 0.0
  %v1801 = vadd.f32 %v1799, %v1800
  %v1802 = vsel %vm1798, %v1481, 0.0
  %v1803 = vadd.f32 %v1801, %v1802
  %v1804 = vsel %vm1798, %v1484, 0.0
  %v1805 = vadd.f32 %v1803, %v1804
  %v1806 = vsel %vm1798, %v1489, 0.0
  %v1807 = vadd.f32 %v1805, %v1806
  %v1808 = vsel %vm1798, %v1492, 0.0
  %v1809 = vadd.f32 %v1807, %v1808
  %v1810 = vsel %vm1798, %v1497, 0.0
  %v1811 = vadd.f32 %v1809, %v1810
  %v1812 = vsel %vm1798, %v1500, 0.0
  %v1813 = vadd.f32 %v1811, %v1812
  %v1814 = vsel %vm1798, %v1505, 0.0
  %v1815 = vadd.f32 %v1813, %v1814
  %v1816 = vsel %vm1798, %v1508, 0.0
  %v1817 = vadd.f32 %v1815, %v1816
  %v1818 = vsel %vm1798, %v1513, 0.0
  %v1819 = vadd.f32 %v1817, %v1818
  %v1820 = vsel %vm1798, %v1516, 0.0
  %v1821 = vadd.f32 %v1819, %v1820
  %v1822 = vsel %vm1798, %v1521, 0.0
  %v1823 = vadd.f32 %v1821, %v1822
  %v1824 = vsel %vm1798, %v1524, 0.0
  %v1825 = vadd.f32 %v1823, %v1824
  %v1826 = vsel %vm1798, %v1529, 0.0
  %v1827 = vadd.f32 %v1825, %v1826
  %v1828 = vsel %vm1798, %v1532, 0.0
  %v1829 = vadd.f32 %v1827, %v1828
  %v1830 = vsel %vm1798, %v1537, 0.0
  %v1831 = vadd.f32 %v1829, %v1830
  %v1832 = vsel %vm1798, %v1540, 0.0
  %v1833 = vadd.f32 %v1831, %v1832
  %v1834 = vsel %vm1798, %v1545, 0.0
  %v1835 = vadd.f32 %v1833, %v1834
  %v1836 = vsel %vm1798, %v1548, 0.0
  %v1837 = vadd.f32 %v1835, %v1836
  %v1838 = vsel %vm1798, %v1553, 0.0
  %v1839 = vadd.f32 %v1837, %v1838
  %v1840 = vsel %vm1798, %v1556, 0.0
  %v1841 = vadd.f32 %v1839, %v1840
  %v1842 = vsel %vm1798, %v1561, 0.0
  %v1843 = vadd.f32 %v1841, %v1842
  %v1844 = vsel %vm1798, %v1564, 0.0
  %v1845 = vadd.f32 %v1843, %v1844
  %v1846 = vsel %vm1798, %v1569, 0.0
  %v1847 = vadd.f32 %v1845, %v1846
  %v1848 = vsel %vm1798, %v1572, 0.0
  %v1849 = vadd.f32 %v1847, %v1848
  %v1850 = vsel %vm1798, %v1577, 0.0
  %v1851 = vadd.f32 %v1849, %v1850
  %v1852 = vsel %vm1798, %v1580, 0.0
  %v1853 = vadd.f32 %v1851, %v1852
  %v1854 = vsel %vm1798, %v1585, 0.0
  %v1855 = vadd.f32 %v1853, %v1854
  %v1856 = vsel %vm1798, %v1588, 0.0
  %v1857 = vadd.f32 %v1855, %v1856
  %v1858 = vsel %vm1798, %v1593, 0.0
  %v1859 = vadd.f32 %v1857, %v1858
  %v1860 = vsel %vm1798, %v1596, 0.0
  %v1861 = vadd.f32 %v1859, %v1860
  %v1862 = vsel %vm1798, %v1601, 0.0
  %v1863 = vadd.f32 %v1861, %v1862
  %v1864 = vsel %vm1798, %v1604, 0.0
  %v1865 = vadd.f32 %v1863, %v1864
  %v1866 = vsel %vm1798, %v1609, 0.0
  %v1867 = vadd.f32 %v1865, %v1866
  %v1868 = vsel %vm1798, %v1612, 0.0
  %v1869 = vadd.f32 %v1867, %v1868
  %v1870 = vsel %vm1798, %v1617, 0.0
  %v1871 = vadd.f32 %v1869, %v1870
  %v1872 = vsel %vm1798, %v1620, 0.0
  %v1873 = vadd.f32 %v1871, %v1872
  %v1874 = vsel %vm1798, %v1625, 0.0
  %v1875 = vadd.f32 %v1873, %v1874
  %v1876 = vsel %vm1798, %v1628, 0.0
  %v1877 = vadd.f32 %v1875, %v1876
  %v1878 = vsel %vm1798, %v1633, 0.0
  %v1879 = vadd.f32 %v1877, %v1878
  %v1880 = vsel %vm1798, %v1636, 0.0
  %v1881 = vadd.f32 %v1879, %v1880
  %v1882 = vsel %vm1798, %v1641, 0.0
  %v1883 = vadd.f32 %v1881, %v1882
  %v1884 = vsel %vm1798, %v1644, 0.0
  %v1885 = vadd.f32 %v1883, %v1884
  %v1886 = vsel %vm1798, %v1649, 0.0
  %v1887 = vadd.f32 %v1885, %v1886
  %v1888 = vsel %vm1798, %v1652, 0.0
  %v1889 = vadd.f32 %v1887, %v1888
  %v1890 = vsel %vm1798, %v1657, 0.0
  %v1891 = vadd.f32 %v1889, %v1890
  %v1892 = vsel %vm1798, %v1660, 0.0
  %v1893 = vadd.f32 %v1891, %v1892
  %v1894 = vsel %vm1798, %v1665, 0.0
  %v1895 = vadd.f32 %v1893, %v1894
  %v1896 = vsel %vm1798, %v1668, 0.0
  %v1897 = vadd.f32 %v1895, %v1896
  %v1898 = vsel %vm1798, %v1673, 0.0
  %v1899 = vadd.f32 %v1897, %v1898
  %v1900 = vsel %vm1798, %v1676, 0.0
  %v1901 = vadd.f32 %v1899, %v1900
  %v1902 = vsel %vm1798, %v1681, 0.0
  %v1903 = vadd.f32 %v1901, %v1902
  %v1904 = vsel %vm1798, %v1684, 0.0
  %v1905 = vadd.f32 %v1903, %v1904
  %v1906 = vsel %vm1798, %v1689, 0.0
  %v1907 = vadd.f32 %v1905, %v1906
  %v1908 = vsel %vm1798, %v1692, 0.0
  %v1909 = vadd.f32 %v1907, %v1908
  %v1910 = vsel %vm1798, %v1697, 0.0
  %v1911 = vadd.f32 %v1909, %v1910
  %v1912 = vsel %vm1798, %v1700, 0.0
  %v1913 = vadd.f32 %v1911, %v1912
  %v1914 = vsel %vm1798, %v1705, 0.0
  %v1915 = vadd.f32 %v1913, %v1914
  %v1916 = vsel %vm1798, %v1708, 0.0
  %v1917 = vadd.f32 %v1915, %v1916
  %v1918 = vsel %vm1798, %v1713, 0.0
  %v1919 = vadd.f32 %v1917, %v1918
  %v1920 = vsel %vm1798, %v1716, 0.0
  %v1921 = vadd.f32 %v1919, %v1920
  %v1922 = vsel %vm1798, %v1721, 0.0
  %v1923 = vadd.f32 %v1921, %v1922
  %v1924 = vsel %vm1798, %v1724, 0.0
  %v1925 = vadd.f32 %v1923, %v1924
  %v1926 = vsel %vm1798, %v1729, 0.0
  %v1927 = vadd.f32 %v1925, %v1926
  %v1928 = vsel %vm1798, %v1732, 0.0
  %v1929 = vadd.f32 %v1927, %v1928
  %v1930 = vsel %vm1798, %v1737, 0.0
  %v1931 = vadd.f32 %v1929, %v1930
  %v1932 = vsel %vm1798, %v1740, 0.0
  %v1933 = vadd.f32 %v1931, %v1932
  %v1934 = vsel %vm1798, %v1745, 0.0
  %v1935 = vadd.f32 %v1933, %v1934
  %v1936 = vsel %vm1798, %v1748, 0.0
  %v1937 = vadd.f32 %v1935, %v1936
  %v1938 = vsel %vm1798, %v1753, 0.0
  %v1939 = vadd.f32 %v1937, %v1938
  %v1940 = vsel %vm1798, %v1756, 0.0
  %v1941 = vadd.f32 %v1939, %v1940
  %v1942 = vsel %vm1798, %v1761, 0.0
  %v1943 = vadd.f32 %v1941, %v1942
  %v1944 = vsel %vm1798, %v1764, 0.0
  %v1945 = vadd.f32 %v1943, %v1944
  %v1946 = vsel %vm1798, %v1769, 0.0
  %v1947 = vadd.f32 %v1945, %v1946
  %v1948 = vsel %vm1798, %v1772, 0.0
  %v1949 = vadd.f32 %v1947, %v1948
  %v1950 = vsel %vm1798, %v1777, 0.0
  %v1951 = vadd.f32 %v1949, %v1950
  %v1952 = vsel %vm1798, %v1780, 0.0
  %v1953 = vadd.f32 %v1951, %v1952
  %v1954 = vsel %vm1798, %v1785, 0.0
  %v1955 = vadd.f32 %v1953, %v1954
  %v1956 = vsel %vm1798, %v1788, 0.0
  %v1957 = vadd.f32 %v1955, %v1956
  %v1958 = vsel %vm1798, %v1793, 0.0
  %v1959 = vadd.f32 %v1957, %v1958
  %v1960 = vrot.slane %v1959, 4
  %v1961 = vadd.f32 %v1959, %v1960
  %v1962 = vrot.slane %v1961, 2
  %v1963 = vadd.f32 %v1961, %v1962
  %v1964 = vrot.slane %v1963, 1
  %v1965 = vadd.f32 %v1963, %v1964
  %v1966 = vmul.f32 %v1473, %v1473
  %v1967 = vmul.f32 %v1476, %v1476
  %v1968 = vmul.f32 %v1481, %v1481
  %v1969 = vmul.f32 %v1484, %v1484
  %v1970 = vmul.f32 %v1489, %v1489
  %v1971 = vmul.f32 %v1492, %v1492
  %v1972 = vmul.f32 %v1497, %v1497
  %v1973 = vmul.f32 %v1500, %v1500
  %v1974 = vmul.f32 %v1505, %v1505
  %v1975 = vmul.f32 %v1508, %v1508
  %v1976 = vmul.f32 %v1513, %v1513
  %v1977 = vmul.f32 %v1516, %v1516
  %v1978 = vmul.f32 %v1521, %v1521
  %v1979 = vmul.f32 %v1524, %v1524
  %v1980 = vmul.f32 %v1529, %v1529
  %v1981 = vmul.f32 %v1532, %v1532
  %v1982 = vmul.f32 %v1537, %v1537
  %v1983 = vmul.f32 %v1540, %v1540
  %v1984 = vmul.f32 %v1545, %v1545
  %v1985 = vmul.f32 %v1548, %v1548
  %v1986 = vmul.f32 %v1553, %v1553
  %v1987 = vmul.f32 %v1556, %v1556
  %v1988 = vmul.f32 %v1561, %v1561
  %v1989 = vmul.f32 %v1564, %v1564
  %v1990 = vmul.f32 %v1569, %v1569
  %v1991 = vmul.f32 %v1572, %v1572
  %v1992 = vmul.f32 %v1577, %v1577
  %v1993 = vmul.f32 %v1580, %v1580
  %v1994 = vmul.f32 %v1585, %v1585
  %v1995 = vmul.f32 %v1588, %v1588
  %v1996 = vmul.f32 %v1593, %v1593
  %v1997 = vmul.f32 %v1596, %v1596
  %v1998 = vmul.f32 %v1601, %v1601
  %v1999 = vmul.f32 %v1604, %v1604
  %v2000 = vmul.f32 %v1609, %v1609
  %v2001 = vmul.f32 %v1612, %v1612
  %v2002 = vmul.f32 %v1617, %v1617
  %v2003 = vmul.f32 %v1620, %v1620
  %v2004 = vmul.f32 %v1625, %v1625
  %v2005 = vmul.f32 %v1628, %v1628
  %v2006 = vmul.f32 %v1633, %v1633
  %v2007 = vmul.f32 %v1636, %v1636
  %v2008 = vmul.f32 %v1641, %v1641
  %v2009 = vmul.f32 %v1644, %v1644
  %v2010 = vmul.f32 %v1649, %v1649
  %v2011 = vmul.f32 %v1652, %v1652
  %v2012 = vmul.f32 %v1657, %v1657
  %v2013 = vmul.f32 %v1660, %v1660
  %v2014 = vmul.f32 %v1665, %v1665
  %v2015 = vmul.f32 %v1668, %v1668
  %v2016 = vmul.f32 %v1673, %v1673
  %v2017 = vmul.f32 %v1676, %v1676
  %v2018 = vmul.f32 %v1681, %v1681
  %v2019 = vmul.f32 %v1684, %v1684
  %v2020 = vmul.f32 %v1689, %v1689
  %v2021 = vmul.f32 %v1692, %v1692
  %v2022 = vmul.f32 %v1697, %v1697
  %v2023 = vmul.f32 %v1700, %v1700
  %v2024 = vmul.f32 %v1705, %v1705
  %v2025 = vmul.f32 %v1708, %v1708
  %v2026 = vmul.f32 %v1713, %v1713
  %v2027 = vmul.f32 %v1716, %v1716
  %v2028 = vmul.f32 %v1721, %v1721
  %v2029 = vmul.f32 %v1724, %v1724
  %v2030 = vmul.f32 %v1729, %v1729
  %v2031 = vmul.f32 %v1732, %v1732
  %v2032 = vmul.f32 %v1737, %v1737
  %v2033 = vmul.f32 %v1740, %v1740
  %v2034 = vmul.f32 %v1745, %v1745
  %v2035 = vmul.f32 %v1748, %v1748
  %v2036 = vmul.f32 %v1753, %v1753
  %v2037 = vmul.f32 %v1756, %v1756
  %v2038 = vmul.f32 %v1761, %v1761
  %v2039 = vmul.f32 %v1764, %v1764
  %v2040 = vmul.f32 %v1769, %v1769
  %v2041 = vmul.f32 %v1772, %v1772
  %v2042 = vmul.f32 %v1777, %v1777
  %v2043 = vmul.f32 %v1780, %v1780
  %v2044 = vmul.f32 %v1785, %v1785
  %v2045 = vmul.f32 %v1788, %v1788
  %v2046 = vmul.f32 %v1793, %v1793
  %v2047 = vsel %vm1798, %v1966, 0.0
  %v2048 = vsel %vm1798, %v1967, 0.0
  %v2049 = vadd.f32 %v2047, %v2048
  %v2050 = vsel %vm1798, %v1968, 0.0
  %v2051 = vadd.f32 %v2049, %v2050
  %v2052 = vsel %vm1798, %v1969, 0.0
  %v2053 = vadd.f32 %v2051, %v2052
  %v2054 = vsel %vm1798, %v1970, 0.0
  %v2055 = vadd.f32 %v2053, %v2054
  %v2056 = vsel %vm1798, %v1971, 0.0
  %v2057 = vadd.f32 %v2055, %v2056
  %v2058 = vsel %vm1798, %v1972, 0.0
  %v2059 = vadd.f32 %v2057, %v2058
  %v2060 = vsel %vm1798, %v1973, 0.0
  %v2061 = vadd.f32 %v2059, %v2060
  %v2062 = vsel %vm1798, %v1974, 0.0
  %v2063 = vadd.f32 %v2061, %v2062
  %v2064 = vsel %vm1798, %v1975, 0.0
  %v2065 = vadd.f32 %v2063, %v2064
  %v2066 = vsel %vm1798, %v1976, 0.0
  %v2067 = vadd.f32 %v2065, %v2066
  %v2068 = vsel %vm1798, %v1977, 0.0
  %v2069 = vadd.f32 %v2067, %v2068
  %v2070 = vsel %vm1798, %v1978, 0.0
  %v2071 = vadd.f32 %v2069, %v2070
  %v2072 = vsel %vm1798, %v1979, 0.0
  %v2073 = vadd.f32 %v2071, %v2072
  %v2074 = vsel %vm1798, %v1980, 0.0
  %v2075 = vadd.f32 %v2073, %v2074
  %v2076 = vsel %vm1798, %v1981, 0.0
  %v2077 = vadd.f32 %v2075, %v2076
  %v2078 = vsel %vm1798, %v1982, 0.0
  %v2079 = vadd.f32 %v2077, %v2078
  %v2080 = vsel %vm1798, %v1983, 0.0
  %v2081 = vadd.f32 %v2079, %v2080
  %v2082 = vsel %vm1798, %v1984, 0.0
  %v2083 = vadd.f32 %v2081, %v2082
  %v2084 = vsel %vm1798, %v1985, 0.0
  %v2085 = vadd.f32 %v2083, %v2084
  %v2086 = vsel %vm1798, %v1986, 0.0
  %v2087 = vadd.f32 %v2085, %v2086
  %v2088 = vsel %vm1798, %v1987, 0.0
  %v2089 = vadd.f32 %v2087, %v2088
  %v2090 = vsel %vm1798, %v1988, 0.0
  %v2091 = vadd.f32 %v2089, %v2090
  %v2092 = vsel %vm1798, %v1989, 0.0
  %v2093 = vadd.f32 %v2091, %v2092
  %v2094 = vsel %vm1798, %v1990, 0.0
  %v2095 = vadd.f32 %v2093, %v2094
  %v2096 = vsel %vm1798, %v1991, 0.0
  %v2097 = vadd.f32 %v2095, %v2096
  %v2098 = vsel %vm1798, %v1992, 0.0
  %v2099 = vadd.f32 %v2097, %v2098
  %v2100 = vsel %vm1798, %v1993, 0.0
  %v2101 = vadd.f32 %v2099, %v2100
  %v2102 = vsel %vm1798, %v1994, 0.0
  %v2103 = vadd.f32 %v2101, %v2102
  %v2104 = vsel %vm1798, %v1995, 0.0
  %v2105 = vadd.f32 %v2103, %v2104
  %v2106 = vsel %vm1798, %v1996, 0.0
  %v2107 = vadd.f32 %v2105, %v2106
  %v2108 = vsel %vm1798, %v1997, 0.0
  %v2109 = vadd.f32 %v2107, %v2108
  %v2110 = vsel %vm1798, %v1998, 0.0
  %v2111 = vadd.f32 %v2109, %v2110
  %v2112 = vsel %vm1798, %v1999, 0.0
  %v2113 = vadd.f32 %v2111, %v2112
  %v2114 = vsel %vm1798, %v2000, 0.0
  %v2115 = vadd.f32 %v2113, %v2114
  %v2116 = vsel %vm1798, %v2001, 0.0
  %v2117 = vadd.f32 %v2115, %v2116
  %v2118 = vsel %vm1798, %v2002, 0.0
  %v2119 = vadd.f32 %v2117, %v2118
  %v2120 = vsel %vm1798, %v2003, 0.0
  %v2121 = vadd.f32 %v2119, %v2120
  %v2122 = vsel %vm1798, %v2004, 0.0
  %v2123 = vadd.f32 %v2121, %v2122
  %v2124 = vsel %vm1798, %v2005, 0.0
  %v2125 = vadd.f32 %v2123, %v2124
  %v2126 = vsel %vm1798, %v2006, 0.0
  %v2127 = vadd.f32 %v2125, %v2126
  %v2128 = vsel %vm1798, %v2007, 0.0
  %v2129 = vadd.f32 %v2127, %v2128
  %v2130 = vsel %vm1798, %v2008, 0.0
  %v2131 = vadd.f32 %v2129, %v2130
  %v2132 = vsel %vm1798, %v2009, 0.0
  %v2133 = vadd.f32 %v2131, %v2132
  %v2134 = vsel %vm1798, %v2010, 0.0
  %v2135 = vadd.f32 %v2133, %v2134
  %v2136 = vsel %vm1798, %v2011, 0.0
  %v2137 = vadd.f32 %v2135, %v2136
  %v2138 = vsel %vm1798, %v2012, 0.0
  %v2139 = vadd.f32 %v2137, %v2138
  %v2140 = vsel %vm1798, %v2013, 0.0
  %v2141 = vadd.f32 %v2139, %v2140
  %v2142 = vsel %vm1798, %v2014, 0.0
  %v2143 = vadd.f32 %v2141, %v2142
  %v2144 = vsel %vm1798, %v2015, 0.0
  %v2145 = vadd.f32 %v2143, %v2144
  %v2146 = vsel %vm1798, %v2016, 0.0
  %v2147 = vadd.f32 %v2145, %v2146
  %v2148 = vsel %vm1798, %v2017, 0.0
  %v2149 = vadd.f32 %v2147, %v2148
  %v2150 = vsel %vm1798, %v2018, 0.0
  %v2151 = vadd.f32 %v2149, %v2150
  %v2152 = vsel %vm1798, %v2019, 0.0
  %v2153 = vadd.f32 %v2151, %v2152
  %v2154 = vsel %vm1798, %v2020, 0.0
  %v2155 = vadd.f32 %v2153, %v2154
  %v2156 = vsel %vm1798, %v2021, 0.0
  %v2157 = vadd.f32 %v2155, %v2156
  %v2158 = vsel %vm1798, %v2022, 0.0
  %v2159 = vadd.f32 %v2157, %v2158
  %v2160 = vsel %vm1798, %v2023, 0.0
  %v2161 = vadd.f32 %v2159, %v2160
  %v2162 = vsel %vm1798, %v2024, 0.0
  %v2163 = vadd.f32 %v2161, %v2162
  %v2164 = vsel %vm1798, %v2025, 0.0
  %v2165 = vadd.f32 %v2163, %v2164
  %v2166 = vsel %vm1798, %v2026, 0.0
  %v2167 = vadd.f32 %v2165, %v2166
  %v2168 = vsel %vm1798, %v2027, 0.0
  %v2169 = vadd.f32 %v2167, %v2168
  %v2170 = vsel %vm1798, %v2028, 0.0
  %v2171 = vadd.f32 %v2169, %v2170
  %v2172 = vsel %vm1798, %v2029, 0.0
  %v2173 = vadd.f32 %v2171, %v2172
  %v2174 = vsel %vm1798, %v2030, 0.0
  %v2175 = vadd.f32 %v2173, %v2174
  %v2176 = vsel %vm1798, %v2031, 0.0
  %v2177 = vadd.f32 %v2175, %v2176
  %v2178 = vsel %vm1798, %v2032, 0.0
  %v2179 = vadd.f32 %v2177, %v2178
  %v2180 = vsel %vm1798, %v2033, 0.0
  %v2181 = vadd.f32 %v2179, %v2180
  %v2182 = vsel %vm1798, %v2034, 0.0
  %v2183 = vadd.f32 %v2181, %v2182
  %v2184 = vsel %vm1798, %v2035, 0.0
  %v2185 = vadd.f32 %v2183, %v2184
  %v2186 = vsel %vm1798, %v2036, 0.0
  %v2187 = vadd.f32 %v2185, %v2186
  %v2188 = vsel %vm1798, %v2037, 0.0
  %v2189 = vadd.f32 %v2187, %v2188
  %v2190 = vsel %vm1798, %v2038, 0.0
  %v2191 = vadd.f32 %v2189, %v2190
  %v2192 = vsel %vm1798, %v2039, 0.0
  %v2193 = vadd.f32 %v2191, %v2192
  %v2194 = vsel %vm1798, %v2040, 0.0
  %v2195 = vadd.f32 %v2193, %v2194
  %v2196 = vsel %vm1798, %v2041, 0.0
  %v2197 = vadd.f32 %v2195, %v2196
  %v2198 = vsel %vm1798, %v2042, 0.0
  %v2199 = vadd.f32 %v2197, %v2198
  %v2200 = vsel %vm1798, %v2043, 0.0
  %v2201 = vadd.f32 %v2199, %v2200
  %v2202 = vsel %vm1798, %v2044, 0.0
  %v2203 = vadd.f32 %v2201, %v2202
  %v2204 = vsel %vm1798, %v2045, 0.0
  %v2205 = vadd.f32 %v2203, %v2204
  %v2206 = vsel %vm1798, %v2046, 0.0
  %v2207 = vadd.f32 %v2205, %v2206
  %v2208 = vrot.slane %v2207, 4
  %v2209 = vadd.f32 %v2207, %v2208
  %v2210 = vrot.slane %v2209, 2
  %v2211 = vadd.f32 %v2209, %v2210
  %v2212 = vrot.slane %v2211, 1
  %v2213 = vadd.f32 %v2211, %v2212
  %v2214 = vmul.f32 %v1965, 0.001953125
  %v2215 = vmul.f32 %v2213, 0.001953125
  %v2216 = vmul.f32 %v2214, %v2214
  %v2217 = vsub.f32 %v2215, %v2216
  %v2218 = vmax.f32 %v2217, 0.0
  %v2219 = vadd.f32 %v2218, 1e-05
  %v2220 = vrsqrt.pop %v2219
  %v2221 = vmul.f32 %v96, %v2220
  %v2222 = vmul.f32 %v2214, %v2221
  %v2224 = vrot.slane %v2222, 7
  %v2226 = vsub.f32 %v96, %v2224
  %v2227 = vlaneseq
  %v2228 = vshrl.u32 %v2227, 7
  %v2229 = vsub.s32 2, %v2228
  %v2230 = vrot.slane %v2221, %v2229
  %v2231 = vmul.f32 %v1473, %v2230
  %v2232 = vmul.f32 %v1476, %v2230
  %v2233 = vmul.f32 %v1481, %v2230
  %v2234 = vmul.f32 %v1484, %v2230
  %v2235 = vmul.f32 %v1489, %v2230
  %v2236 = vmul.f32 %v1492, %v2230
  %v2237 = vmul.f32 %v1497, %v2230
  %v2238 = vmul.f32 %v1500, %v2230
  %v2239 = vmul.f32 %v1505, %v2230
  %v2240 = vmul.f32 %v1508, %v2230
  %v2241 = vmul.f32 %v1513, %v2230
  %v2242 = vmul.f32 %v1516, %v2230
  %v2243 = vmul.f32 %v1521, %v2230
  %v2244 = vmul.f32 %v1524, %v2230
  %v2245 = vmul.f32 %v1529, %v2230
  %v2246 = vmul.f32 %v1532, %v2230
  %v2247 = vmul.f32 %v1537, %v2230
  %v2248 = vmul.f32 %v1540, %v2230
  %v2249 = vmul.f32 %v1545, %v2230
  %v2250 = vmul.f32 %v1548, %v2230
  %v2251 = vmul.f32 %v1553, %v2230
  %v2252 = vmul.f32 %v1556, %v2230
  %v2253 = vmul.f32 %v1561, %v2230
  %v2254 = vmul.f32 %v1564, %v2230
  %v2255 = vmul.f32 %v1569, %v2230
  %v2256 = vmul.f32 %v1572, %v2230
  %v2257 = vmul.f32 %v1577, %v2230
  %v2258 = vmul.f32 %v1580, %v2230
  %v2259 = vmul.f32 %v1585, %v2230
  %v2260 = vmul.f32 %v1588, %v2230
  %v2261 = vmul.f32 %v1593, %v2230
  %v2262 = vmul.f32 %v1596, %v2230
  %v2263 = vmul.f32 %v1601, %v2230
  %v2264 = vmul.f32 %v1604, %v2230
  %v2265 = vmul.f32 %v1609, %v2230
  %v2266 = vmul.f32 %v1612, %v2230
  %v2267 = vmul.f32 %v1617, %v2230
  %v2268 = vmul.f32 %v1620, %v2230
  %v2269 = vmul.f32 %v1625, %v2230
  %v2270 = vmul.f32 %v1628, %v2230
  %v2271 = vmul.f32 %v1633, %v2230
  %v2272 = vmul.f32 %v1636, %v2230
  %v2273 = vmul.f32 %v1641, %v2230
  %v2274 = vmul.f32 %v1644, %v2230
  %v2275 = vmul.f32 %v1649, %v2230
  %v2276 = vmul.f32 %v1652, %v2230
  %v2277 = vmul.f32 %v1657, %v2230
  %v2278 = vmul.f32 %v1660, %v2230
  %v2279 = vmul.f32 %v1665, %v2230
  %v2280 = vmul.f32 %v1668, %v2230
  %v2281 = vmul.f32 %v1673, %v2230
  %v2282 = vmul.f32 %v1676, %v2230
  %v2283 = vmul.f32 %v1681, %v2230
  %v2284 = vmul.f32 %v1684, %v2230
  %v2285 = vmul.f32 %v1689, %v2230
  %v2286 = vmul.f32 %v1692, %v2230
  %v2287 = vmul.f32 %v1697, %v2230
  %v2288 = vmul.f32 %v1700, %v2230
  %v2289 = vmul.f32 %v1705, %v2230
  %v2290 = vmul.f32 %v1708, %v2230
  %v2291 = vmul.f32 %v1713, %v2230
  %v2292 = vmul.f32 %v1716, %v2230
  %v2293 = vmul.f32 %v1721, %v2230
  %v2294 = vmul.f32 %v1724, %v2230
  %v2295 = vmul.f32 %v1729, %v2230
  %v2296 = vmul.f32 %v1732, %v2230
  %v2297 = vmul.f32 %v1737, %v2230
  %v2298 = vmul.f32 %v1740, %v2230
  %v2299 = vmul.f32 %v1745, %v2230
  %v2300 = vmul.f32 %v1748, %v2230
  %v2301 = vmul.f32 %v1753, %v2230
  %v2302 = vmul.f32 %v1756, %v2230
  %v2303 = vmul.f32 %v1761, %v2230
  %v2304 = vmul.f32 %v1764, %v2230
  %v2305 = vmul.f32 %v1769, %v2230
  %v2306 = vmul.f32 %v1772, %v2230
  %v2307 = vmul.f32 %v1777, %v2230
  %v2308 = vmul.f32 %v1780, %v2230
  %v2309 = vmul.f32 %v1785, %v2230
  %v2310 = vmul.f32 %v1788, %v2230
  %v2311 = vlaneseq
  %v2312 = vshrl.u32 %v2311, 7
  %v2313 = vsub.s32 3, %v2312
  %v2314 = vrot.slane %v2226, %v2313
  %v2315 = vadd.f32 %v2231, %v2314
  %v2316 = vadd.f32 %v2232, %v2314
  %v2317 = vadd.f32 %v2233, %v2314
  %v2318 = vadd.f32 %v2234, %v2314
  %v2319 = vadd.f32 %v2235, %v2314
  %v2320 = vadd.f32 %v2236, %v2314
  %v2321 = vadd.f32 %v2237, %v2314
  %v2322 = vadd.f32 %v2238, %v2314
  %v2323 = vadd.f32 %v2239, %v2314
  %v2324 = vadd.f32 %v2240, %v2314
  %v2325 = vadd.f32 %v2241, %v2314
  %v2326 = vadd.f32 %v2242, %v2314
  %v2327 = vadd.f32 %v2243, %v2314
  %v2328 = vadd.f32 %v2244, %v2314
  %v2329 = vadd.f32 %v2245, %v2314
  %v2330 = vadd.f32 %v2246, %v2314
  %v2331 = vadd.f32 %v2247, %v2314
  %v2332 = vadd.f32 %v2248, %v2314
  %v2333 = vadd.f32 %v2249, %v2314
  %v2334 = vadd.f32 %v2250, %v2314
  %v2335 = vadd.f32 %v2251, %v2314
  %v2336 = vadd.f32 %v2252, %v2314
  %v2337 = vadd.f32 %v2253, %v2314
  %v2338 = vadd.f32 %v2254, %v2314
  %v2339 = vadd.f32 %v2255, %v2314
  %v2340 = vadd.f32 %v2256, %v2314
  %v2341 = vadd.f32 %v2257, %v2314
  %v2342 = vadd.f32 %v2258, %v2314
  %v2343 = vadd.f32 %v2259, %v2314
  %v2344 = vadd.f32 %v2260, %v2314
  %v2345 = vadd.f32 %v2261, %v2314
  %v2346 = vadd.f32 %v2262, %v2314
  %v2347 = vadd.f32 %v2263, %v2314
  %v2348 = vadd.f32 %v2264, %v2314
  %v2349 = vadd.f32 %v2265, %v2314
  %v2350 = vadd.f32 %v2266, %v2314
  %v2351 = vadd.f32 %v2267, %v2314
  %v2352 = vadd.f32 %v2268, %v2314
  %v2353 = vadd.f32 %v2269, %v2314
  %v2354 = vadd.f32 %v2270, %v2314
  %v2355 = vadd.f32 %v2271, %v2314
  %v2356 = vadd.f32 %v2272, %v2314
  %v2357 = vadd.f32 %v2273, %v2314
  %v2358 = vadd.f32 %v2274, %v2314
  %v2359 = vadd.f32 %v2275, %v2314
  %v2360 = vadd.f32 %v2276, %v2314
  %v2361 = vadd.f32 %v2277, %v2314
  %v2362 = vadd.f32 %v2278, %v2314
  %v2363 = vadd.f32 %v2279, %v2314
  %v2364 = vadd.f32 %v2280, %v2314
  %v2365 = vadd.f32 %v2281, %v2314
  %v2366 = vadd.f32 %v2282, %v2314
  %v2367 = vadd.f32 %v2283, %v2314
  %v2368 = vadd.f32 %v2284, %v2314
  %v2369 = vadd.f32 %v2285, %v2314
  %v2370 = vadd.f32 %v2286, %v2314
  %v2371 = vadd.f32 %v2287, %v2314
  %v2372 = vadd.f32 %v2288, %v2314
  %v2373 = vadd.f32 %v2289, %v2314
  %v2374 = vadd.f32 %v2290, %v2314
  %v2375 = vadd.f32 %v2291, %v2314
  %v2376 = vadd.f32 %v2292, %v2314
  %v2377 = vadd.f32 %v2293, %v2314
  %v2378 = vadd.f32 %v2294, %v2314
  %v2379 = vadd.f32 %v2295, %v2314
  %v2380 = vadd.f32 %v2296, %v2314
  %v2381 = vadd.f32 %v2297, %v2314
  %v2382 = vadd.f32 %v2298, %v2314
  %v2383 = vadd.f32 %v2299, %v2314
  %v2384 = vadd.f32 %v2300, %v2314
  %v2385 = vadd.f32 %v2301, %v2314
  %v2386 = vadd.f32 %v2302, %v2314
  %v2387 = vadd.f32 %v2303, %v2314
  %v2388 = vadd.f32 %v2304, %v2314
  %v2389 = vadd.f32 %v2305, %v2314
  %v2390 = vadd.f32 %v2306, %v2314
  %v2391 = vadd.f32 %v2307, %v2314
  %v2392 = vadd.f32 %v2308, %v2314
  %v2393 = vadd.f32 %v2309, %v2314
  %v2394 = vadd.f32 %v2310, %v2314
  %v2395 = vmax.f32 %v2315, 0.0
  %v2396 = vmax.f32 %v2316, 0.0
  %v2397 = vmax.f32 %v2317, 0.0
  %v2398 = vmax.f32 %v2318, 0.0
  %v2399 = vmax.f32 %v2319, 0.0
  %v2400 = vmax.f32 %v2320, 0.0
  %v2401 = vmax.f32 %v2321, 0.0
  %v2402 = vmax.f32 %v2322, 0.0
  %v2403 = vmax.f32 %v2323, 0.0
  %v2404 = vmax.f32 %v2324, 0.0
  %v2405 = vmax.f32 %v2325, 0.0
  %v2406 = vmax.f32 %v2326, 0.0
  %v2407 = vmax.f32 %v2327, 0.0
  %v2408 = vmax.f32 %v2328, 0.0
  %v2409 = vmax.f32 %v2329, 0.0
  %v2410 = vmax.f32 %v2330, 0.0
  %v2411 = vmax.f32 %v2331, 0.0
  %v2412 = vmax.f32 %v2332, 0.0
  %v2413 = vmax.f32 %v2333, 0.0
  %v2414 = vmax.f32 %v2334, 0.0
  %v2415 = vmax.f32 %v2335, 0.0
  %v2416 = vmax.f32 %v2336, 0.0
  %v2417 = vmax.f32 %v2337, 0.0
  %v2418 = vmax.f32 %v2338, 0.0
  %v2419 = vmax.f32 %v2339, 0.0
  %v2420 = vmax.f32 %v2340, 0.0
  %v2421 = vmax.f32 %v2341, 0.0
  %v2422 = vmax.f32 %v2342, 0.0
  %v2423 = vmax.f32 %v2343, 0.0
  %v2424 = vmax.f32 %v2344, 0.0
  %v2425 = vmax.f32 %v2345, 0.0
  %v2426 = vmax.f32 %v2346, 0.0
  %v2427 = vmax.f32 %v2347, 0.0
  %v2428 = vmax.f32 %v2348, 0.0
  %v2429 = vmax.f32 %v2349, 0.0
  %v2430 = vmax.f32 %v2350, 0.0
  %v2431 = vmax.f32 %v2351, 0.0
  %v2432 = vmax.f32 %v2352, 0.0
  %v2433 = vmax.f32 %v2353, 0.0
  %v2434 = vmax.f32 %v2354, 0.0
  %v2435 = vmax.f32 %v2355, 0.0
  %v2436 = vmax.f32 %v2356, 0.0
  %v2437 = vmax.f32 %v2357, 0.0
  %v2438 = vmax.f32 %v2358, 0.0
  %v2439 = vmax.f32 %v2359, 0.0
  %v2440 = vmax.f32 %v2360, 0.0
  %v2441 = vmax.f32 %v2361, 0.0
  %v2442 = vmax.f32 %v2362, 0.0
  %v2443 = vmax.f32 %v2363, 0.0
  %v2444 = vmax.f32 %v2364, 0.0
  %v2445 = vmax.f32 %v2365, 0.0
  %v2446 = vmax.f32 %v2366, 0.0
  %v2447 = vmax.f32 %v2367, 0.0
  %v2448 = vmax.f32 %v2368, 0.0
  %v2449 = vmax.f32 %v2369, 0.0
  %v2450 = vmax.f32 %v2370, 0.0
  %v2451 = vmax.f32 %v2371, 0.0
  %v2452 = vmax.f32 %v2372, 0.0
  %v2453 = vmax.f32 %v2373, 0.0
  %v2454 = vmax.f32 %v2374, 0.0
  %v2455 = vmax.f32 %v2375, 0.0
  %v2456 = vmax.f32 %v2376, 0.0
  %v2457 = vmax.f32 %v2377, 0.0
  %v2458 = vmax.f32 %v2378, 0.0
  %v2459 = vmax.f32 %v2379, 0.0
  %v2460 = vmax.f32 %v2380, 0.0
  %v2461 = vmax.f32 %v2381, 0.0
  %v2462 = vmax.f32 %v2382, 0.0
  %v2463 = vmax.f32 %v2383, 0.0
  %v2464 = vmax.f32 %v2384, 0.0
  %v2465 = vmax.f32 %v2385, 0.0
  %v2466 = vmax.f32 %v2386, 0.0
  %v2467 = vmax.f32 %v2387, 0.0
  %v2468 = vmax.f32 %v2388, 0.0
  %v2469 = vmax.f32 %v2389, 0.0
  %v2470 = vmax.f32 %v2390, 0.0
  %v2471 = vmax.f32 %v2391, 0.0
  %v2472 = vmax.f32 %v2392, 0.0
  %v2473 = vmax.f32 %v2393, 0.0
  %v2474 = vmax.f32 %v2394, 0.0
  %v2475 = vmul.f32 %v2395, %v787
  %v2476 = vmul.f32 %v2396, %v792
  %v2477 = vmul.f32 %v2397, %v797
  %v2478 = vmul.f32 %v2398, %v802
  %v2479 = vmul.f32 %v2399, %v807
  %v2480 = vmul.f32 %v2400, %v812
  %v2481 = vmul.f32 %v2401, %v817
  %v2482 = vmul.f32 %v2402, %v822
  %v2483 = vmul.f32 %v2403, %v827
  %v2484 = vmul.f32 %v2404, %v832
  %v2485 = vmul.f32 %v2405, %v837
  %v2486 = vmul.f32 %v2406, %v842
  %v2487 = vmul.f32 %v2407, %v847
  %v2488 = vmul.f32 %v2408, %v852
  %v2489 = vmul.f32 %v2409, %v857
  %v2490 = vmul.f32 %v2410, %v862
  %v2491 = vmul.f32 %v2411, %v867
  %v2492 = vmul.f32 %v2412, %v872
  %v2493 = vmul.f32 %v2413, %v877
  %v2494 = vmul.f32 %v2414, %v882
  %v2495 = vmul.f32 %v2415, %v887
  %v2496 = vmul.f32 %v2416, %v892
  %v2497 = vmul.f32 %v2417, %v897
  %v2498 = vmul.f32 %v2418, %v902
  %v2499 = vmul.f32 %v2419, %v907
  %v2500 = vmul.f32 %v2420, %v912
  %v2501 = vmul.f32 %v2421, %v917
  %v2502 = vmul.f32 %v2422, %v922
  %v2503 = vmul.f32 %v2423, %v927
  %v2504 = vmul.f32 %v2424, %v932
  %v2505 = vmul.f32 %v2425, %v937
  %v2506 = vmul.f32 %v2426, %v942
  %v2507 = vmul.f32 %v2427, %v947
  %v2508 = vmul.f32 %v2428, %v952
  %v2509 = vmul.f32 %v2429, %v957
  %v2510 = vmul.f32 %v2430, %v962
  %v2511 = vmul.f32 %v2431, %v967
  %v2512 = vmul.f32 %v2432, %v972
  %v2513 = vmul.f32 %v2433, %v977
  %v2514 = vmul.f32 %v2434, %v982
  %v2515 = vmul.f32 %v2435, %v987
  %v2516 = vmul.f32 %v2436, %v992
  %v2517 = vmul.f32 %v2437, %v997
  %v2518 = vmul.f32 %v2438, %v1002
  %v2519 = vmul.f32 %v2439, %v1007
  %v2520 = vmul.f32 %v2440, %v1012
  %v2521 = vmul.f32 %v2441, %v1017
  %v2522 = vmul.f32 %v2442, %v1022
  %v2523 = vmul.f32 %v2443, %v1027
  %v2524 = vmul.f32 %v2444, %v1032
  %v2525 = vmul.f32 %v2445, %v1037
  %v2526 = vmul.f32 %v2446, %v1042
  %v2527 = vmul.f32 %v2447, %v1047
  %v2528 = vmul.f32 %v2448, %v1052
  %v2529 = vmul.f32 %v2449, %v1057
  %v2530 = vmul.f32 %v2450, %v1062
  %v2531 = vmul.f32 %v2451, %v1067
  %v2532 = vmul.f32 %v2452, %v1072
  %v2533 = vmul.f32 %v2453, %v1077
  %v2534 = vmul.f32 %v2454, %v1082
  %v2535 = vmul.f32 %v2455, %v1087
  %v2536 = vmul.f32 %v2456, %v1092
  %v2537 = vmul.f32 %v2457, %v1097
  %v2538 = vmul.f32 %v2458, %v1102
  %v2539 = vmul.f32 %v2459, %v1107
  %v2540 = vmul.f32 %v2460, %v1112
  %v2541 = vmul.f32 %v2461, %v1117
  %v2542 = vmul.f32 %v2462, %v1122
  %v2543 = vmul.f32 %v2463, %v1127
  %v2544 = vmul.f32 %v2464, %v1132
  %v2545 = vmul.f32 %v2465, %v1137
  %v2546 = vmul.f32 %v2466, %v1142
  %v2547 = vmul.f32 %v2467, %v1147
  %v2548 = vmul.f32 %v2468, %v1152
  %v2549 = vmul.f32 %v2469, %v1157
  %v2550 = vmul.f32 %v2470, %v1162
  %v2551 = vmul.f32 %v2471, %v1167
  %v2552 = vmul.f32 %v2472, %v1172
  %v2553 = vmul.f32 %v2473, %v1177
  %v2554 = vmul.f32 %v2474, %v1182
  %v2555 = vpack.c.bf16 %v2476, %v2475
  %v2556 = vpack.c.bf16 %v2478, %v2477
  %v2557 = vpack.c.bf16 %v2480, %v2479
  %v2558 = vpack.c.bf16 %v2482, %v2481
  %v2559 = vpack.c.bf16 %v2484, %v2483
  %v2560 = vpack.c.bf16 %v2486, %v2485
  %v2561 = vpack.c.bf16 %v2488, %v2487
  %v2562 = vpack.c.bf16 %v2490, %v2489
  %v2563 = vpack.c.bf16 %v2492, %v2491
  %v2564 = vpack.c.bf16 %v2494, %v2493
  %v2565 = vpack.c.bf16 %v2496, %v2495
  %v2566 = vpack.c.bf16 %v2498, %v2497
  %v2567 = vpack.c.bf16 %v2500, %v2499
  %v2568 = vpack.c.bf16 %v2502, %v2501
  %v2569 = vpack.c.bf16 %v2504, %v2503
  %v2570 = vpack.c.bf16 %v2506, %v2505
  %v2571 = vpack.c.bf16 %v2508, %v2507
  %v2572 = vpack.c.bf16 %v2510, %v2509
  %v2573 = vpack.c.bf16 %v2512, %v2511
  %v2574 = vpack.c.bf16 %v2514, %v2513
  %v2575 = vpack.c.bf16 %v2516, %v2515
  %v2576 = vpack.c.bf16 %v2518, %v2517
  %v2577 = vpack.c.bf16 %v2520, %v2519
  %v2578 = vpack.c.bf16 %v2522, %v2521
  %v2579 = vpack.c.bf16 %v2524, %v2523
  %v2580 = vpack.c.bf16 %v2526, %v2525
  %v2581 = vpack.c.bf16 %v2528, %v2527
  %v2582 = vpack.c.bf16 %v2530, %v2529
  %v2583 = vpack.c.bf16 %v2532, %v2531
  %v2584 = vpack.c.bf16 %v2534, %v2533
  %v2585 = vpack.c.bf16 %v2536, %v2535
  %v2586 = vpack.c.bf16 %v2538, %v2537
  %v2587 = vpack.c.bf16 %v2540, %v2539
  %v2588 = vpack.c.bf16 %v2542, %v2541
  %v2589 = vpack.c.bf16 %v2544, %v2543
  %v2590 = vpack.c.bf16 %v2546, %v2545
  %v2591 = vpack.c.bf16 %v2548, %v2547
  %v2592 = vpack.c.bf16 %v2550, %v2549
  %v2593 = vpack.c.bf16 %v2552, %v2551
  %v2594 = vpack.c.bf16 %v2554, %v2553
  %vm2605 = vcmask 1046528
  %v2606 = vrot.slane %v2565, 1
  %v2607 = vrot.slane %v2566, 1
  %v2608 = vsel %vm2605, %v2606, %v2607
  %v2609 = vrot.slane %v2567, 1
  %v2610 = vsel %vm2605, %v2607, %v2609
  %v2611 = vrot.slane %v2568, 1
  %v2612 = vsel %vm2605, %v2609, %v2611
  %v2613 = vrot.slane %v2569, 1
  %v2614 = vsel %vm2605, %v2611, %v2613
  %v2615 = vrot.slane %v2570, 1
  %v2616 = vsel %vm2605, %v2613, %v2615
  %v2617 = vrot.slane %v2571, 1
  %v2618 = vsel %vm2605, %v2615, %v2617
  %v2619 = vrot.slane %v2572, 1
  %v2620 = vsel %vm2605, %v2617, %v2619
  %v2621 = vrot.slane %v2573, 1
  %v2622 = vsel %vm2605, %v2619, %v2621
  %v2623 = vrot.slane %v2574, 1
  %v2624 = vsel %vm2605, %v2621, %v2623
  %2625 = vrot.lane.b32.xlu0 %v2608, 4
  %v2626 = vpop.permute.xlu0 %2625
  %2627 = vrot.lane.b32.xlu0 %v2610, 4
  %v2628 = vpop.permute.xlu0 %2627
  %2629 = vrot.lane.b32.xlu0 %v2612, 4
  %v2630 = vpop.permute.xlu0 %2629
  %2631 = vrot.lane.b32.xlu0 %v2614, 4
  %v2632 = vpop.permute.xlu0 %2631
  %2633 = vrot.lane.b32.xlu0 %v2616, 4
  %v2634 = vpop.permute.xlu0 %2633
  %2635 = vrot.lane.b32.xlu0 %v2618, 4
  %v2636 = vpop.permute.xlu0 %2635
  %2637 = vrot.lane.b32.xlu0 %v2620, 4
  %v2638 = vpop.permute.xlu0 %2637
  %2639 = vrot.lane.b32.xlu0 %v2622, 4
  %v2640 = vpop.permute.xlu0 %2639
  %2641 = vrot.lane.b32.xlu0 %v2624, 4
  %v2642 = vpop.permute.xlu0 %2641
  %2643 = vrot.lane.b32.xlu0 %v2623, 4
  %v2644 = vpop.permute.xlu0 %2643
  %vm2645 = vsmask.f32 7424
  %v2647 = vshrl.u32 %v2555, 16
  %v2649 = vshll.u32 %v2555, 16
  %v2651 = vrot.slane %v2649, 1
  %v2652 = vor.u32 %v2647, %v2651
  %v2654 = vshll.u32 %v2556, 16
  %v2656 = vrot.slane %v2654, 1
  %v2657 = vsel %vm2645, %v2652, %v2656
  %v2658 = vshrl.u32 %v2556, 16
  %v2660 = vor.u32 %v2658, %v2656
  %v2662 = vshll.u32 %v2557, 16
  %v2664 = vrot.slane %v2662, 1
  %v2665 = vsel %vm2645, %v2660, %v2664
  %v2666 = vshrl.u32 %v2557, 16
  %v2668 = vor.u32 %v2666, %v2664
  %v2670 = vshll.u32 %v2558, 16
  %v2672 = vrot.slane %v2670, 1
  %v2673 = vsel %vm2645, %v2668, %v2672
  %v2674 = vshrl.u32 %v2558, 16
  %v2676 = vor.u32 %v2674, %v2672
  %v2678 = vshll.u32 %v2559, 16
  %v2680 = vrot.slane %v2678, 1
  %v2681 = vsel %vm2645, %v2676, %v2680
  %v2682 = vshrl.u32 %v2559, 16
  %v2684 = vor.u32 %v2682, %v2680
  %v2686 = vshll.u32 %v2560, 16
  %v2688 = vrot.slane %v2686, 1
  %v2689 = vsel %vm2645, %v2684, %v2688
  %v2690 = vshrl.u32 %v2560, 16
  %v2692 = vor.u32 %v2690, %v2688
  %v2694 = vshll.u32 %v2561, 16
  %v2696 = vrot.slane %v2694, 1
  %v2697 = vsel %vm2645, %v2692, %v2696
  %v2698 = vshrl.u32 %v2561, 16
  %v2700 = vor.u32 %v2698, %v2696
  %v2702 = vshll.u32 %v2562, 16
  %v2704 = vrot.slane %v2702, 1
  %v2705 = vsel %vm2645, %v2700, %v2704
  %v2706 = vshrl.u32 %v2562, 16
  %v2708 = vor.u32 %v2706, %v2704
  %v2710 = vshll.u32 %v2563, 16
  %v2712 = vrot.slane %v2710, 1
  %v2713 = vsel %vm2645, %v2708, %v2712
  %v2714 = vshrl.u32 %v2563, 16
  %v2716 = vor.u32 %v2714, %v2712
  %v2718 = vshll.u32 %v2564, 16
  %v2720 = vrot.slane %v2718, 1
  %v2721 = vsel %vm2645, %v2716, %v2720
  %v2722 = vshrl.u32 %v2564, 16
  %v2724 = vor.u32 %v2722, %v2720
  %2725 = vrot.lane.b32.xlu0 %v2657, 8
  %v2726 = vpop.permute.xlu0 %2725
  %2727 = vrot.lane.b32.xlu0 %v2665, 8
  %v2728 = vpop.permute.xlu0 %2727
  %2729 = vrot.lane.b32.xlu0 %v2673, 8
  %v2730 = vpop.permute.xlu0 %2729
  %2731 = vrot.lane.b32.xlu0 %v2681, 8
  %v2732 = vpop.permute.xlu0 %2731
  %2733 = vrot.lane.b32.xlu0 %v2689, 8
  %v2734 = vpop.permute.xlu0 %2733
  %2735 = vrot.lane.b32.xlu0 %v2697, 8
  %v2736 = vpop.permute.xlu0 %2735
  %2737 = vrot.lane.b32.xlu0 %v2705, 8
  %v2738 = vpop.permute.xlu0 %2737
  %2739 = vrot.lane.b32.xlu0 %v2713, 8
  %v2740 = vpop.permute.xlu0 %2739
  %2741 = vrot.lane.b32.xlu0 %v2721, 8
  %v2742 = vpop.permute.xlu0 %2741
  %2743 = vrot.lane.b32.xlu0 %v2724, 8
  %v2744 = vpop.permute.xlu0 %2743
  %vm2755 = vcmask 1045504
  %v2756 = vrot.slane %v2575, 2
  %v2757 = vrot.slane %v2576, 2
  %v2758 = vsel %vm2755, %v2756, %v2757
  %v2759 = vrot.slane %v2577, 2
  %v2760 = vsel %vm2755, %v2757, %v2759
  %v2761 = vrot.slane %v2578, 2
  %v2762 = vsel %vm2755, %v2759, %v2761
  %v2763 = vrot.slane %v2579, 2
  %v2764 = vsel %vm2755, %v2761, %v2763
  %v2765 = vrot.slane %v2580, 2
  %v2766 = vsel %vm2755, %v2763, %v2765
  %v2767 = vrot.slane %v2581, 2
  %v2768 = vsel %vm2755, %v2765, %v2767
  %v2769 = vrot.slane %v2582, 2
  %v2770 = vsel %vm2755, %v2767, %v2769
  %v2771 = vrot.slane %v2583, 2
  %v2772 = vsel %vm2755, %v2769, %v2771
  %v2773 = vrot.slane %v2584, 2
  %v2774 = vsel %vm2755, %v2771, %v2773
  %2775 = vrot.lane.b32.xlu0 %v2758, 12
  %v2776 = vpop.permute.xlu0 %2775
  %2777 = vrot.lane.b32.xlu0 %v2760, 12
  %v2778 = vpop.permute.xlu0 %2777
  %2779 = vrot.lane.b32.xlu0 %v2762, 12
  %v2780 = vpop.permute.xlu0 %2779
  %2781 = vrot.lane.b32.xlu0 %v2764, 12
  %v2782 = vpop.permute.xlu0 %2781
  %2783 = vrot.lane.b32.xlu0 %v2766, 12
  %v2784 = vpop.permute.xlu0 %2783
  %2785 = vrot.lane.b32.xlu0 %v2768, 12
  %v2786 = vpop.permute.xlu0 %2785
  %2787 = vrot.lane.b32.xlu0 %v2770, 12
  %v2788 = vpop.permute.xlu0 %2787
  %2789 = vrot.lane.b32.xlu0 %v2772, 12
  %v2790 = vpop.permute.xlu0 %2789
  %2791 = vrot.lane.b32.xlu0 %v2774, 12
  %v2792 = vpop.permute.xlu0 %2791
  %2793 = vrot.lane.b32.xlu0 %v2773, 12
  %v2794 = vpop.permute.xlu0 %2793
  %vm2805 = vcmask 1044480
  %v2806 = vrot.slane %v2585, 3
  %v2807 = vrot.slane %v2586, 3
  %v2808 = vsel %vm2805, %v2806, %v2807
  %v2809 = vrot.slane %v2587, 3
  %v2810 = vsel %vm2805, %v2807, %v2809
  %v2811 = vrot.slane %v2588, 3
  %v2812 = vsel %vm2805, %v2809, %v2811
  %v2813 = vrot.slane %v2589, 3
  %v2814 = vsel %vm2805, %v2811, %v2813
  %v2815 = vrot.slane %v2590, 3
  %v2816 = vsel %vm2805, %v2813, %v2815
  %v2817 = vrot.slane %v2591, 3
  %v2818 = vsel %vm2805, %v2815, %v2817
  %v2819 = vrot.slane %v2592, 3
  %v2820 = vsel %vm2805, %v2817, %v2819
  %v2821 = vrot.slane %v2593, 3
  %v2822 = vsel %vm2805, %v2819, %v2821
  %v2823 = vrot.slane %v2594, 3
  %v2824 = vsel %vm2805, %v2821, %v2823
  %2825 = vrot.lane.b32.xlu0 %v2808, 16
  %v2826 = vpop.permute.xlu0 %2825
  %2827 = vrot.lane.b32.xlu0 %v2810, 16
  %v2828 = vpop.permute.xlu0 %2827
  %2829 = vrot.lane.b32.xlu0 %v2812, 16
  %v2830 = vpop.permute.xlu0 %2829
  %2831 = vrot.lane.b32.xlu0 %v2814, 16
  %v2832 = vpop.permute.xlu0 %2831
  %2833 = vrot.lane.b32.xlu0 %v2816, 16
  %v2834 = vpop.permute.xlu0 %2833
  %2835 = vrot.lane.b32.xlu0 %v2818, 16
  %v2836 = vpop.permute.xlu0 %2835
  %2837 = vrot.lane.b32.xlu0 %v2820, 16
  %v2838 = vpop.permute.xlu0 %2837
  %2839 = vrot.lane.b32.xlu0 %v2822, 16
  %v2840 = vpop.permute.xlu0 %2839
  %2841 = vrot.lane.b32.xlu0 %v2824, 16
  %v2842 = vpop.permute.xlu0 %2841
  %2843 = vrot.lane.b32.xlu0 %v2823, 16
  %v2844 = vpop.permute.xlu0 %2843
  %vm2845 = vsmask.f32 5376
  %v2847 = vshrl.u32 %v2575, 16
  %v2849 = vrot.slane %v2847, 2
  %v2850 = vshll.u32 %v2575, 16
  %v2852 = vrot.slane %v2850, 3
  %v2853 = vor.u32 %v2849, %v2852
  %v2855 = vshrl.u32 %v2576, 16
  %v2857 = vrot.slane %v2855, 2
  %v2858 = vshll.u32 %v2576, 16
  %v2860 = vrot.slane %v2858, 3
  %v2861 = vor.u32 %v2857, %v2860
  %v2862 = vsel %vm2845, %v2853, %v2861
  %v2864 = vshrl.u32 %v2577, 16
  %v2866 = vrot.slane %v2864, 2
  %v2867 = vshll.u32 %v2577, 16
  %v2869 = vrot.slane %v2867, 3
  %v2870 = vor.u32 %v2866, %v2869
  %v2871 = vsel %vm2845, %v2861, %v2870
  %v2873 = vshrl.u32 %v2578, 16
  %v2875 = vrot.slane %v2873, 2
  %v2876 = vshll.u32 %v2578, 16
  %v2878 = vrot.slane %v2876, 3
  %v2879 = vor.u32 %v2875, %v2878
  %v2880 = vsel %vm2845, %v2870, %v2879
  %v2882 = vshrl.u32 %v2579, 16
  %v2884 = vrot.slane %v2882, 2
  %v2885 = vshll.u32 %v2579, 16
  %v2887 = vrot.slane %v2885, 3
  %v2888 = vor.u32 %v2884, %v2887
  %v2889 = vsel %vm2845, %v2879, %v2888
  %v2891 = vshrl.u32 %v2580, 16
  %v2893 = vrot.slane %v2891, 2
  %v2894 = vshll.u32 %v2580, 16
  %v2896 = vrot.slane %v2894, 3
  %v2897 = vor.u32 %v2893, %v2896
  %v2898 = vsel %vm2845, %v2888, %v2897
  %v2900 = vshrl.u32 %v2581, 16
  %v2902 = vrot.slane %v2900, 2
  %v2903 = vshll.u32 %v2581, 16
  %v2905 = vrot.slane %v2903, 3
  %v2906 = vor.u32 %v2902, %v2905
  %v2907 = vsel %vm2845, %v2897, %v2906
  %v2909 = vshrl.u32 %v2582, 16
  %v2911 = vrot.slane %v2909, 2
  %v2912 = vshll.u32 %v2582, 16
  %v2914 = vrot.slane %v2912, 3
  %v2915 = vor.u32 %v2911, %v2914
  %v2916 = vsel %vm2845, %v2906, %v2915
  %v2918 = vshrl.u32 %v2583, 16
  %v2920 = vrot.slane %v2918, 2
  %v2921 = vshll.u32 %v2583, 16
  %v2923 = vrot.slane %v2921, 3
  %v2924 = vor.u32 %v2920, %v2923
  %v2925 = vsel %vm2845, %v2915, %v2924
  %v2927 = vshrl.u32 %v2584, 16
  %v2929 = vrot.slane %v2927, 2
  %v2930 = vshll.u32 %v2584, 16
  %v2932 = vrot.slane %v2930, 3
  %v2933 = vor.u32 %v2929, %v2932
  %v2934 = vsel %vm2845, %v2924, %v2933
  %2935 = vrot.lane.b32.xlu0 %v2862, 20
  %v2936 = vpop.permute.xlu0 %2935
  %2937 = vrot.lane.b32.xlu0 %v2871, 20
  %v2938 = vpop.permute.xlu0 %2937
  %2939 = vrot.lane.b32.xlu0 %v2880, 20
  %v2940 = vpop.permute.xlu0 %2939
  %2941 = vrot.lane.b32.xlu0 %v2889, 20
  %v2942 = vpop.permute.xlu0 %2941
  %2943 = vrot.lane.b32.xlu0 %v2898, 20
  %v2944 = vpop.permute.xlu0 %2943
  %2945 = vrot.lane.b32.xlu0 %v2907, 20
  %v2946 = vpop.permute.xlu0 %2945
  %2947 = vrot.lane.b32.xlu0 %v2916, 20
  %v2948 = vpop.permute.xlu0 %2947
  %2949 = vrot.lane.b32.xlu0 %v2925, 20
  %v2950 = vpop.permute.xlu0 %2949
  %2951 = vrot.lane.b32.xlu0 %v2934, 20
  %v2952 = vpop.permute.xlu0 %2951
  %2953 = vrot.lane.b32.xlu0 %v2933, 20
  %v2954 = vpop.permute.xlu0 %2953
  %vm2955 = vsmask.f32 3328
  %v2956 = vrot.slane %v2647, 4
  %v2957 = vrot.slane %v2649, 5
  %v2958 = vor.u32 %v2956, %v2957
  %v2959 = vrot.slane %v2658, 4
  %v2960 = vrot.slane %v2654, 5
  %v2961 = vor.u32 %v2959, %v2960
  %v2962 = vsel %vm2955, %v2958, %v2961
  %v2963 = vrot.slane %v2666, 4
  %v2964 = vrot.slane %v2662, 5
  %v2965 = vor.u32 %v2963, %v2964
  %v2966 = vsel %vm2955, %v2961, %v2965
  %v2967 = vrot.slane %v2674, 4
  %v2968 = vrot.slane %v2670, 5
  %v2969 = vor.u32 %v2967, %v2968
  %v2970 = vsel %vm2955, %v2965, %v2969
  %v2971 = vrot.slane %v2682, 4
  %v2972 = vrot.slane %v2678, 5
  %v2973 = vor.u32 %v2971, %v2972
  %v2974 = vsel %vm2955, %v2969, %v2973
  %v2975 = vrot.slane %v2690, 4
  %v2976 = vrot.slane %v2686, 5
  %v2977 = vor.u32 %v2975, %v2976
  %v2978 = vsel %vm2955, %v2973, %v2977
  %v2979 = vrot.slane %v2698, 4
  %v2980 = vrot.slane %v2694, 5
  %v2981 = vor.u32 %v2979, %v2980
  %v2982 = vsel %vm2955, %v2977, %v2981
  %v2983 = vrot.slane %v2706, 4
  %v2984 = vrot.slane %v2702, 5
  %v2985 = vor.u32 %v2983, %v2984
  %v2986 = vsel %vm2955, %v2981, %v2985
  %v2987 = vrot.slane %v2714, 4
  %v2988 = vrot.slane %v2710, 5
  %v2989 = vor.u32 %v2987, %v2988
  %v2990 = vsel %vm2955, %v2985, %v2989
  %v2991 = vrot.slane %v2722, 4
  %v2992 = vrot.slane %v2718, 5
  %v2993 = vor.u32 %v2991, %v2992
  %v2994 = vsel %vm2955, %v2989, %v2993
  %v2996 = vshll.u32 %v2565, 16
  %v2998 = vrot.slane %v2996, 5
  %v2999 = vsel %vm2955, %v2993, %v2998
  %3000 = vrot.lane.b32.xlu0 %v2962, 24
  %v3001 = vpop.permute.xlu0 %3000
  %3002 = vrot.lane.b32.xlu0 %v2966, 24
  %v3003 = vpop.permute.xlu0 %3002
  %3004 = vrot.lane.b32.xlu0 %v2970, 24
  %v3005 = vpop.permute.xlu0 %3004
  %3006 = vrot.lane.b32.xlu0 %v2974, 24
  %v3007 = vpop.permute.xlu0 %3006
  %3008 = vrot.lane.b32.xlu0 %v2978, 24
  %v3009 = vpop.permute.xlu0 %3008
  %3010 = vrot.lane.b32.xlu0 %v2982, 24
  %v3011 = vpop.permute.xlu0 %3010
  %3012 = vrot.lane.b32.xlu0 %v2986, 24
  %v3013 = vpop.permute.xlu0 %3012
  %3014 = vrot.lane.b32.xlu0 %v2990, 24
  %v3015 = vpop.permute.xlu0 %3014
  %3016 = vrot.lane.b32.xlu0 %v2994, 24
  %v3017 = vpop.permute.xlu0 %3016
  %3018 = vrot.lane.b32.xlu0 %v2999, 24
  %v3019 = vpop.permute.xlu0 %3018
  %vm3020 = vsmask.f32 2304
  %v3021 = vshrl.u32 %v2565, 16
  %v3023 = vrot.slane %v3021, 5
  %v3024 = vrot.slane %v2996, 6
  %v3025 = vor.u32 %v3023, %v3024
  %v3027 = vshrl.u32 %v2566, 16
  %v3029 = vrot.slane %v3027, 5
  %v3030 = vshll.u32 %v2566, 16
  %v3032 = vrot.slane %v3030, 6
  %v3033 = vor.u32 %v3029, %v3032
  %v3034 = vsel %vm3020, %v3025, %v3033
  %v3036 = vshrl.u32 %v2567, 16
  %v3038 = vrot.slane %v3036, 5
  %v3039 = vshll.u32 %v2567, 16
  %v3041 = vrot.slane %v3039, 6
  %v3042 = vor.u32 %v3038, %v3041
  %v3043 = vsel %vm3020, %v3033, %v3042
  %v3045 = vshrl.u32 %v2568, 16
  %v3047 = vrot.slane %v3045, 5
  %v3048 = vshll.u32 %v2568, 16
  %v3050 = vrot.slane %v3048, 6
  %v3051 = vor.u32 %v3047, %v3050
  %v3052 = vsel %vm3020, %v3042, %v3051
  %v3054 = vshrl.u32 %v2569, 16
  %v3056 = vrot.slane %v3054, 5
  %v3057 = vshll.u32 %v2569, 16
  %v3059 = vrot.slane %v3057, 6
  %v3060 = vor.u32 %v3056, %v3059
  %v3061 = vsel %vm3020, %v3051, %v3060
  %v3063 = vshrl.u32 %v2570, 16
  %v3065 = vrot.slane %v3063, 5
  %v3066 = vshll.u32 %v2570, 16
  %v3068 = vrot.slane %v3066, 6
  %v3069 = vor.u32 %v3065, %v3068
  %v3070 = vsel %vm3020, %v3060, %v3069
  %v3072 = vshrl.u32 %v2571, 16
  %v3074 = vrot.slane %v3072, 5
  %v3075 = vshll.u32 %v2571, 16
  %v3077 = vrot.slane %v3075, 6
  %v3078 = vor.u32 %v3074, %v3077
  %v3079 = vsel %vm3020, %v3069, %v3078
  %v3081 = vshrl.u32 %v2572, 16
  %v3083 = vrot.slane %v3081, 5
  %v3084 = vshll.u32 %v2572, 16
  %v3086 = vrot.slane %v3084, 6
  %v3087 = vor.u32 %v3083, %v3086
  %v3088 = vsel %vm3020, %v3078, %v3087
  %v3090 = vshrl.u32 %v2573, 16
  %v3092 = vrot.slane %v3090, 5
  %v3093 = vshll.u32 %v2573, 16
  %v3095 = vrot.slane %v3093, 6
  %v3096 = vor.u32 %v3092, %v3095
  %v3097 = vsel %vm3020, %v3087, %v3096
  %v3099 = vshrl.u32 %v2574, 16
  %v3101 = vrot.slane %v3099, 5
  %v3102 = vshll.u32 %v2574, 16
  %v3104 = vrot.slane %v3102, 6
  %v3105 = vor.u32 %v3101, %v3104
  %v3106 = vsel %vm3020, %v3096, %v3105
  %v3107 = vrot.slane %v2847, 5
  %v3108 = vrot.slane %v2850, 6
  %v3109 = vor.u32 %v3107, %v3108
  %v3110 = vsel %vm3020, %v3105, %v3109
  %3111 = vrot.lane.b32.xlu0 %v3034, 28
  %v3112 = vpop.permute.xlu0 %3111
  %3113 = vrot.lane.b32.xlu0 %v3043, 28
  %v3114 = vpop.permute.xlu0 %3113
  %3115 = vrot.lane.b32.xlu0 %v3052, 28
  %v3116 = vpop.permute.xlu0 %3115
  %3117 = vrot.lane.b32.xlu0 %v3061, 28
  %v3118 = vpop.permute.xlu0 %3117
  %3119 = vrot.lane.b32.xlu0 %v3070, 28
  %v3120 = vpop.permute.xlu0 %3119
  %3121 = vrot.lane.b32.xlu0 %v3079, 28
  %v3122 = vpop.permute.xlu0 %3121
  %3123 = vrot.lane.b32.xlu0 %v3088, 28
  %v3124 = vpop.permute.xlu0 %3123
  %3125 = vrot.lane.b32.xlu0 %v3097, 28
  %v3126 = vpop.permute.xlu0 %3125
  %3127 = vrot.lane.b32.xlu0 %v3106, 28
  %v3128 = vpop.permute.xlu0 %3127
  %3129 = vrot.lane.b32.xlu0 %v3110, 28
  %v3130 = vpop.permute.xlu0 %3129
  %vm3141 = vcmask 1042432
  %v3142 = vrot.slane %v2555, 5
  %v3143 = vrot.slane %v2556, 5
  %v3144 = vsel %vm3141, %v3142, %v3143
  %v3145 = vrot.slane %v2557, 5
  %v3146 = vsel %vm3141, %v3143, %v3145
  %v3147 = vrot.slane %v2558, 5
  %v3148 = vsel %vm3141, %v3145, %v3147
  %v3149 = vrot.slane %v2559, 5
  %v3150 = vsel %vm3141, %v3147, %v3149
  %v3151 = vrot.slane %v2560, 5
  %v3152 = vsel %vm3141, %v3149, %v3151
  %v3153 = vrot.slane %v2561, 5
  %v3154 = vsel %vm3141, %v3151, %v3153
  %v3155 = vrot.slane %v2562, 5
  %v3156 = vsel %vm3141, %v3153, %v3155
  %v3157 = vrot.slane %v2563, 5
  %v3158 = vsel %vm3141, %v3155, %v3157
  %v3159 = vrot.slane %v2564, 5
  %v3160 = vsel %vm3141, %v3157, %v3159
  %v3161 = vrot.slane %v2565, 5
  %v3162 = vsel %vm3141, %v3159, %v3161
  %3163 = vrot.lane.b32.xlu0 %v3144, 32
  %v3164 = vpop.permute.xlu0 %3163
  %3165 = vrot.lane.b32.xlu0 %v3146, 32
  %v3166 = vpop.permute.xlu0 %3165
  %3167 = vrot.lane.b32.xlu0 %v3148, 32
  %v3168 = vpop.permute.xlu0 %3167
  %3169 = vrot.lane.b32.xlu0 %v3150, 32
  %v3170 = vpop.permute.xlu0 %3169
  %3171 = vrot.lane.b32.xlu0 %v3152, 32
  %v3172 = vpop.permute.xlu0 %3171
  %3173 = vrot.lane.b32.xlu0 %v3154, 32
  %v3174 = vpop.permute.xlu0 %3173
  %3175 = vrot.lane.b32.xlu0 %v3156, 32
  %v3176 = vpop.permute.xlu0 %3175
  %3177 = vrot.lane.b32.xlu0 %v3158, 32
  %v3178 = vpop.permute.xlu0 %3177
  %3179 = vrot.lane.b32.xlu0 %v3160, 32
  %v3180 = vpop.permute.xlu0 %3179
  %3181 = vrot.lane.b32.xlu0 %v3162, 32
  %v3182 = vpop.permute.xlu0 %3181
  %v3184 = vsel %vm1798, %v2555, %v2626
  %v3186 = vsel %vm1798, %v2556, %v2628
  %v3188 = vsel %vm1798, %v2557, %v2630
  %v3190 = vsel %vm1798, %v2558, %v2632
  %v3192 = vsel %vm1798, %v2559, %v2634
  %v3194 = vsel %vm1798, %v2560, %v2636
  %v3196 = vsel %vm1798, %v2561, %v2638
  %v3198 = vsel %vm1798, %v2562, %v2640
  %v3200 = vsel %vm1798, %v2563, %v2642
  %v3202 = vsel %vm1798, %v2564, %v2644
  %v3204 = vsel %vm104, %v3184, %v2726
  %v3206 = vsel %vm104, %v3186, %v2728
  %v3208 = vsel %vm104, %v3188, %v2730
  %v3210 = vsel %vm104, %v3190, %v2732
  %v3212 = vsel %vm104, %v3192, %v2734
  %v3214 = vsel %vm104, %v3194, %v2736
  %v3216 = vsel %vm104, %v3196, %v2738
  %v3218 = vsel %vm104, %v3198, %v2740
  %v3220 = vsel %vm104, %v3200, %v2742
  %v3222 = vsel %vm104, %v3202, %v2744
  %vm3223 = vcmask 97280
  %v3225 = vsel %vm3223, %v3204, %v2776
  %v3227 = vsel %vm3223, %v3206, %v2778
  %v3229 = vsel %vm3223, %v3208, %v2780
  %v3231 = vsel %vm3223, %v3210, %v2782
  %v3233 = vsel %vm3223, %v3212, %v2784
  %v3235 = vsel %vm3223, %v3214, %v2786
  %v3237 = vsel %vm3223, %v3216, %v2788
  %v3239 = vsel %vm3223, %v3218, %v2790
  %v3241 = vsel %vm3223, %v3220, %v2792
  %v3243 = vsel %vm3223, %v3222, %v2794
  %vm3244 = vcmask 130048
  %v3246 = vsel %vm3244, %v3225, %v2826
  %v3248 = vsel %vm3244, %v3227, %v2828
  %v3250 = vsel %vm3244, %v3229, %v2830
  %v3252 = vsel %vm3244, %v3231, %v2832
  %v3254 = vsel %vm3244, %v3233, %v2834
  %v3256 = vsel %vm3244, %v3235, %v2836
  %v3258 = vsel %vm3244, %v3237, %v2838
  %v3260 = vsel %vm3244, %v3239, %v2840
  %v3262 = vsel %vm3244, %v3241, %v2842
  %v3264 = vsel %vm3244, %v3243, %v2844
  %vm3265 = vcmask 162816
  %v3267 = vsel %vm3265, %v3246, %v2936
  %v3269 = vsel %vm3265, %v3248, %v2938
  %v3271 = vsel %vm3265, %v3250, %v2940
  %v3273 = vsel %vm3265, %v3252, %v2942
  %v3275 = vsel %vm3265, %v3254, %v2944
  %v3277 = vsel %vm3265, %v3256, %v2946
  %v3279 = vsel %vm3265, %v3258, %v2948
  %v3281 = vsel %vm3265, %v3260, %v2950
  %v3283 = vsel %vm3265, %v3262, %v2952
  %v3285 = vsel %vm3265, %v3264, %v2954
  %vm3286 = vcmask 195584
  %v3288 = vsel %vm3286, %v3267, %v3001
  %v3290 = vsel %vm3286, %v3269, %v3003
  %v3292 = vsel %vm3286, %v3271, %v3005
  %v3294 = vsel %vm3286, %v3273, %v3007
  %v3296 = vsel %vm3286, %v3275, %v3009
  %v3298 = vsel %vm3286, %v3277, %v3011
  %v3300 = vsel %vm3286, %v3279, %v3013
  %v3302 = vsel %vm3286, %v3281, %v3015
  %v3304 = vsel %vm3286, %v3283, %v3017
  %v3306 = vsel %vm3286, %v3285, %v3019
  %vm3307 = vcmask 228352
  %v3309 = vsel %vm3307, %v3288, %v3112
  %v3311 = vsel %vm3307, %v3290, %v3114
  %v3313 = vsel %vm3307, %v3292, %v3116
  %v3315 = vsel %vm3307, %v3294, %v3118
  %v3317 = vsel %vm3307, %v3296, %v3120
  %v3319 = vsel %vm3307, %v3298, %v3122
  %v3321 = vsel %vm3307, %v3300, %v3124
  %v3323 = vsel %vm3307, %v3302, %v3126
  %v3325 = vsel %vm3307, %v3304, %v3128
  %v3327 = vsel %vm3307, %v3306, %v3130
  %vm3328 = vcmask 261120
  %v3330 = vsel %vm3328, %v3309, %v3164
  %v3332 = vsel %vm3328, %v3311, %v3166
  %v3334 = vsel %vm3328, %v3313, %v3168
  %v3336 = vsel %vm3328, %v3315, %v3170
  %v3338 = vsel %vm3328, %v3317, %v3172
  %v3340 = vsel %vm3328, %v3319, %v3174
  %v3342 = vsel %vm3328, %v3321, %v3176
  %v3344 = vsel %vm3328, %v3323, %v3178
  %v3346 = vsel %vm3328, %v3325, %v3180
  %v3348 = vsel %vm3328, %v3327, %v3182
  %v3354 = vunpack.c.l.b16 %v98
  %v3355 = vunpack.c.l.b16 %v99
  %v3356 = vunpack.c.l.b16 %v100
  %v3357 = vunpack.c.l.b16 %v101
  %v3358 = vunpack.c.l.b16 %v102
  %v3359 = vpack.c.b16 %v3355, %v3354
  %v3360 = vpack.c.b16 %v3357, %v3356
  %v3361 = vpack.c.b16 %v3358, %v3358
  %vm3364 = vcmask 293888
  %v3365 = vsel %vm3364, %v3330, 0
  %v3367 = vsel %vm3364, %v3332, 0
  %v3369 = vsel %vm3364, %v3334, 0
  %v3371 = vsel %vm3364, %v3336, 0
  %v3373 = vsel %vm3364, %v3338, 0
  %v3375 = vsel %vm3364, %v3340, 0
  %v3377 = vsel %vm3364, %v3342, 0
  %v3379 = vsel %vm3364, %v3344, 0
  %v3381 = vsel %vm3364, %v3346, 0
  %v3383 = vsel %vm3364, %v3348, 0
  %vm3385 = vcmask 1041408
  %v3387 = vsel %vm3385, %v3361, 0
  %3389 = vmatprep.subr.bf16.mxu0 0
  %3390 = vmatpush1.bf16.msra.mxu0 0
  %3391 = vmatprep.subr.bf16.mxu0 0
  %3392 = vmatpush1.bf16.msra.mxu0 0
  %3393 = vmatprep.subr.bf16.mxu0 0
  %3394 = vmatpush1.bf16.msra.mxu0 0
  %3395 = vmatprep.subr.bf16.mxu0 0
  %3396 = vmatpush1.bf16.msra.mxu0 0
  %3397 = vmatprep.subr.bf16.mxu0 0
  %3398 = vmatpush1.bf16.msra.mxu0 0
  %3399 = vmatprep.subr.bf16.mxu0 0
  %3400 = vmatpush1.bf16.msra.mxu0 %v3387
  %3401 = vmatprep.subr.bf16.mxu0 0
  %3402 = vmatpush1.bf16.msra.mxu0 %v3360
  %3403 = vmatprep.subr.bf16.mxu0 0
  %3404 = vmatpush1.bf16.msra.mxu0 %v3359
  %3405 = vmatprep.subr.bf16.mxu0 0
  %3406 = vmatpush2.bf16.msra.mxu0 0
  %3407 = vmatprep.subr.bf16.mxu0 0
  %3408 = vmatpush2.bf16.msra.mxu0 0
  %3409 = vmatprep.subr.bf16.mxu0 0
  %3410 = vmatpush2.bf16.msra.mxu0 0
  %3411 = vmatprep.subr.bf16.mxu0 0
  %3412 = vmatpush2.bf16.msra.mxu0 0
  %3413 = vmatprep.subr.bf16.mxu0 0
  %3414 = vmatpush2.bf16.msra.mxu0 0
  %3415 = vmatprep.subr.bf16.mxu0 0
  %3416 = vmatpush2.bf16.msra.mxu0 0
  %3417 = vmatprep.subr.bf16.mxu0 0
  %3418 = vmatpush2.bf16.msra.mxu0 0
  %3419 = vmatprep.subr.bf16.mxu0 0
  %3420 = vmatpush2.bf16.msra.mxu0 0
  %3421 = vmatprep.mubr.bf16.mxu0 0
  %3422 = vmatmul.mubr.bf16.gmra.mxu0 %v3365
  %v3423 = vpop.f32.mrf.mxu0
  %v3424 = vadd.f32 0.0, %v3423
  %v3425 = vpop.f32.mrf.mxu0
  %v3426 = vpop.f32.mrf.mxu0
  %v3427 = vadd.f32 0.0, %v3426
  %v3428 = vpop.f32.mrf.mxu0
  %3429 = vmatprep.mubr.bf16.mxu0 0
  %3430 = vmatmul.mubr.bf16.gmra.mxu0 %v3367
  %v3431 = vpop.f32.mrf.mxu0
  %v3432 = vadd.f32 0.0, %v3431
  %v3433 = vpop.f32.mrf.mxu0
  %v3434 = vpop.f32.mrf.mxu0
  %v3435 = vadd.f32 0.0, %v3434
  %v3436 = vpop.f32.mrf.mxu0
  %3437 = vmatprep.mubr.bf16.mxu0 0
  %3438 = vmatmul.mubr.bf16.gmra.mxu0 %v3369
  %v3439 = vpop.f32.mrf.mxu0
  %v3440 = vadd.f32 0.0, %v3439
  %v3441 = vpop.f32.mrf.mxu0
  %v3442 = vpop.f32.mrf.mxu0
  %v3443 = vadd.f32 0.0, %v3442
  %v3444 = vpop.f32.mrf.mxu0
  %3445 = vmatprep.mubr.bf16.mxu0 0
  %3446 = vmatmul.mubr.bf16.gmra.mxu0 %v3371
  %v3447 = vpop.f32.mrf.mxu0
  %v3448 = vadd.f32 0.0, %v3447
  %v3449 = vpop.f32.mrf.mxu0
  %v3450 = vpop.f32.mrf.mxu0
  %v3451 = vadd.f32 0.0, %v3450
  %v3452 = vpop.f32.mrf.mxu0
  %3453 = vmatprep.mubr.bf16.mxu0 0
  %3454 = vmatmul.mubr.bf16.gmra.mxu0 %v3373
  %v3455 = vpop.f32.mrf.mxu0
  %v3456 = vadd.f32 0.0, %v3455
  %v3457 = vpop.f32.mrf.mxu0
  %v3458 = vpop.f32.mrf.mxu0
  %v3459 = vadd.f32 0.0, %v3458
  %v3460 = vpop.f32.mrf.mxu0
  %3461 = vmatprep.mubr.bf16.mxu0 0
  %3462 = vmatmul.mubr.bf16.gmra.mxu0 %v3375
  %v3463 = vpop.f32.mrf.mxu0
  %v3464 = vadd.f32 0.0, %v3463
  %v3465 = vpop.f32.mrf.mxu0
  %v3466 = vpop.f32.mrf.mxu0
  %v3467 = vadd.f32 0.0, %v3466
  %v3468 = vpop.f32.mrf.mxu0
  %3469 = vmatprep.mubr.bf16.mxu0 0
  %3470 = vmatmul.mubr.bf16.gmra.mxu0 %v3377
  %v3471 = vpop.f32.mrf.mxu0
  %v3472 = vadd.f32 0.0, %v3471
  %v3473 = vpop.f32.mrf.mxu0
  %v3474 = vpop.f32.mrf.mxu0
  %v3475 = vadd.f32 0.0, %v3474
  %v3476 = vpop.f32.mrf.mxu0
  %3477 = vmatprep.mubr.bf16.mxu0 0
  %3478 = vmatmul.mubr.bf16.gmra.mxu0 %v3379
  %v3479 = vpop.f32.mrf.mxu0
  %v3480 = vadd.f32 0.0, %v3479
  %v3481 = vpop.f32.mrf.mxu0
  %v3482 = vpop.f32.mrf.mxu0
  %v3483 = vadd.f32 0.0, %v3482
  %v3484 = vpop.f32.mrf.mxu0
  %3485 = vmatprep.mubr.bf16.mxu0 0
  %3486 = vmatmul.mubr.bf16.gmra.mxu0 %v3381
  %v3487 = vpop.f32.mrf.mxu0
  %v3488 = vadd.f32 0.0, %v3487
  %v3489 = vpop.f32.mrf.mxu0
  %v3490 = vpop.f32.mrf.mxu0
  %v3491 = vadd.f32 0.0, %v3490
  %v3492 = vpop.f32.mrf.mxu0
  %3493 = vmatprep.mubr.bf16.mxu0 0
  %3494 = vmatmul.mubr.bf16.gmra.mxu0 %v3383
  %v3495 = vpop.f32.mrf.mxu0
  %v3496 = vadd.f32 0.0, %v3495
  %v3497 = vpop.f32.mrf.mxu0
  %v3498 = vpop.f32.mrf.mxu0
  %v3499 = vpop.f32.mrf.mxu0
  %3500 = vdwg.mxu0
  %3501 = vset.pattern.permute.xlu0 9
  %3502 = vperm.xlu0 %3501, %v15
  %v3503 = vpop.permute.xlu0 %3502
  %3505 = vset.pattern.permute.xlu0 9
  %3506 = vperm.xlu0 %3505, %v16
  %v3507 = vpop.permute.xlu0 %3506
  %3509 = vset.pattern.permute.xlu0 9
  %3510 = vperm.xlu0 %3509, %v17
  %v3511 = vpop.permute.xlu0 %3510
  %3513 = vset.pattern.permute.xlu0 9
  %3514 = vperm.xlu0 %3513, %v18
  %v3515 = vpop.permute.xlu0 %3514
  %3517 = vset.pattern.permute.xlu0 9
  %3518 = vperm.xlu0 %3517, %v19
  %v3519 = vpop.permute.xlu0 %3518
  %3521 = vset.pattern.permute.xlu0 9
  %3522 = vperm.xlu0 %3521, %v20
  %v3523 = vpop.permute.xlu0 %3522
  %3525 = vset.pattern.permute.xlu0 9
  %3526 = vperm.xlu0 %3525, %v21
  %v3527 = vpop.permute.xlu0 %3526
  %3529 = vset.pattern.permute.xlu0 9
  %3530 = vperm.xlu0 %3529, %v22
  %v3531 = vpop.permute.xlu0 %3530
  %3533 = vset.pattern.permute.xlu0 9
  %3534 = vperm.xlu0 %3533, %v23
  %v3535 = vpop.permute.xlu0 %3534
  %3537 = vset.pattern.permute.xlu0 9
  %3538 = vperm.xlu0 %3537, %v24
  %v3539 = vpop.permute.xlu0 %3538
  %3541 = vset.pattern.permute.xlu0 9
  %3542 = vperm.xlu0 %3541, %v25
  %v3543 = vpop.permute.xlu0 %3542
  %3545 = vset.pattern.permute.xlu0 9
  %3546 = vperm.xlu0 %3545, %v26
  %v3547 = vpop.permute.xlu0 %3546
  %3549 = vset.pattern.permute.xlu0 9
  %3550 = vperm.xlu0 %3549, %v27
  %v3551 = vpop.permute.xlu0 %3550
  %3553 = vset.pattern.permute.xlu0 9
  %3554 = vperm.xlu0 %3553, %v28
  %v3555 = vpop.permute.xlu0 %3554
  %3557 = vset.pattern.permute.xlu0 9
  %3558 = vperm.xlu0 %3557, %v29
  %v3559 = vpop.permute.xlu0 %3558
  %3561 = vset.pattern.permute.xlu0 9
  %3562 = vperm.xlu0 %3561, %v30
  %v3563 = vpop.permute.xlu0 %3562
  %3565 = vset.pattern.permute.xlu0 9
  %3566 = vperm.xlu0 %3565, %v31
  %v3567 = vpop.permute.xlu0 %3566
  %3569 = vset.pattern.permute.xlu0 9
  %3570 = vperm.xlu0 %3569, %v32
  %v3571 = vpop.permute.xlu0 %3570
  %3573 = vset.pattern.permute.xlu0 9
  %3574 = vperm.xlu0 %3573, %v33
  %v3575 = vpop.permute.xlu0 %3574
  %v3577 = vmul.f32 %v3424, %v3503
  %v3578 = vmul.f32 %v3427, %v3507
  %v3579 = vmul.f32 %v3432, %v3511
  %v3580 = vmul.f32 %v3435, %v3515
  %v3581 = vmul.f32 %v3440, %v3519
  %v3582 = vmul.f32 %v3443, %v3523
  %v3583 = vmul.f32 %v3448, %v3527
  %v3584 = vmul.f32 %v3451, %v3531
  %v3585 = vmul.f32 %v3456, %v3535
  %v3586 = vmul.f32 %v3459, %v3539
  %v3587 = vmul.f32 %v3464, %v3543
  %v3588 = vmul.f32 %v3467, %v3547
  %v3589 = vmul.f32 %v3472, %v3551
  %v3590 = vmul.f32 %v3475, %v3555
  %v3591 = vmul.f32 %v3480, %v3559
  %v3592 = vmul.f32 %v3483, %v3563
  %v3593 = vmul.f32 %v3488, %v3567
  %v3594 = vmul.f32 %v3491, %v3571
  %v3595 = vmul.f32 %v3496, %v3575
  %v3596 = vsel %vm1798, %v3577, 0.0
  %v3597 = vsel %vm1798, %v3578, 0.0
  %v3598 = vadd.f32 %v3596, %v3597
  %v3599 = vsel %vm1798, %v3579, 0.0
  %v3600 = vadd.f32 %v3598, %v3599
  %v3601 = vsel %vm1798, %v3580, 0.0
  %v3602 = vadd.f32 %v3600, %v3601
  %v3603 = vsel %vm1798, %v3581, 0.0
  %v3604 = vadd.f32 %v3602, %v3603
  %v3605 = vsel %vm1798, %v3582, 0.0
  %v3606 = vadd.f32 %v3604, %v3605
  %v3607 = vsel %vm1798, %v3583, 0.0
  %v3608 = vadd.f32 %v3606, %v3607
  %v3609 = vsel %vm1798, %v3584, 0.0
  %v3610 = vadd.f32 %v3608, %v3609
  %v3611 = vsel %vm1798, %v3585, 0.0
  %v3612 = vadd.f32 %v3610, %v3611
  %v3613 = vsel %vm1798, %v3586, 0.0
  %v3614 = vadd.f32 %v3612, %v3613
  %v3615 = vsel %vm1798, %v3587, 0.0
  %v3616 = vadd.f32 %v3614, %v3615
  %v3617 = vsel %vm1798, %v3588, 0.0
  %v3618 = vadd.f32 %v3616, %v3617
  %v3619 = vsel %vm1798, %v3589, 0.0
  %v3620 = vadd.f32 %v3618, %v3619
  %v3621 = vsel %vm1798, %v3590, 0.0
  %v3622 = vadd.f32 %v3620, %v3621
  %v3623 = vsel %vm1798, %v3591, 0.0
  %v3624 = vadd.f32 %v3622, %v3623
  %v3625 = vsel %vm1798, %v3592, 0.0
  %v3626 = vadd.f32 %v3624, %v3625
  %v3627 = vsel %vm1798, %v3593, 0.0
  %v3628 = vadd.f32 %v3626, %v3627
  %v3629 = vsel %vm1798, %v3594, 0.0
  %v3630 = vadd.f32 %v3628, %v3629
  %v3631 = vsel %vm1798, %v3595, 0.0
  %v3632 = vadd.f32 %v3630, %v3631
  %v3633 = vrot.slane %v3632, 4
  %v3634 = vadd.f32 %v3632, %v3633
  %v3635 = vrot.slane %v3634, 2
  %v3636 = vadd.f32 %v3634, %v3635
  %v3637 = vrot.slane %v3636, 1
  %v3638 = vadd.f32 %v3636, %v3637
  %v3639 = vmul.f32 %v3577, %v3577
  %v3640 = vmul.f32 %v3578, %v3578
  %v3641 = vmul.f32 %v3579, %v3579
  %v3642 = vmul.f32 %v3580, %v3580
  %v3643 = vmul.f32 %v3581, %v3581
  %v3644 = vmul.f32 %v3582, %v3582
  %v3645 = vmul.f32 %v3583, %v3583
  %v3646 = vmul.f32 %v3584, %v3584
  %v3647 = vmul.f32 %v3585, %v3585
  %v3648 = vmul.f32 %v3586, %v3586
  %v3649 = vmul.f32 %v3587, %v3587
  %v3650 = vmul.f32 %v3588, %v3588
  %v3651 = vmul.f32 %v3589, %v3589
  %v3652 = vmul.f32 %v3590, %v3590
  %v3653 = vmul.f32 %v3591, %v3591
  %v3654 = vmul.f32 %v3592, %v3592
  %v3655 = vmul.f32 %v3593, %v3593
  %v3656 = vmul.f32 %v3594, %v3594
  %v3657 = vmul.f32 %v3595, %v3595
  %v3658 = vsel %vm1798, %v3639, 0.0
  %v3659 = vsel %vm1798, %v3640, 0.0
  %v3660 = vadd.f32 %v3658, %v3659
  %v3661 = vsel %vm1798, %v3641, 0.0
  %v3662 = vadd.f32 %v3660, %v3661
  %v3663 = vsel %vm1798, %v3642, 0.0
  %v3664 = vadd.f32 %v3662, %v3663
  %v3665 = vsel %vm1798, %v3643, 0.0
  %v3666 = vadd.f32 %v3664, %v3665
  %v3667 = vsel %vm1798, %v3644, 0.0
  %v3668 = vadd.f32 %v3666, %v3667
  %v3669 = vsel %vm1798, %v3645, 0.0
  %v3670 = vadd.f32 %v3668, %v3669
  %v3671 = vsel %vm1798, %v3646, 0.0
  %v3672 = vadd.f32 %v3670, %v3671
  %v3673 = vsel %vm1798, %v3647, 0.0
  %v3674 = vadd.f32 %v3672, %v3673
  %v3675 = vsel %vm1798, %v3648, 0.0
  %v3676 = vadd.f32 %v3674, %v3675
  %v3677 = vsel %vm1798, %v3649, 0.0
  %v3678 = vadd.f32 %v3676, %v3677
  %v3679 = vsel %vm1798, %v3650, 0.0
  %v3680 = vadd.f32 %v3678, %v3679
  %v3681 = vsel %vm1798, %v3651, 0.0
  %v3682 = vadd.f32 %v3680, %v3681
  %v3683 = vsel %vm1798, %v3652, 0.0
  %v3684 = vadd.f32 %v3682, %v3683
  %v3685 = vsel %vm1798, %v3653, 0.0
  %v3686 = vadd.f32 %v3684, %v3685
  %v3687 = vsel %vm1798, %v3654, 0.0
  %v3688 = vadd.f32 %v3686, %v3687
  %v3689 = vsel %vm1798, %v3655, 0.0
  %v3690 = vadd.f32 %v3688, %v3689
  %v3691 = vsel %vm1798, %v3656, 0.0
  %v3692 = vadd.f32 %v3690, %v3691
  %v3693 = vsel %vm1798, %v3657, 0.0
  %v3694 = vadd.f32 %v3692, %v3693
  %v3695 = vrot.slane %v3694, 4
  %v3696 = vadd.f32 %v3694, %v3695
  %v3697 = vrot.slane %v3696, 2
  %v3698 = vadd.f32 %v3696, %v3697
  %v3699 = vrot.slane %v3698, 1
  %v3700 = vadd.f32 %v3698, %v3699
  %v3701 = vmul.f32 %v3638, 0.0078125
  %v3702 = vmul.f32 %v3700, 0.0078125
  %v3703 = vmul.f32 %v3701, %v3701
  %v3704 = vsub.f32 %v3702, %v3703
  %v3705 = vmax.f32 %v3704, 0.0
  %v3706 = vadd.f32 %v3705, 1e-05
  %v3707 = vrsqrt.pop %v3706
  %v3708 = vmul.f32 %v96, %v3707
  %v3709 = vmul.f32 %v3701, %v3708
  %v3711 = vrot.slane %v3709, 7
  %v3713 = vsub.f32 %v96, %v3711
  %v3714 = vlaneseq
  %v3715 = vshrl.u32 %v3714, 7
  %v3716 = vsub.s32 4, %v3715
  %v3717 = vrot.slane %v3708, %v3716
  %v3718 = vmul.f32 %v3424, %v3717
  %v3719 = vmul.f32 %v3427, %v3717
  %v3720 = vmul.f32 %v3432, %v3717
  %v3721 = vmul.f32 %v3435, %v3717
  %v3722 = vmul.f32 %v3440, %v3717
  %v3723 = vmul.f32 %v3443, %v3717
  %v3724 = vmul.f32 %v3448, %v3717
  %v3725 = vmul.f32 %v3451, %v3717
  %v3726 = vmul.f32 %v3456, %v3717
  %v3727 = vmul.f32 %v3459, %v3717
  %v3728 = vmul.f32 %v3464, %v3717
  %v3729 = vmul.f32 %v3467, %v3717
  %v3730 = vmul.f32 %v3472, %v3717
  %v3731 = vmul.f32 %v3475, %v3717
  %v3732 = vmul.f32 %v3480, %v3717
  %v3733 = vmul.f32 %v3483, %v3717
  %v3734 = vmul.f32 %v3488, %v3717
  %v3735 = vmul.f32 %v3491, %v3717
  %v3736 = vmul.f32 %v3496, %v3717
  %v3737 = vlaneseq
  %v3738 = vshrl.u32 %v3737, 7
  %v3739 = vsub.s32 5, %v3738
  %v3740 = vrot.slane %v3713, %v3739
  %v3741 = vadd.f32 %v3718, %v3740
  %v3742 = vadd.f32 %v3719, %v3740
  %v3743 = vadd.f32 %v3720, %v3740
  %v3744 = vadd.f32 %v3721, %v3740
  %v3745 = vadd.f32 %v3722, %v3740
  %v3746 = vadd.f32 %v3723, %v3740
  %v3747 = vadd.f32 %v3724, %v3740
  %v3748 = vadd.f32 %v3725, %v3740
  %v3749 = vadd.f32 %v3726, %v3740
  %v3750 = vadd.f32 %v3727, %v3740
  %v3751 = vadd.f32 %v3728, %v3740
  %v3752 = vadd.f32 %v3729, %v3740
  %v3753 = vadd.f32 %v3730, %v3740
  %v3754 = vadd.f32 %v3731, %v3740
  %v3755 = vadd.f32 %v3732, %v3740
  %v3756 = vadd.f32 %v3733, %v3740
  %v3757 = vadd.f32 %v3734, %v3740
  %v3758 = vadd.f32 %v3735, %v3740
  %v3759 = vadd.f32 %v3736, %v3740
  %v3760 = vmax.f32 %v3741, 0.0
  %v3761 = vmax.f32 %v3742, 0.0
  %v3762 = vmax.f32 %v3743, 0.0
  %v3763 = vmax.f32 %v3744, 0.0
  %v3764 = vmax.f32 %v3745, 0.0
  %v3765 = vmax.f32 %v3746, 0.0
  %v3766 = vmax.f32 %v3747, 0.0
  %v3767 = vmax.f32 %v3748, 0.0
  %v3768 = vmax.f32 %v3749, 0.0
  %v3769 = vmax.f32 %v3750, 0.0
  %v3770 = vmax.f32 %v3751, 0.0
  %v3771 = vmax.f32 %v3752, 0.0
  %v3772 = vmax.f32 %v3753, 0.0
  %v3773 = vmax.f32 %v3754, 0.0
  %v3774 = vmax.f32 %v3755, 0.0
  %v3775 = vmax.f32 %v3756, 0.0
  %v3776 = vmax.f32 %v3757, 0.0
  %v3777 = vmax.f32 %v3758, 0.0
  %v3778 = vmax.f32 %v3759, 0.0
  %v3779 = vpack.c.bf16 %v3761, %v3760
  %v3780 = vpack.c.bf16 %v3763, %v3762
  %v3781 = vpack.c.bf16 %v3765, %v3764
  %v3782 = vpack.c.bf16 %v3767, %v3766
  %v3783 = vpack.c.bf16 %v3769, %v3768
  %v3784 = vpack.c.bf16 %v3771, %v3770
  %v3785 = vpack.c.bf16 %v3773, %v3772
  %v3786 = vpack.c.bf16 %v3775, %v3774
  %v3787 = vpack.c.bf16 %v3777, %v3776
  %v3788 = vpack.c.bf16 %v3778, %v3778
  %v3799 = vrot.slane %v1300, 3
  %v3800 = vrot.slane %v1301, 3
  %v3801 = vsel %vm2805, %v3799, %v3800
  %v3802 = vrot.slane %v1302, 3
  %v3803 = vsel %vm2805, %v3800, %v3802
  %v3804 = vrot.slane %v1303, 3
  %v3805 = vsel %vm2805, %v3802, %v3804
  %v3806 = vrot.slane %v1304, 3
  %v3807 = vsel %vm2805, %v3804, %v3806
  %v3808 = vrot.slane %v1305, 3
  %v3809 = vsel %vm2805, %v3806, %v3808
  %v3810 = vrot.slane %v1306, 3
  %v3811 = vsel %vm2805, %v3808, %v3810
  %v3812 = vrot.slane %v1307, 3
  %v3813 = vsel %vm2805, %v3810, %v3812
  %v3814 = vrot.slane %v1308, 3
  %v3815 = vsel %vm2805, %v3812, %v3814
  %v3816 = vrot.slane %v1309, 3
  %v3817 = vsel %vm2805, %v3814, %v3816
  %v3819 = vsel %vm104, %v3801, 0
  %v3822 = vsel %vm104, %v3803, 0
  %v3825 = vsel %vm104, %v3805, 0
  %v3828 = vsel %vm104, %v3807, 0
  %v3831 = vsel %vm104, %v3809, 0
  %v3834 = vsel %vm104, %v3811, 0
  %v3837 = vsel %vm104, %v3813, 0
  %v3840 = vsel %vm104, %v3815, 0
  %v3843 = vsel %vm104, %v3817, 0
  %v3846 = vsel %vm104, %v3816, 0
  %v3849 = vsel %vm1434, %v103, 0
  %3851 = vmatprep.subr.bf16.mxu0 0
  %3852 = vmatpush1.bf16.msra.mxu0 0
  %3853 = vmatprep.subr.bf16.mxu0 0
  %3854 = vmatpush1.bf16.msra.mxu0 0
  %3855 = vmatprep.subr.bf16.mxu0 0
  %3856 = vmatpush1.bf16.msra.mxu0 0
  %3857 = vmatprep.subr.bf16.mxu0 0
  %3858 = vmatpush1.bf16.msra.mxu0 0
  %3859 = vmatprep.subr.bf16.mxu0 0
  %3860 = vmatpush1.bf16.msra.mxu0 0
  %3861 = vmatprep.subr.bf16.mxu0 0
  %3862 = vmatpush1.bf16.msra.mxu0 0
  %3863 = vmatprep.subr.bf16.mxu0 0
  %3864 = vmatpush1.bf16.msra.mxu0 0
  %3865 = vmatprep.subr.bf16.mxu0 0
  %3866 = vmatpush1.bf16.msra.mxu0 %v3849
  %3867 = vmatprep.subr.bf16.mxu0 0
  %3868 = vmatpush2.bf16.msra.mxu0 0
  %3869 = vmatprep.subr.bf16.mxu0 0
  %3870 = vmatpush2.bf16.msra.mxu0 0
  %3871 = vmatprep.subr.bf16.mxu0 0
  %3872 = vmatpush2.bf16.msra.mxu0 0
  %3873 = vmatprep.subr.bf16.mxu0 0
  %3874 = vmatpush2.bf16.msra.mxu0 0
  %3875 = vmatprep.subr.bf16.mxu0 0
  %3876 = vmatpush2.bf16.msra.mxu0 0
  %3877 = vmatprep.subr.bf16.mxu0 0
  %3878 = vmatpush2.bf16.msra.mxu0 0
  %3879 = vmatprep.subr.bf16.mxu0 0
  %3880 = vmatpush2.bf16.msra.mxu0 0
  %3881 = vmatprep.subr.bf16.mxu0 0
  %3882 = vmatpush2.bf16.msra.mxu0 0
  %3883 = vmatprep.mubr.bf16.mxu0 0
  %3884 = vmatmul.mubr.bf16.gmra.mxu0 %v3819
  %v3885 = vpop.f32.mrf.mxu0
  %v3886 = vadd.f32 0.0, %v3885
  %v3887 = vpop.f32.mrf.mxu0
  %v3888 = vpop.f32.mrf.mxu0
  %v3889 = vadd.f32 0.0, %v3888
  %v3890 = vpop.f32.mrf.mxu0
  %3891 = vmatprep.mubr.bf16.mxu0 0
  %3892 = vmatmul.mubr.bf16.gmra.mxu0 %v3822
  %v3893 = vpop.f32.mrf.mxu0
  %v3894 = vadd.f32 0.0, %v3893
  %v3895 = vpop.f32.mrf.mxu0
  %v3896 = vpop.f32.mrf.mxu0
  %v3897 = vadd.f32 0.0, %v3896
  %v3898 = vpop.f32.mrf.mxu0
  %3899 = vmatprep.mubr.bf16.mxu0 0
  %3900 = vmatmul.mubr.bf16.gmra.mxu0 %v3825
  %v3901 = vpop.f32.mrf.mxu0
  %v3902 = vadd.f32 0.0, %v3901
  %v3903 = vpop.f32.mrf.mxu0
  %v3904 = vpop.f32.mrf.mxu0
  %v3905 = vadd.f32 0.0, %v3904
  %v3906 = vpop.f32.mrf.mxu0
  %3907 = vmatprep.mubr.bf16.mxu0 0
  %3908 = vmatmul.mubr.bf16.gmra.mxu0 %v3828
  %v3909 = vpop.f32.mrf.mxu0
  %v3910 = vadd.f32 0.0, %v3909
  %v3911 = vpop.f32.mrf.mxu0
  %v3912 = vpop.f32.mrf.mxu0
  %v3913 = vadd.f32 0.0, %v3912
  %v3914 = vpop.f32.mrf.mxu0
  %3915 = vmatprep.mubr.bf16.mxu0 0
  %3916 = vmatmul.mubr.bf16.gmra.mxu0 %v3831
  %v3917 = vpop.f32.mrf.mxu0
  %v3918 = vadd.f32 0.0, %v3917
  %v3919 = vpop.f32.mrf.mxu0
  %v3920 = vpop.f32.mrf.mxu0
  %v3921 = vadd.f32 0.0, %v3920
  %v3922 = vpop.f32.mrf.mxu0
  %3923 = vmatprep.mubr.bf16.mxu0 0
  %3924 = vmatmul.mubr.bf16.gmra.mxu0 %v3834
  %v3925 = vpop.f32.mrf.mxu0
  %v3926 = vadd.f32 0.0, %v3925
  %v3927 = vpop.f32.mrf.mxu0
  %v3928 = vpop.f32.mrf.mxu0
  %v3929 = vadd.f32 0.0, %v3928
  %v3930 = vpop.f32.mrf.mxu0
  %3931 = vmatprep.mubr.bf16.mxu0 0
  %3932 = vmatmul.mubr.bf16.gmra.mxu0 %v3837
  %v3933 = vpop.f32.mrf.mxu0
  %v3934 = vadd.f32 0.0, %v3933
  %v3935 = vpop.f32.mrf.mxu0
  %v3936 = vpop.f32.mrf.mxu0
  %v3937 = vadd.f32 0.0, %v3936
  %v3938 = vpop.f32.mrf.mxu0
  %3939 = vmatprep.mubr.bf16.mxu0 0
  %3940 = vmatmul.mubr.bf16.gmra.mxu0 %v3840
  %v3941 = vpop.f32.mrf.mxu0
  %v3942 = vadd.f32 0.0, %v3941
  %v3943 = vpop.f32.mrf.mxu0
  %v3944 = vpop.f32.mrf.mxu0
  %v3945 = vadd.f32 0.0, %v3944
  %v3946 = vpop.f32.mrf.mxu0
  %3947 = vmatprep.mubr.bf16.mxu0 0
  %3948 = vmatmul.mubr.bf16.gmra.mxu0 %v3843
  %v3949 = vpop.f32.mrf.mxu0
  %v3950 = vadd.f32 0.0, %v3949
  %v3951 = vpop.f32.mrf.mxu0
  %v3952 = vpop.f32.mrf.mxu0
  %v3953 = vadd.f32 0.0, %v3952
  %v3954 = vpop.f32.mrf.mxu0
  %3955 = vmatprep.mubr.bf16.mxu0 0
  %3956 = vmatmul.mubr.bf16.gmra.mxu0 %v3846
  %v3957 = vpop.f32.mrf.mxu0
  %v3958 = vadd.f32 0.0, %v3957
  %v3959 = vpop.f32.mrf.mxu0
  %v3960 = vpop.f32.mrf.mxu0
  %v3961 = vpop.f32.mrf.mxu0
  %3962 = vdwg.mxu0
  %v3963 = vrot.slane %v3361, 2
  %v3965 = vsel %vm1798, %v3779, 0
  %v3968 = vsel %vm1798, %v3780, 0
  %v3971 = vsel %vm1798, %v3781, 0
  %v3974 = vsel %vm1798, %v3782, 0
  %v3977 = vsel %vm1798, %v3783, 0
  %v3980 = vsel %vm1798, %v3784, 0
  %v3983 = vsel %vm1798, %v3785, 0
  %v3986 = vsel %vm1798, %v3786, 0
  %v3989 = vsel %vm1798, %v3787, 0
  %v3992 = vsel %vm1798, %v3788, 0
  %v3995 = vsel %vm3385, %v3963, 0
  %3997 = vmatprep.subr.bf16.mxu0 0
  %3998 = vmatpush1.bf16.msra.mxu0 0
  %3999 = vmatprep.subr.bf16.mxu0 0
  %4000 = vmatpush1.bf16.msra.mxu0 0
  %4001 = vmatprep.subr.bf16.mxu0 0
  %4002 = vmatpush1.bf16.msra.mxu0 0
  %4003 = vmatprep.subr.bf16.mxu0 0
  %4004 = vmatpush1.bf16.msra.mxu0 0
  %4005 = vmatprep.subr.bf16.mxu0 0
  %4006 = vmatpush1.bf16.msra.mxu0 0
  %4007 = vmatprep.subr.bf16.mxu0 0
  %4008 = vmatpush1.bf16.msra.mxu0 0
  %4009 = vmatprep.subr.bf16.mxu0 0
  %4010 = vmatpush1.bf16.msra.mxu0 0
  %4011 = vmatprep.subr.bf16.mxu0 0
  %4012 = vmatpush1.bf16.msra.mxu0 %v3995
  %4013 = vmatprep.subr.bf16.mxu0 0
  %4014 = vmatpush2.bf16.msra.mxu0 0
  %4015 = vmatprep.subr.bf16.mxu0 0
  %4016 = vmatpush2.bf16.msra.mxu0 0
  %4017 = vmatprep.subr.bf16.mxu0 0
  %4018 = vmatpush2.bf16.msra.mxu0 0
  %4019 = vmatprep.subr.bf16.mxu0 0
  %4020 = vmatpush2.bf16.msra.mxu0 0
  %4021 = vmatprep.subr.bf16.mxu0 0
  %4022 = vmatpush2.bf16.msra.mxu0 0
  %4023 = vmatprep.subr.bf16.mxu0 0
  %4024 = vmatpush2.bf16.msra.mxu0 0
  %4025 = vmatprep.subr.bf16.mxu0 0
  %4026 = vmatpush2.bf16.msra.mxu0 0
  %4027 = vmatprep.subr.bf16.mxu0 0
  %4028 = vmatpush2.bf16.msra.mxu0 0
  %4029 = vmatprep.mubr.bf16.mxu0 0
  %4030 = vmatmul.mubr.bf16.gmra.mxu0 %v3965
  %v4031 = vpop.f32.mrf.mxu0
  %v4032 = vadd.f32 %v3886, %v4031
  %v4033 = vpop.f32.mrf.mxu0
  %v4034 = vpop.f32.mrf.mxu0
  %v4035 = vadd.f32 %v3889, %v4034
  %v4036 = vpop.f32.mrf.mxu0
  %4037 = vmatprep.mubr.bf16.mxu0 0
  %4038 = vmatmul.mubr.bf16.gmra.mxu0 %v3968
  %v4039 = vpop.f32.mrf.mxu0
  %v4040 = vadd.f32 %v3894, %v4039
  %v4041 = vpop.f32.mrf.mxu0
  %v4042 = vpop.f32.mrf.mxu0
  %v4043 = vadd.f32 %v3897, %v4042
  %v4044 = vpop.f32.mrf.mxu0
  %4045 = vmatprep.mubr.bf16.mxu0 0
  %4046 = vmatmul.mubr.bf16.gmra.mxu0 %v3971
  %v4047 = vpop.f32.mrf.mxu0
  %v4048 = vadd.f32 %v3902, %v4047
  %v4049 = vpop.f32.mrf.mxu0
  %v4050 = vpop.f32.mrf.mxu0
  %v4051 = vadd.f32 %v3905, %v4050
  %v4052 = vpop.f32.mrf.mxu0
  %4053 = vmatprep.mubr.bf16.mxu0 0
  %4054 = vmatmul.mubr.bf16.gmra.mxu0 %v3974
  %v4055 = vpop.f32.mrf.mxu0
  %v4056 = vadd.f32 %v3910, %v4055
  %v4057 = vpop.f32.mrf.mxu0
  %v4058 = vpop.f32.mrf.mxu0
  %v4059 = vadd.f32 %v3913, %v4058
  %v4060 = vpop.f32.mrf.mxu0
  %4061 = vmatprep.mubr.bf16.mxu0 0
  %4062 = vmatmul.mubr.bf16.gmra.mxu0 %v3977
  %v4063 = vpop.f32.mrf.mxu0
  %v4064 = vadd.f32 %v3918, %v4063
  %v4065 = vpop.f32.mrf.mxu0
  %v4066 = vpop.f32.mrf.mxu0
  %v4067 = vadd.f32 %v3921, %v4066
  %v4068 = vpop.f32.mrf.mxu0
  %4069 = vmatprep.mubr.bf16.mxu0 0
  %4070 = vmatmul.mubr.bf16.gmra.mxu0 %v3980
  %v4071 = vpop.f32.mrf.mxu0
  %v4072 = vadd.f32 %v3926, %v4071
  %v4073 = vpop.f32.mrf.mxu0
  %v4074 = vpop.f32.mrf.mxu0
  %v4075 = vadd.f32 %v3929, %v4074
  %v4076 = vpop.f32.mrf.mxu0
  %4077 = vmatprep.mubr.bf16.mxu0 0
  %4078 = vmatmul.mubr.bf16.gmra.mxu0 %v3983
  %v4079 = vpop.f32.mrf.mxu0
  %v4080 = vadd.f32 %v3934, %v4079
  %v4081 = vpop.f32.mrf.mxu0
  %v4082 = vpop.f32.mrf.mxu0
  %v4083 = vadd.f32 %v3937, %v4082
  %v4084 = vpop.f32.mrf.mxu0
  %4085 = vmatprep.mubr.bf16.mxu0 0
  %4086 = vmatmul.mubr.bf16.gmra.mxu0 %v3986
  %v4087 = vpop.f32.mrf.mxu0
  %v4088 = vadd.f32 %v3942, %v4087
  %v4089 = vpop.f32.mrf.mxu0
  %v4090 = vpop.f32.mrf.mxu0
  %v4091 = vadd.f32 %v3945, %v4090
  %v4092 = vpop.f32.mrf.mxu0
  %4093 = vmatprep.mubr.bf16.mxu0 0
  %4094 = vmatmul.mubr.bf16.gmra.mxu0 %v3989
  %v4095 = vpop.f32.mrf.mxu0
  %v4096 = vadd.f32 %v3950, %v4095
  %v4097 = vpop.f32.mrf.mxu0
  %v4098 = vpop.f32.mrf.mxu0
  %v4099 = vadd.f32 %v3953, %v4098
  %v4100 = vpop.f32.mrf.mxu0
  %4101 = vmatprep.mubr.bf16.mxu0 0
  %4102 = vmatmul.mubr.bf16.gmra.mxu0 %v3992
  %v4103 = vpop.f32.mrf.mxu0
  %v4104 = vadd.f32 %v3958, %v4103
  %v4105 = vpop.f32.mrf.mxu0
  %v4106 = vpop.f32.mrf.mxu0
  %v4107 = vpop.f32.mrf.mxu0
  %4108 = vdwg.mxu0
  %4109 = vst.msk [vmem:[%s3] sm:$0xff] %vm3244, %v4032
  %4110 = vst.msk [vmem:[%s3 + $0x8] sm:$0xff] %vm3244, %v4035
  %4111 = vst.msk [vmem:[%s3 + $0x10] sm:$0xff] %vm3244, %v4040
  %4112 = vst.msk [vmem:[%s3 + $0x18] sm:$0xff] %vm3244, %v4043
  %4113 = vst.msk [vmem:[%s3 + $0x20] sm:$0xff] %vm3244, %v4048
  %4114 = vst.msk [vmem:[%s3 + $0x28] sm:$0xff] %vm3244, %v4051
  %4115 = vst.msk [vmem:[%s3 + $0x30] sm:$0xff] %vm3244, %v4056
  %4116 = vst.msk [vmem:[%s3 + $0x38] sm:$0xff] %vm3244, %v4059
  %4117 = vst.msk [vmem:[%s3 + $0x40] sm:$0xff] %vm3244, %v4064
  %4118 = vst.msk [vmem:[%s3 + $0x48] sm:$0xff] %vm3244, %v4067
  %4119 = vst.msk [vmem:[%s3 + $0x50] sm:$0xff] %vm3244, %v4072
  %4120 = vst.msk [vmem:[%s3 + $0x58] sm:$0xff] %vm3244, %v4075
  %4121 = vst.msk [vmem:[%s3 + $0x60] sm:$0xff] %vm3244, %v4080
  %4122 = vst.msk [vmem:[%s3 + $0x68] sm:$0xff] %vm3244, %v4083
  %4123 = vst.msk [vmem:[%s3 + $0x70] sm:$0xff] %vm3244, %v4088
  %4124 = vst.msk [vmem:[%s3 + $0x78] sm:$0xff] %vm3244, %v4091
  %4125 = vst.msk [vmem:[%s3 + $0x80] sm:$0xff] %vm3244, %v4096
  %4126 = vst.msk [vmem:[%s3 + $0x88] sm:$0xff] %vm3244, %v4099
  %4127 = vst.msk [vmem:[%s3 + $0x90] sm:$0xff] %vm3244, %v4104
  // Predicated region
  $region14: #{bottleneck_v2_forward.1} parent=0 // pred_check
    _
  $region15: #{bottleneck_v2_forward.1} parent=0 // pred_check_branch
    %4129 = sbr.rel (0) target = $region17
  $region16: #{bottleneck_v2_forward.1} parent=0 // pred_region
    _
  $region17: #{bottleneck_v2_forward.1} parent=0 // pred_fallthru
    _
  // Predicated region
  $region18: #{bottleneck_v2_forward.1} parent=0 // pred_check
    _
  $region19: #{bottleneck_v2_forward.1} parent=0 // pred_check_branch
    %4131 = sbr.rel (0) target = $region21
  $region20: #{bottleneck_v2_forward.1} parent=0 // pred_region
    _
  $region21: #{bottleneck_v2_forward.1} parent=0 // pred_fallthru
    _

</llo_original>
